<compile_context>
chip_gen: v7x
topology: tpu7x:2x2x1
jax: 0.10.0
libtpu: 0.0.40
codegen_flags: <defaults>
</compile_context>

<pallas_src>
import math

import jax
import jax.numpy as jnp
from jax.experimental import pallas as pl
from jax.experimental.pallas import tpu as pltpu


def _sigmoid1push(x):
    # sigmoid(x) = 0.5 * (1 + tanh(x/2)): exactly one EUP push per element.
    return 0.5 * (jnp.tanh(0.5 * x) + 1.0)


# ----------------------------------------------------------------------------
# Pallas kernel: one bidirectional LSTM layer, both directions interleaved.
# Gate order follows PyTorch: i, f, g, o.
# ----------------------------------------------------------------------------
def _make_bilstm_kernel(T, B, H):
    def kernel(lens_ref, gx_ref, whh_ref, out_ref, hf, cf, hb, cb):
        # Hoisted once: per-row length vector (B, 1) built from SMEM scalars.
        row_ids = jax.lax.broadcasted_iota(jnp.int32, (B, 1), 0)
        len_vec = jnp.zeros((B, 1), jnp.int32)
        for b in range(B):
            len_vec = jnp.where(row_ids == b, lens_ref[b], len_vec)

        hf[...] = jnp.zeros_like(hf)
        cf[...] = jnp.zeros_like(cf)
        hb[...] = jnp.zeros_like(hb)
        cb[...] = jnp.zeros_like(cb)

        whh_f = whh_ref[0]  # (H, 4H); hoisted out of the unrolled loop
        whh_b = whh_ref[1]

        def cell(gx_t, h, c, whh):
            gates = gx_t + jnp.dot(h, whh, preferred_element_type=jnp.float32)
            i_g = _sigmoid1push(gates[:, 0 * H:1 * H])
            f_g = _sigmoid1push(gates[:, 1 * H:2 * H])
            g_g = jnp.tanh(gates[:, 2 * H:3 * H])
            o_g = _sigmoid1push(gates[:, 3 * H:4 * H])
            c_new = f_g * c + i_g * g_g
            h_new = o_g * jnp.tanh(c_new)
            return h_new, c_new

        # Fully unrolled time loop; all indices are static Python ints so the
        # LLO scheduler can interleave the two directions' MXU/EUP/VPU work.
        for s in range(T):
            tb = T - 1 - s

            # ---- forward direction, timestep s ----
            hF, cF = cell(gx_ref[0, s], hf[...], cf[...], whh_f)
            keep_f = len_vec > s                              # (B, 1) bool
            hf[...] = jnp.where(keep_f, hF, hf[...])
            cf[...] = jnp.where(keep_f, cF, cf[...])
            out_ref[s, :, 0:H] = jnp.where(keep_f, hF, 0.0)   # padded -> 0

            # ---- backward direction, timestep tb ----
            hB, cB = cell(gx_ref[1, tb], hb[...], cb[...], whh_b)
            keep_b = len_vec > tb
            hb[...] = jnp.where(keep_b, hB, hb[...])
            cb[...] = jnp.where(keep_b, cB, cb[...])
            out_ref[tb, :, H:2 * H] = jnp.where(keep_b, hB, 0.0)

    return kernel


def bilstm_layer_pallas(gx, lengths, whh_stacked):
    """gx: (2, T, B, 4H) f32 precomputed x @ W_ih + b (fwd, bwd);
    lengths: (B,) int32; whh_stacked: (2, H, 4H) f32.
    Returns (T, B, 2H): [..., :H] forward, [..., H:] backward outputs."""
    _, T, B, G = gx.shape
    H = whh_stacked.shape[1]
    kernel = _make_bilstm_kernel(T, B, H)
    return pl.pallas_call(
        kernel,
        out_shape=jax.ShapeDtypeStruct((T, B, 2 * H), jnp.float32),
        grid_spec=pltpu.PrefetchScalarGridSpec(
            num_scalar_prefetch=1,           # lengths -> SMEM
            grid=(1,),                       # single fused grid point
            in_specs=[
                pl.BlockSpec((2, T, B, G), lambda i, lens: (0, 0, 0, 0)),
                pl.BlockSpec((2, H, G), lambda i, lens: (0, 0, 0)),
            ],
            out_specs=pl.BlockSpec((T, B, 2 * H), lambda i, lens: (0, 0, 0)),
            scratch_shapes=[pltpu.VMEM((B, H), jnp.float32),   # h fwd
                            pltpu.VMEM((B, H), jnp.float32),   # c fwd
                            pltpu.VMEM((B, H), jnp.float32),   # h bwd
                            pltpu.VMEM((B, H), jnp.float32)],  # c bwd
        ),
        compiler_params=pltpu.CompilerParams(
            dimension_semantics=("arbitrary",)),
    )(lengths, gx, whh_stacked)


# ----------------------------------------------------------------------------
# Plain-JAX glue: parameter setup + per-layer input projection (hoisted matmul).
# ----------------------------------------------------------------------------
def init_sentence_encoder_params(key, input_size, hidden_size, num_layers=2):
    """Deterministic init matching nn.LSTM shapes: U(-1/sqrt(H), 1/sqrt(H)).
    Per layer: (w_ih_T (2, D_in, 4H), w_hh_T (2, H, 4H), bias (2, 4H))."""
    bound = 1.0 / math.sqrt(hidden_size)
    params = []
    for layer in range(num_layers):
        layer_in = input_size if layer == 0 else 2 * hidden_size
        wih, whh, bias = [], [], []
        for _direction in range(2):  # 0: forward, 1: backward
            key, k1, k2, k3, k4 = jax.random.split(key, 5)
            w_ih = jax.random.uniform(k1, (4 * hidden_size, layer_in),
                                      minval=-bound, maxval=bound, dtype=jnp.float32)
            w_hh = jax.random.uniform(k2, (4 * hidden_size, hidden_size),
                                      minval=-bound, maxval=bound, dtype=jnp.float32)
            b_ih = jax.random.uniform(k3, (4 * hidden_size,),
                                      minval=-bound, maxval=bound, dtype=jnp.float32)
            b_hh = jax.random.uniform(k4, (4 * hidden_size,),
                                      minval=-bound, maxval=bound, dtype=jnp.float32)
            wih.append(w_ih.T)        # (D_in, 4H) for x @ W layout
            whh.append(w_hh.T)        # (H, 4H)
            bias.append(b_ih + b_hh)  # (4H,)
        params.append((jnp.stack(wih), jnp.stack(whh), jnp.stack(bias)))
    return params


def sentence_encoder_forward(params, sequences_batch, sequence_lengths):
    """sequences_batch: (B, T, input_size), right-padded; sequence_lengths: (B,) int.
    Returns (B, T, 2*hidden_size), zero at positions t >= length[b]."""
    B, T, D = sequences_batch.shape
    lengths = sequence_lengths.astype(jnp.int32)
    x = sequences_batch.astype(jnp.float32)

    # Pad batch to a multiple of 8 (sublane-dense (B, H) tiles); padding rows
    # have length 0 so their outputs are all-zero and are sliced off below.
    B_pad = ((B + 7) // 8) * 8
    if B_pad != B:
        x = jnp.concatenate(
            [x, jnp.zeros((B_pad - B, T, D), jnp.float32)], axis=0)
        lengths = jnp.concatenate(
            [lengths, jnp.zeros((B_pad - B,), jnp.int32)], axis=0)

    x_tm = jnp.transpose(x, (1, 0, 2))  # (T, B_pad, D), time-major
    for (wih, whh, bias) in params:
        # Hoisted input projection for BOTH directions: one batched matmul.
        gx = jnp.einsum('tbd,zdg->ztbg', x_tm, wih) + bias[:, None, None, :]
        x_tm = bilstm_layer_pallas(gx, lengths, whh)   # (T, B_pad, 2H)

    out = jnp.transpose(x_tm, (1, 0, 2))               # (B_pad, T, 2H)
    return out[:B]


if __name__ == "__main__":
    # small shapes consistent with the module
    B, T = 2, 8
    input_size, hidden_size, num_layers = 32, 32, 2

    key = jax.random.PRNGKey(0)
    kx, kp = jax.random.split(key)
    sequences_batch = jax.random.normal(kx, (B, T, input_size), dtype=jnp.float32)
    sequence_lengths = jnp.array([T, 5], dtype=jnp.int32)

    params = init_sentence_encoder_params(kp, input_size, hidden_size, num_layers)

    forward = jax.jit(sentence_encoder_forward)
    out = forward(params, sequences_batch, sequence_lengths)
    out = jax.block_until_ready(out)

    # sanity: shape, finiteness, and zero padding past each sequence length
    assert out.shape == (B, T, 2 * hidden_size)
    assert bool(jnp.all(jnp.isfinite(out)))
    pad_mask = (jnp.arange(T)[None, :] >= sequence_lengths[:, None])[:, :, None]
    assert float(jnp.max(jnp.abs(jnp.where(pad_mask, out, 0.0)))) == 0.0

    print("KERNEL_OK")
</pallas_src>

<mosaic_0001>
module attributes {stable_mosaic.version = 11 : i64} {
  func.func @kernel(%arg0: i32, %arg1: memref<8xi32, #tpu.memory_space<smem>>, %arg2: memref<2x8x8x128xf32, #tpu.memory_space<vmem>>, %arg3: memref<2x32x128xf32, #tpu.memory_space<vmem>>, %arg4: memref<8x8x64xf32, #tpu.memory_space<vmem>>, %arg5: memref<8x32xf32, #tpu.memory_space<vmem>>, %arg6: memref<8x32xf32, #tpu.memory_space<vmem>>, %arg7: memref<8x32xf32, #tpu.memory_space<vmem>>, %arg8: memref<8x32xf32, #tpu.memory_space<vmem>>) attributes {dimension_semantics = [#tpu.dimension_semantics<arbitrary>], iteration_bounds = array<i64: 1>, scalar_prefetch = 1 : i64, scratch_operands = 4 : i64, tpu.core_type = #tpu.core_type<tc>, window_params = [{pipeline_mode = #tpu.pipeline_mode<synchronous>, transform_indices = @transform_0, window_bounds = array<i64: 2, 8, 8, 128>}, {pipeline_mode = #tpu.pipeline_mode<synchronous>, transform_indices = @transform_1, window_bounds = array<i64: 2, 32, 128>}, {pipeline_mode = #tpu.pipeline_mode<synchronous>, transform_indices = @transform_2, window_bounds = array<i64: 8, 8, 64>}]} {
    %0 = tpu.iota {dimensions = array<i32: 0>} : vector<8x1xi32>
    %c0_i32 = arith.constant 0 : i32
    %1 = vector.broadcast %c0_i32 : i32 to vector<8x1xi32>
    %c0_i32_0 = arith.constant 0 : i32
    %2 = vector.broadcast %c0_i32_0 : i32 to vector<8x1xi32>
    %3 = arith.cmpi eq, %0, %2 : vector<8x1xi32>
    %c0 = arith.constant 0 : index
    %4 = memref.load %arg1[%c0] : memref<8xi32, #tpu.memory_space<smem>>
    %5 = vector.broadcast %4 : i32 to vector<8x1xi32>
    %6 = arith.select %3, %5, %1 : vector<8x1xi1>, vector<8x1xi32>
    %c1_i32 = arith.constant 1 : i32
    %7 = vector.broadcast %c1_i32 : i32 to vector<8x1xi32>
    %8 = arith.cmpi eq, %0, %7 : vector<8x1xi32>
    %c1 = arith.constant 1 : index
    %9 = memref.load %arg1[%c1] : memref<8xi32, #tpu.memory_space<smem>>
    %10 = vector.broadcast %9 : i32 to vector<8x1xi32>
    %11 = arith.select %8, %10, %6 : vector<8x1xi1>, vector<8x1xi32>
    %c2_i32 = arith.constant 2 : i32
    %12 = vector.broadcast %c2_i32 : i32 to vector<8x1xi32>
    %13 = arith.cmpi eq, %0, %12 : vector<8x1xi32>
    %c2 = arith.constant 2 : index
    %14 = memref.load %arg1[%c2] : memref<8xi32, #tpu.memory_space<smem>>
    %15 = vector.broadcast %14 : i32 to vector<8x1xi32>
    %16 = arith.select %13, %15, %11 : vector<8x1xi1>, vector<8x1xi32>
    %c3_i32 = arith.constant 3 : i32
    %17 = vector.broadcast %c3_i32 : i32 to vector<8x1xi32>
    %18 = arith.cmpi eq, %0, %17 : vector<8x1xi32>
    %c3 = arith.constant 3 : index
    %19 = memref.load %arg1[%c3] : memref<8xi32, #tpu.memory_space<smem>>
    %20 = vector.broadcast %19 : i32 to vector<8x1xi32>
    %21 = arith.select %18, %20, %16 : vector<8x1xi1>, vector<8x1xi32>
    %c4_i32 = arith.constant 4 : i32
    %22 = vector.broadcast %c4_i32 : i32 to vector<8x1xi32>
    %23 = arith.cmpi eq, %0, %22 : vector<8x1xi32>
    %c4 = arith.constant 4 : index
    %24 = memref.load %arg1[%c4] : memref<8xi32, #tpu.memory_space<smem>>
    %25 = vector.broadcast %24 : i32 to vector<8x1xi32>
    %26 = arith.select %23, %25, %21 : vector<8x1xi1>, vector<8x1xi32>
    %c5_i32 = arith.constant 5 : i32
    %27 = vector.broadcast %c5_i32 : i32 to vector<8x1xi32>
    %28 = arith.cmpi eq, %0, %27 : vector<8x1xi32>
    %c5 = arith.constant 5 : index
    %29 = memref.load %arg1[%c5] : memref<8xi32, #tpu.memory_space<smem>>
    %30 = vector.broadcast %29 : i32 to vector<8x1xi32>
    %31 = arith.select %28, %30, %26 : vector<8x1xi1>, vector<8x1xi32>
    %c6_i32 = arith.constant 6 : i32
    %32 = vector.broadcast %c6_i32 : i32 to vector<8x1xi32>
    %33 = arith.cmpi eq, %0, %32 : vector<8x1xi32>
    %c6 = arith.constant 6 : index
    %34 = memref.load %arg1[%c6] : memref<8xi32, #tpu.memory_space<smem>>
    %35 = vector.broadcast %34 : i32 to vector<8x1xi32>
    %36 = arith.select %33, %35, %31 : vector<8x1xi1>, vector<8x1xi32>
    %c7_i32 = arith.constant 7 : i32
    %37 = vector.broadcast %c7_i32 : i32 to vector<8x1xi32>
    %38 = arith.cmpi eq, %0, %37 : vector<8x1xi32>
    %c7 = arith.constant 7 : index
    %39 = memref.load %arg1[%c7] : memref<8xi32, #tpu.memory_space<smem>>
    %40 = vector.broadcast %39 : i32 to vector<8x1xi32>
    %41 = arith.select %38, %40, %36 : vector<8x1xi1>, vector<8x1xi32>
    %cst = arith.constant 0.000000e+00 : f32
    %42 = vector.broadcast %cst : f32 to vector<8x32xf32>
    %c0_1 = arith.constant 0 : index
    %c0_2 = arith.constant 0 : index
    %43 = vector.load %arg5[%c0_1, %c0_2] : memref<8x32xf32, #tpu.memory_space<vmem>>, vector<8x32xf32>
    tpu.vector_store %arg5[%c0_1, %c0_2], %42 {strides = array<i32>} : memref<8x32xf32, #tpu.memory_space<vmem>>, vector<8x32xf32>,
    %cst_3 = arith.constant 0.000000e+00 : f32
    %44 = vector.broadcast %cst_3 : f32 to vector<8x32xf32>
    %c0_4 = arith.constant 0 : index
    %c0_5 = arith.constant 0 : index
    %45 = vector.load %arg6[%c0_4, %c0_5] : memref<8x32xf32, #tpu.memory_space<vmem>>, vector<8x32xf32>
    tpu.vector_store %arg6[%c0_4, %c0_5], %44 {strides = array<i32>} : memref<8x32xf32, #tpu.memory_space<vmem>>, vector<8x32xf32>,
    %cst_6 = arith.constant 0.000000e+00 : f32
    %46 = vector.broadcast %cst_6 : f32 to vector<8x32xf32>
    %c0_7 = arith.constant 0 : index
    %c0_8 = arith.constant 0 : index
    %47 = vector.load %arg7[%c0_7, %c0_8] : memref<8x32xf32, #tpu.memory_space<vmem>>, vector<8x32xf32>
    tpu.vector_store %arg7[%c0_7, %c0_8], %46 {strides = array<i32>} : memref<8x32xf32, #tpu.memory_space<vmem>>, vector<8x32xf32>,
    %cst_9 = arith.constant 0.000000e+00 : f32
    %48 = vector.broadcast %cst_9 : f32 to vector<8x32xf32>
    %c0_10 = arith.constant 0 : index
    %c0_11 = arith.constant 0 : index
    %49 = vector.load %arg8[%c0_10, %c0_11] : memref<8x32xf32, #tpu.memory_space<vmem>>, vector<8x32xf32>
    tpu.vector_store %arg8[%c0_10, %c0_11], %48 {strides = array<i32>} : memref<8x32xf32, #tpu.memory_space<vmem>>, vector<8x32xf32>,
    %c0_12 = arith.constant 0 : index
    %c0_13 = arith.constant 0 : index
    %c0_14 = arith.constant 0 : index
    %50 = vector.load %arg3[%c0_12, %c0_13, %c0_14] : memref<2x32x128xf32, #tpu.memory_space<vmem>>, vector<1x32x128xf32>
    %51 = vector.shape_cast %50 : vector<1x32x128xf32> to vector<32x128xf32>
    %c1_15 = arith.constant 1 : index
    %c0_16 = arith.constant 0 : index
    %c0_17 = arith.constant 0 : index
    %52 = vector.load %arg3[%c1_15, %c0_16, %c0_17] : memref<2x32x128xf32, #tpu.memory_space<vmem>>, vector<1x32x128xf32>
    %53 = vector.shape_cast %52 : vector<1x32x128xf32> to vector<32x128xf32>
    %c0_18 = arith.constant 0 : index
    %c0_19 = arith.constant 0 : index
    %c0_20 = arith.constant 0 : index
    %c0_21 = arith.constant 0 : index
    %54 = vector.load %arg2[%c0_18, %c0_19, %c0_20, %c0_21] : memref<2x8x8x128xf32, #tpu.memory_space<vmem>>, vector<1x1x8x128xf32>
    %55 = vector.shape_cast %54 : vector<1x1x8x128xf32> to vector<8x128xf32>
    %c0_22 = arith.constant 0 : index
    %c0_23 = arith.constant 0 : index
    %56 = vector.load %arg5[%c0_22, %c0_23] : memref<8x32xf32, #tpu.memory_space<vmem>>, vector<8x32xf32>
    %c0_24 = arith.constant 0 : index
    %c0_25 = arith.constant 0 : index
    %57 = vector.load %arg6[%c0_24, %c0_25] : memref<8x32xf32, #tpu.memory_space<vmem>>, vector<8x32xf32>
    %cst_26 = arith.constant dense<0.000000e+00> : vector<8x128xf32>
    %58 = tpu.matmul %56, %51, %cst_26 {dimension_numbers = #tpu.dot_dimension_numbers<[1], [0], [0], [1], [0, 0, 1, 1], [], []>} : vector<8x32xf32>, vector<32x128xf32>, vector<8x128xf32> -> vector<8x128xf32>
    %59 = arith.addf %55, %58 : vector<8x128xf32>
    %60 = vector.extract_strided_slice %59 {offsets = [0, 0], sizes = [8, 32], strides = [1, 1]} : vector<8x128xf32> to vector<8x32xf32>
    %cst_27 = arith.constant 5.000000e-01 : f32
    %61 = vector.broadcast %cst_27 : f32 to vector<8x32xf32>
    %62 = arith.mulf %61, %60 : vector<8x32xf32>
    %63 = math.tanh %62 : vector<8x32xf32>
    %cst_28 = arith.constant 1.000000e+00 : f32
    %64 = vector.broadcast %cst_28 : f32 to vector<8x32xf32>
    %65 = arith.addf %63, %64 : vector<8x32xf32>
    %cst_29 = arith.constant 5.000000e-01 : f32
    %66 = vector.broadcast %cst_29 : f32 to vector<8x32xf32>
    %67 = arith.mulf %66, %65 : vector<8x32xf32>
    %68 = vector.extract_strided_slice %59 {offsets = [0, 32], sizes = [8, 32], strides = [1, 1]} : vector<8x128xf32> to vector<8x32xf32>
    %cst_30 = arith.constant 5.000000e-01 : f32
    %69 = vector.broadcast %cst_30 : f32 to vector<8x32xf32>
    %70 = arith.mulf %69, %68 : vector<8x32xf32>
    %71 = math.tanh %70 : vector<8x32xf32>
    %cst_31 = arith.constant 1.000000e+00 : f32
    %72 = vector.broadcast %cst_31 : f32 to vector<8x32xf32>
    %73 = arith.addf %71, %72 : vector<8x32xf32>
    %cst_32 = arith.constant 5.000000e-01 : f32
    %74 = vector.broadcast %cst_32 : f32 to vector<8x32xf32>
    %75 = arith.mulf %74, %73 : vector<8x32xf32>
    %76 = vector.extract_strided_slice %59 {offsets = [0, 64], sizes = [8, 32], strides = [1, 1]} : vector<8x128xf32> to vector<8x32xf32>
    %77 = math.tanh %76 : vector<8x32xf32>
    %78 = vector.extract_strided_slice %59 {offsets = [0, 96], sizes = [8, 32], strides = [1, 1]} : vector<8x128xf32> to vector<8x32xf32>
    %cst_33 = arith.constant 5.000000e-01 : f32
    %79 = vector.broadcast %cst_33 : f32 to vector<8x32xf32>
    %80 = arith.mulf %79, %78 : vector<8x32xf32>
    %81 = math.tanh %80 : vector<8x32xf32>
    %cst_34 = arith.constant 1.000000e+00 : f32
    %82 = vector.broadcast %cst_34 : f32 to vector<8x32xf32>
    %83 = arith.addf %81, %82 : vector<8x32xf32>
    %cst_35 = arith.constant 5.000000e-01 : f32
    %84 = vector.broadcast %cst_35 : f32 to vector<8x32xf32>
    %85 = arith.mulf %84, %83 : vector<8x32xf32>
    %86 = arith.mulf %75, %57 : vector<8x32xf32>
    %87 = arith.mulf %67, %77 : vector<8x32xf32>
    %88 = arith.addf %86, %87 : vector<8x32xf32>
    %89 = math.tanh %88 : vector<8x32xf32>
    %90 = arith.mulf %85, %89 : vector<8x32xf32>
    %c0_i32_36 = arith.constant 0 : i32
    %91 = vector.broadcast %c0_i32_36 : i32 to vector<8x1xi32>
    %92 = arith.cmpi sgt, %41, %91 : vector<8x1xi32>
    %c0_37 = arith.constant 0 : index
    %c0_38 = arith.constant 0 : index
    %93 = vector.load %arg5[%c0_37, %c0_38] : memref<8x32xf32, #tpu.memory_space<vmem>>, vector<8x32xf32>
    %94 = vector.shape_cast %92 : vector<8x1xi1> to vector<8x1xi1>
    %95 = vector.broadcast %94 : vector<8x1xi1> to vector<8x32xi1>
    %96 = arith.select %95, %90, %93 : vector<8x32xi1>, vector<8x32xf32>
    %c0_39 = arith.constant 0 : index
    %c0_40 = arith.constant 0 : index
    %97 = vector.load %arg5[%c0_39, %c0_40] : memref<8x32xf32, #tpu.memory_space<vmem>>, vector<8x32xf32>
    tpu.vector_store %arg5[%c0_39, %c0_40], %96 {strides = array<i32>} : memref<8x32xf32, #tpu.memory_space<vmem>>, vector<8x32xf32>,
    %c0_41 = arith.constant 0 : index
    %c0_42 = arith.constant 0 : index
    %98 = vector.load %arg6[%c0_41, %c0_42] : memref<8x32xf32, #tpu.memory_space<vmem>>, vector<8x32xf32>
    %99 = vector.shape_cast %92 : vector<8x1xi1> to vector<8x1xi1>
    %100 = vector.broadcast %99 : vector<8x1xi1> to vector<8x32xi1>
    %101 = arith.select %100, %88, %98 : vector<8x32xi1>, vector<8x32xf32>
    %c0_43 = arith.constant 0 : index
    %c0_44 = arith.constant 0 : index
    %102 = vector.load %arg6[%c0_43, %c0_44] : memref<8x32xf32, #tpu.memory_space<vmem>>, vector<8x32xf32>
    tpu.vector_store %arg6[%c0_43, %c0_44], %101 {strides = array<i32>} : memref<8x32xf32, #tpu.memory_space<vmem>>, vector<8x32xf32>,
    %cst_45 = arith.constant 0.000000e+00 : f32
    %103 = vector.shape_cast %92 : vector<8x1xi1> to vector<8x1xi1>
    %104 = vector.broadcast %103 : vector<8x1xi1> to vector<8x32xi1>
    %105 = vector.broadcast %cst_45 : f32 to vector<8x32xf32>
    %106 = arith.select %104, %90, %105 : vector<8x32xi1>, vector<8x32xf32>
    %c0_46 = arith.constant 0 : index
    %c0_47 = arith.constant 0 : index
    %c0_48 = arith.constant 0 : index
    %107 = vector.load %arg4[%c0_46, %c0_47, %c0_48] : memref<8x8x64xf32, #tpu.memory_space<vmem>>, vector<1x8x32xf32>
    %108 = vector.shape_cast %107 : vector<1x8x32xf32> to vector<8x32xf32>
    %109 = vector.shape_cast %106 : vector<8x32xf32> to vector<1x8x32xf32>
    tpu.vector_store %arg4[%c0_46, %c0_47, %c0_48], %109 {strides = array<i32>} : memref<8x8x64xf32, #tpu.memory_space<vmem>>, vector<1x8x32xf32>,
    %c1_49 = arith.constant 1 : index
    %c7_50 = arith.constant 7 : index
    %c0_51 = arith.constant 0 : index
    %c0_52 = arith.constant 0 : index
    %110 = vector.load %arg2[%c1_49, %c7_50, %c0_51, %c0_52] : memref<2x8x8x128xf32, #tpu.memory_space<vmem>>, vector<1x1x8x128xf32>
    %111 = vector.shape_cast %110 : vector<1x1x8x128xf32> to vector<8x128xf32>
    %c0_53 = arith.constant 0 : index
    %c0_54 = arith.constant 0 : index
    %112 = vector.load %arg7[%c0_53, %c0_54] : memref<8x32xf32, #tpu.memory_space<vmem>>, vector<8x32xf32>
    %c0_55 = arith.constant 0 : index
    %c0_56 = arith.constant 0 : index
    %113 = vector.load %arg8[%c0_55, %c0_56] : memref<8x32xf32, #tpu.memory_space<vmem>>, vector<8x32xf32>
    %cst_57 = arith.constant dense<0.000000e+00> : vector<8x128xf32>
    %114 = tpu.matmul %112, %53, %cst_57 {dimension_numbers = #tpu.dot_dimension_numbers<[1], [0], [0], [1], [0, 0, 1, 1], [], []>} : vector<8x32xf32>, vector<32x128xf32>, vector<8x128xf32> -> vector<8x128xf32>
    %115 = arith.addf %111, %114 : vector<8x128xf32>
    %116 = vector.extract_strided_slice %115 {offsets = [0, 0], sizes = [8, 32], strides = [1, 1]} : vector<8x128xf32> to vector<8x32xf32>
    %cst_58 = arith.constant 5.000000e-01 : f32
    %117 = vector.broadcast %cst_58 : f32 to vector<8x32xf32>
    %118 = arith.mulf %117, %116 : vector<8x32xf32>
    %119 = math.tanh %118 : vector<8x32xf32>
    %cst_59 = arith.constant 1.000000e+00 : f32
    %120 = vector.broadcast %cst_59 : f32 to vector<8x32xf32>
    %121 = arith.addf %119, %120 : vector<8x32xf32>
    %cst_60 = arith.constant 5.000000e-01 : f32
    %122 = vector.broadcast %cst_60 : f32 to vector<8x32xf32>
    %123 = arith.mulf %122, %121 : vector<8x32xf32>
    %124 = vector.extract_strided_slice %115 {offsets = [0, 32], sizes = [8, 32], strides = [1, 1]} : vector<8x128xf32> to vector<8x32xf32>
    %cst_61 = arith.constant 5.000000e-01 : f32
    %125 = vector.broadcast %cst_61 : f32 to vector<8x32xf32>
    %126 = arith.mulf %125, %124 : vector<8x32xf32>
    %127 = math.tanh %126 : vector<8x32xf32>
    %cst_62 = arith.constant 1.000000e+00 : f32
    %128 = vector.broadcast %cst_62 : f32 to vector<8x32xf32>
    %129 = arith.addf %127, %128 : vector<8x32xf32>
    %cst_63 = arith.constant 5.000000e-01 : f32
    %130 = vector.broadcast %cst_63 : f32 to vector<8x32xf32>
    %131 = arith.mulf %130, %129 : vector<8x32xf32>
    %132 = vector.extract_strided_slice %115 {offsets = [0, 64], sizes = [8, 32], strides = [1, 1]} : vector<8x128xf32> to vector<8x32xf32>
    %133 = math.tanh %132 : vector<8x32xf32>
    %134 = vector.extract_strided_slice %115 {offsets = [0, 96], sizes = [8, 32], strides = [1, 1]} : vector<8x128xf32> to vector<8x32xf32>
    %cst_64 = arith.constant 5.000000e-01 : f32
    %135 = vector.broadcast %cst_64 : f32 to vector<8x32xf32>
    %136 = arith.mulf %135, %134 : vector<8x32xf32>
    %137 = math.tanh %136 : vector<8x32xf32>
    %cst_65 = arith.constant 1.000000e+00 : f32
    %138 = vector.broadcast %cst_65 : f32 to vector<8x32xf32>
    %139 = arith.addf %137, %138 : vector<8x32xf32>
    %cst_66 = arith.constant 5.000000e-01 : f32
    %140 = vector.broadcast %cst_66 : f32 to vector<8x32xf32>
    %141 = arith.mulf %140, %139 : vector<8x32xf32>
    %142 = arith.mulf %131, %113 : vector<8x32xf32>
    %143 = arith.mulf %123, %133 : vector<8x32xf32>
    %144 = arith.addf %142, %143 : vector<8x32xf32>
    %145 = math.tanh %144 : vector<8x32xf32>
    %146 = arith.mulf %141, %145 : vector<8x32xf32>
    %c7_i32_67 = arith.constant 7 : i32
    %147 = vector.broadcast %c7_i32_67 : i32 to vector<8x1xi32>
    %148 = arith.cmpi sgt, %41, %147 : vector<8x1xi32>
    %c0_68 = arith.constant 0 : index
    %c0_69 = arith.constant 0 : index
    %149 = vector.load %arg7[%c0_68, %c0_69] : memref<8x32xf32, #tpu.memory_space<vmem>>, vector<8x32xf32>
    %150 = vector.shape_cast %148 : vector<8x1xi1> to vector<8x1xi1>
    %151 = vector.broadcast %150 : vector<8x1xi1> to vector<8x32xi1>
    %152 = arith.select %151, %146, %149 : vector<8x32xi1>, vector<8x32xf32>
    %c0_70 = arith.constant 0 : index
    %c0_71 = arith.constant 0 : index
    %153 = vector.load %arg7[%c0_70, %c0_71] : memref<8x32xf32, #tpu.memory_space<vmem>>, vector<8x32xf32>
    tpu.vector_store %arg7[%c0_70, %c0_71], %152 {strides = array<i32>} : memref<8x32xf32, #tpu.memory_space<vmem>>, vector<8x32xf32>,
    %c0_72 = arith.constant 0 : index
    %c0_73 = arith.constant 0 : index
    %154 = vector.load %arg8[%c0_72, %c0_73] : memref<8x32xf32, #tpu.memory_space<vmem>>, vector<8x32xf32>
    %155 = vector.shape_cast %148 : vector<8x1xi1> to vector<8x1xi1>
    %156 = vector.broadcast %155 : vector<8x1xi1> to vector<8x32xi1>
    %157 = arith.select %156, %144, %154 : vector<8x32xi1>, vector<8x32xf32>
    %c0_74 = arith.constant 0 : index
    %c0_75 = arith.constant 0 : index
    %158 = vector.load %arg8[%c0_74, %c0_75] : memref<8x32xf32, #tpu.memory_space<vmem>>, vector<8x32xf32>
    tpu.vector_store %arg8[%c0_74, %c0_75], %157 {strides = array<i32>} : memref<8x32xf32, #tpu.memory_space<vmem>>, vector<8x32xf32>,
    %cst_76 = arith.constant 0.000000e+00 : f32
    %159 = vector.shape_cast %148 : vector<8x1xi1> to vector<8x1xi1>
    %160 = vector.broadcast %159 : vector<8x1xi1> to vector<8x32xi1>
    %161 = vector.broadcast %cst_76 : f32 to vector<8x32xf32>
    %162 = arith.select %160, %146, %161 : vector<8x32xi1>, vector<8x32xf32>
    %c7_77 = arith.constant 7 : index
    %c0_78 = arith.constant 0 : index
    %c32 = arith.constant 32 : index
    %163 = vector.load %arg4[%c7_77, %c0_78, %c32] : memref<8x8x64xf32, #tpu.memory_space<vmem>>, vector<1x8x32xf32>
    %164 = vector.shape_cast %163 : vector<1x8x32xf32> to vector<8x32xf32>
    %165 = vector.shape_cast %162 : vector<8x32xf32> to vector<1x8x32xf32>
    tpu.vector_store %arg4[%c7_77, %c0_78, %c32], %165 {strides = array<i32>} : memref<8x8x64xf32, #tpu.memory_space<vmem>>, vector<1x8x32xf32>,
    %c0_79 = arith.constant 0 : index
    %c1_80 = arith.constant 1 : index
    %c0_81 = arith.constant 0 : index
    %c0_82 = arith.constant 0 : index
    %166 = vector.load %arg2[%c0_79, %c1_80, %c0_81, %c0_82] : memref<2x8x8x128xf32, #tpu.memory_space<vmem>>, vector<1x1x8x128xf32>
    %167 = vector.shape_cast %166 : vector<1x1x8x128xf32> to vector<8x128xf32>
    %c0_83 = arith.constant 0 : index
    %c0_84 = arith.constant 0 : index
    %168 = vector.load %arg5[%c0_83, %c0_84] : memref<8x32xf32, #tpu.memory_space<vmem>>, vector<8x32xf32>
    %c0_85 = arith.constant 0 : index
    %c0_86 = arith.constant 0 : index
    %169 = vector.load %arg6[%c0_85, %c0_86] : memref<8x32xf32, #tpu.memory_space<vmem>>, vector<8x32xf32>
    %cst_87 = arith.constant dense<0.000000e+00> : vector<8x128xf32>
    %170 = tpu.matmul %168, %51, %cst_87 {dimension_numbers = #tpu.dot_dimension_numbers<[1], [0], [0], [1], [0, 0, 1, 1], [], []>} : vector<8x32xf32>, vector<32x128xf32>, vector<8x128xf32> -> vector<8x128xf32>
    %171 = arith.addf %167, %170 : vector<8x128xf32>
    %172 = vector.extract_strided_slice %171 {offsets = [0, 0], sizes = [8, 32], strides = [1, 1]} : vector<8x128xf32> to vector<8x32xf32>
    %cst_88 = arith.constant 5.000000e-01 : f32
    %173 = vector.broadcast %cst_88 : f32 to vector<8x32xf32>
    %174 = arith.mulf %173, %172 : vector<8x32xf32>
    %175 = math.tanh %174 : vector<8x32xf32>
    %cst_89 = arith.constant 1.000000e+00 : f32
    %176 = vector.broadcast %cst_89 : f32 to vector<8x32xf32>
    %177 = arith.addf %175, %176 : vector<8x32xf32>
    %cst_90 = arith.constant 5.000000e-01 : f32
    %178 = vector.broadcast %cst_90 : f32 to vector<8x32xf32>
    %179 = arith.mulf %178, %177 : vector<8x32xf32>
    %180 = vector.extract_strided_slice %171 {offsets = [0, 32], sizes = [8, 32], strides = [1, 1]} : vector<8x128xf32> to vector<8x32xf32>
    %cst_91 = arith.constant 5.000000e-01 : f32
    %181 = vector.broadcast %cst_91 : f32 to vector<8x32xf32>
    %182 = arith.mulf %181, %180 : vector<8x32xf32>
    %183 = math.tanh %182 : vector<8x32xf32>
    %cst_92 = arith.constant 1.000000e+00 : f32
    %184 = vector.broadcast %cst_92 : f32 to vector<8x32xf32>
    %185 = arith.addf %183, %184 : vector<8x32xf32>
    %cst_93 = arith.constant 5.000000e-01 : f32
    %186 = vector.broadcast %cst_93 : f32 to vector<8x32xf32>
    %187 = arith.mulf %186, %185 : vector<8x32xf32>
    %188 = vector.extract_strided_slice %171 {offsets = [0, 64], sizes = [8, 32], strides = [1, 1]} : vector<8x128xf32> to vector<8x32xf32>
    %189 = math.tanh %188 : vector<8x32xf32>
    %190 = vector.extract_strided_slice %171 {offsets = [0, 96], sizes = [8, 32], strides = [1, 1]} : vector<8x128xf32> to vector<8x32xf32>
    %cst_94 = arith.constant 5.000000e-01 : f32
    %191 = vector.broadcast %cst_94 : f32 to vector<8x32xf32>
    %192 = arith.mulf %191, %190 : vector<8x32xf32>
    %193 = math.tanh %192 : vector<8x32xf32>
    %cst_95 = arith.constant 1.000000e+00 : f32
    %194 = vector.broadcast %cst_95 : f32 to vector<8x32xf32>
    %195 = arith.addf %193, %194 : vector<8x32xf32>
    %cst_96 = arith.constant 5.000000e-01 : f32
    %196 = vector.broadcast %cst_96 : f32 to vector<8x32xf32>
    %197 = arith.mulf %196, %195 : vector<8x32xf32>
    %198 = arith.mulf %187, %169 : vector<8x32xf32>
    %199 = arith.mulf %179, %189 : vector<8x32xf32>
    %200 = arith.addf %198, %199 : vector<8x32xf32>
    %201 = math.tanh %200 : vector<8x32xf32>
    %202 = arith.mulf %197, %201 : vector<8x32xf32>
    %c1_i32_97 = arith.constant 1 : i32
    %203 = vector.broadcast %c1_i32_97 : i32 to vector<8x1xi32>
    %204 = arith.cmpi sgt, %41, %203 : vector<8x1xi32>
    %c0_98 = arith.constant 0 : index
    %c0_99 = arith.constant 0 : index
    %205 = vector.load %arg5[%c0_98, %c0_99] : memref<8x32xf32, #tpu.memory_space<vmem>>, vector<8x32xf32>
    %206 = vector.shape_cast %204 : vector<8x1xi1> to vector<8x1xi1>
    %207 = vector.broadcast %206 : vector<8x1xi1> to vector<8x32xi1>
    %208 = arith.select %207, %202, %205 : vector<8x32xi1>, vector<8x32xf32>
    %c0_100 = arith.constant 0 : index
    %c0_101 = arith.constant 0 : index
    %209 = vector.load %arg5[%c0_100, %c0_101] : memref<8x32xf32, #tpu.memory_space<vmem>>, vector<8x32xf32>
    tpu.vector_store %arg5[%c0_100, %c0_101], %208 {strides = array<i32>} : memref<8x32xf32, #tpu.memory_space<vmem>>, vector<8x32xf32>,
    %c0_102 = arith.constant 0 : index
    %c0_103 = arith.constant 0 : index
    %210 = vector.load %arg6[%c0_102, %c0_103] : memref<8x32xf32, #tpu.memory_space<vmem>>, vector<8x32xf32>
    %211 = vector.shape_cast %204 : vector<8x1xi1> to vector<8x1xi1>
    %212 = vector.broadcast %211 : vector<8x1xi1> to vector<8x32xi1>
    %213 = arith.select %212, %200, %210 : vector<8x32xi1>, vector<8x32xf32>
    %c0_104 = arith.constant 0 : index
    %c0_105 = arith.constant 0 : index
    %214 = vector.load %arg6[%c0_104, %c0_105] : memref<8x32xf32, #tpu.memory_space<vmem>>, vector<8x32xf32>
    tpu.vector_store %arg6[%c0_104, %c0_105], %213 {strides = array<i32>} : memref<8x32xf32, #tpu.memory_space<vmem>>, vector<8x32xf32>,
    %cst_106 = arith.constant 0.000000e+00 : f32
    %215 = vector.shape_cast %204 : vector<8x1xi1> to vector<8x1xi1>
    %216 = vector.broadcast %215 : vector<8x1xi1> to vector<8x32xi1>
    %217 = vector.broadcast %cst_106 : f32 to vector<8x32xf32>
    %218 = arith.select %216, %202, %217 : vector<8x32xi1>, vector<8x32xf32>
    %c1_107 = arith.constant 1 : index
    %c0_108 = arith.constant 0 : index
    %c0_109 = arith.constant 0 : index
    %219 = vector.load %arg4[%c1_107, %c0_108, %c0_109] : memref<8x8x64xf32, #tpu.memory_space<vmem>>, vector<1x8x32xf32>
    %220 = vector.shape_cast %219 : vector<1x8x32xf32> to vector<8x32xf32>
    %221 = vector.shape_cast %218 : vector<8x32xf32> to vector<1x8x32xf32>
    tpu.vector_store %arg4[%c1_107, %c0_108, %c0_109], %221 {strides = array<i32>} : memref<8x8x64xf32, #tpu.memory_space<vmem>>, vector<1x8x32xf32>,
    %c1_110 = arith.constant 1 : index
    %c6_111 = arith.constant 6 : index
    %c0_112 = arith.constant 0 : index
    %c0_113 = arith.constant 0 : index
    %222 = vector.load %arg2[%c1_110, %c6_111, %c0_112, %c0_113] : memref<2x8x8x128xf32, #tpu.memory_space<vmem>>, vector<1x1x8x128xf32>
    %223 = vector.shape_cast %222 : vector<1x1x8x128xf32> to vector<8x128xf32>
    %c0_114 = arith.constant 0 : index
    %c0_115 = arith.constant 0 : index
    %224 = vector.load %arg7[%c0_114, %c0_115] : memref<8x32xf32, #tpu.memory_space<vmem>>, vector<8x32xf32>
    %c0_116 = arith.constant 0 : index
    %c0_117 = arith.constant 0 : index
    %225 = vector.load %arg8[%c0_116, %c0_117] : memref<8x32xf32, #tpu.memory_space<vmem>>, vector<8x32xf32>
    %cst_118 = arith.constant dense<0.000000e+00> : vector<8x128xf32>
    %226 = tpu.matmul %224, %53, %cst_118 {dimension_numbers = #tpu.dot_dimension_numbers<[1], [0], [0], [1], [0, 0, 1, 1], [], []>} : vector<8x32xf32>, vector<32x128xf32>, vector<8x128xf32> -> vector<8x128xf32>
    %227 = arith.addf %223, %226 : vector<8x128xf32>
    %228 = vector.extract_strided_slice %227 {offsets = [0, 0], sizes = [8, 32], strides = [1, 1]} : vector<8x128xf32> to vector<8x32xf32>
    %cst_119 = arith.constant 5.000000e-01 : f32
    %229 = vector.broadcast %cst_119 : f32 to vector<8x32xf32>
    %230 = arith.mulf %229, %228 : vector<8x32xf32>
    %231 = math.tanh %230 : vector<8x32xf32>
    %cst_120 = arith.constant 1.000000e+00 : f32
    %232 = vector.broadcast %cst_120 : f32 to vector<8x32xf32>
    %233 = arith.addf %231, %232 : vector<8x32xf32>
    %cst_121 = arith.constant 5.000000e-01 : f32
    %234 = vector.broadcast %cst_121 : f32 to vector<8x32xf32>
    %235 = arith.mulf %234, %233 : vector<8x32xf32>
    %236 = vector.extract_strided_slice %227 {offsets = [0, 32], sizes = [8, 32], strides = [1, 1]} : vector<8x128xf32> to vector<8x32xf32>
    %cst_122 = arith.constant 5.000000e-01 : f32
    %237 = vector.broadcast %cst_122 : f32 to vector<8x32xf32>
    %238 = arith.mulf %237, %236 : vector<8x32xf32>
    %239 = math.tanh %238 : vector<8x32xf32>
    %cst_123 = arith.constant 1.000000e+00 : f32
    %240 = vector.broadcast %cst_123 : f32 to vector<8x32xf32>
    %241 = arith.addf %239, %240 : vector<8x32xf32>
    %cst_124 = arith.constant 5.000000e-01 : f32
    %242 = vector.broadcast %cst_124 : f32 to vector<8x32xf32>
    %243 = arith.mulf %242, %241 : vector<8x32xf32>
    %244 = vector.extract_strided_slice %227 {offsets = [0, 64], sizes = [8, 32], strides = [1, 1]} : vector<8x128xf32> to vector<8x32xf32>
    %245 = math.tanh %244 : vector<8x32xf32>
    %246 = vector.extract_strided_slice %227 {offsets = [0, 96], sizes = [8, 32], strides = [1, 1]} : vector<8x128xf32> to vector<8x32xf32>
    %cst_125 = arith.constant 5.000000e-01 : f32
    %247 = vector.broadcast %cst_125 : f32 to vector<8x32xf32>
    %248 = arith.mulf %247, %246 : vector<8x32xf32>
    %249 = math.tanh %248 : vector<8x32xf32>
    %cst_126 = arith.constant 1.000000e+00 : f32
    %250 = vector.broadcast %cst_126 : f32 to vector<8x32xf32>
    %251 = arith.addf %249, %250 : vector<8x32xf32>
    %cst_127 = arith.constant 5.000000e-01 : f32
    %252 = vector.broadcast %cst_127 : f32 to vector<8x32xf32>
    %253 = arith.mulf %252, %251 : vector<8x32xf32>
    %254 = arith.mulf %243, %225 : vector<8x32xf32>
    %255 = arith.mulf %235, %245 : vector<8x32xf32>
    %256 = arith.addf %254, %255 : vector<8x32xf32>
    %257 = math.tanh %256 : vector<8x32xf32>
    %258 = arith.mulf %253, %257 : vector<8x32xf32>
    %c6_i32_128 = arith.constant 6 : i32
    %259 = vector.broadcast %c6_i32_128 : i32 to vector<8x1xi32>
    %260 = arith.cmpi sgt, %41, %259 : vector<8x1xi32>
    %c0_129 = arith.constant 0 : index
    %c0_130 = arith.constant 0 : index
    %261 = vector.load %arg7[%c0_129, %c0_130] : memref<8x32xf32, #tpu.memory_space<vmem>>, vector<8x32xf32>
    %262 = vector.shape_cast %260 : vector<8x1xi1> to vector<8x1xi1>
    %263 = vector.broadcast %262 : vector<8x1xi1> to vector<8x32xi1>
    %264 = arith.select %263, %258, %261 : vector<8x32xi1>, vector<8x32xf32>
    %c0_131 = arith.constant 0 : index
    %c0_132 = arith.constant 0 : index
    %265 = vector.load %arg7[%c0_131, %c0_132] : memref<8x32xf32, #tpu.memory_space<vmem>>, vector<8x32xf32>
    tpu.vector_store %arg7[%c0_131, %c0_132], %264 {strides = array<i32>} : memref<8x32xf32, #tpu.memory_space<vmem>>, vector<8x32xf32>,
    %c0_133 = arith.constant 0 : index
    %c0_134 = arith.constant 0 : index
    %266 = vector.load %arg8[%c0_133, %c0_134] : memref<8x32xf32, #tpu.memory_space<vmem>>, vector<8x32xf32>
    %267 = vector.shape_cast %260 : vector<8x1xi1> to vector<8x1xi1>
    %268 = vector.broadcast %267 : vector<8x1xi1> to vector<8x32xi1>
    %269 = arith.select %268, %256, %266 : vector<8x32xi1>, vector<8x32xf32>
    %c0_135 = arith.constant 0 : index
    %c0_136 = arith.constant 0 : index
    %270 = vector.load %arg8[%c0_135, %c0_136] : memref<8x32xf32, #tpu.memory_space<vmem>>, vector<8x32xf32>
    tpu.vector_store %arg8[%c0_135, %c0_136], %269 {strides = array<i32>} : memref<8x32xf32, #tpu.memory_space<vmem>>, vector<8x32xf32>,
    %cst_137 = arith.constant 0.000000e+00 : f32
    %271 = vector.shape_cast %260 : vector<8x1xi1> to vector<8x1xi1>
    %272 = vector.broadcast %271 : vector<8x1xi1> to vector<8x32xi1>
    %273 = vector.broadcast %cst_137 : f32 to vector<8x32xf32>
    %274 = arith.select %272, %258, %273 : vector<8x32xi1>, vector<8x32xf32>
    %c6_138 = arith.constant 6 : index
    %c0_139 = arith.constant 0 : index
    %c32_140 = arith.constant 32 : index
    %275 = vector.load %arg4[%c6_138, %c0_139, %c32_140] : memref<8x8x64xf32, #tpu.memory_space<vmem>>, vector<1x8x32xf32>
    %276 = vector.shape_cast %275 : vector<1x8x32xf32> to vector<8x32xf32>
    %277 = vector.shape_cast %274 : vector<8x32xf32> to vector<1x8x32xf32>
    tpu.vector_store %arg4[%c6_138, %c0_139, %c32_140], %277 {strides = array<i32>} : memref<8x8x64xf32, #tpu.memory_space<vmem>>, vector<1x8x32xf32>,
    %c0_141 = arith.constant 0 : index
    %c2_142 = arith.constant 2 : index
    %c0_143 = arith.constant 0 : index
    %c0_144 = arith.constant 0 : index
    %278 = vector.load %arg2[%c0_141, %c2_142, %c0_143, %c0_144] : memref<2x8x8x128xf32, #tpu.memory_space<vmem>>, vector<1x1x8x128xf32>
    %279 = vector.shape_cast %278 : vector<1x1x8x128xf32> to vector<8x128xf32>
    %c0_145 = arith.constant 0 : index
    %c0_146 = arith.constant 0 : index
    %280 = vector.load %arg5[%c0_145, %c0_146] : memref<8x32xf32, #tpu.memory_space<vmem>>, vector<8x32xf32>
    %c0_147 = arith.constant 0 : index
    %c0_148 = arith.constant 0 : index
    %281 = vector.load %arg6[%c0_147, %c0_148] : memref<8x32xf32, #tpu.memory_space<vmem>>, vector<8x32xf32>
    %cst_149 = arith.constant dense<0.000000e+00> : vector<8x128xf32>
    %282 = tpu.matmul %280, %51, %cst_149 {dimension_numbers = #tpu.dot_dimension_numbers<[1], [0], [0], [1], [0, 0, 1, 1], [], []>} : vector<8x32xf32>, vector<32x128xf32>, vector<8x128xf32> -> vector<8x128xf32>
    %283 = arith.addf %279, %282 : vector<8x128xf32>
    %284 = vector.extract_strided_slice %283 {offsets = [0, 0], sizes = [8, 32], strides = [1, 1]} : vector<8x128xf32> to vector<8x32xf32>
    %cst_150 = arith.constant 5.000000e-01 : f32
    %285 = vector.broadcast %cst_150 : f32 to vector<8x32xf32>
    %286 = arith.mulf %285, %284 : vector<8x32xf32>
    %287 = math.tanh %286 : vector<8x32xf32>
    %cst_151 = arith.constant 1.000000e+00 : f32
    %288 = vector.broadcast %cst_151 : f32 to vector<8x32xf32>
    %289 = arith.addf %287, %288 : vector<8x32xf32>
    %cst_152 = arith.constant 5.000000e-01 : f32
    %290 = vector.broadcast %cst_152 : f32 to vector<8x32xf32>
    %291 = arith.mulf %290, %289 : vector<8x32xf32>
    %292 = vector.extract_strided_slice %283 {offsets = [0, 32], sizes = [8, 32], strides = [1, 1]} : vector<8x128xf32> to vector<8x32xf32>
    %cst_153 = arith.constant 5.000000e-01 : f32
    %293 = vector.broadcast %cst_153 : f32 to vector<8x32xf32>
    %294 = arith.mulf %293, %292 : vector<8x32xf32>
    %295 = math.tanh %294 : vector<8x32xf32>
    %cst_154 = arith.constant 1.000000e+00 : f32
    %296 = vector.broadcast %cst_154 : f32 to vector<8x32xf32>
    %297 = arith.addf %295, %296 : vector<8x32xf32>
    %cst_155 = arith.constant 5.000000e-01 : f32
    %298 = vector.broadcast %cst_155 : f32 to vector<8x32xf32>
    %299 = arith.mulf %298, %297 : vector<8x32xf32>
    %300 = vector.extract_strided_slice %283 {offsets = [0, 64], sizes = [8, 32], strides = [1, 1]} : vector<8x128xf32> to vector<8x32xf32>
    %301 = math.tanh %300 : vector<8x32xf32>
    %302 = vector.extract_strided_slice %283 {offsets = [0, 96], sizes = [8, 32], strides = [1, 1]} : vector<8x128xf32> to vector<8x32xf32>
    %cst_156 = arith.constant 5.000000e-01 : f32
    %303 = vector.broadcast %cst_156 : f32 to vector<8x32xf32>
    %304 = arith.mulf %303, %302 : vector<8x32xf32>
    %305 = math.tanh %304 : vector<8x32xf32>
    %cst_157 = arith.constant 1.000000e+00 : f32
    %306 = vector.broadcast %cst_157 : f32 to vector<8x32xf32>
    %307 = arith.addf %305, %306 : vector<8x32xf32>
    %cst_158 = arith.constant 5.000000e-01 : f32
    %308 = vector.broadcast %cst_158 : f32 to vector<8x32xf32>
    %309 = arith.mulf %308, %307 : vector<8x32xf32>
    %310 = arith.mulf %299, %281 : vector<8x32xf32>
    %311 = arith.mulf %291, %301 : vector<8x32xf32>
    %312 = arith.addf %310, %311 : vector<8x32xf32>
    %313 = math.tanh %312 : vector<8x32xf32>
    %314 = arith.mulf %309, %313 : vector<8x32xf32>
    %c2_i32_159 = arith.constant 2 : i32
    %315 = vector.broadcast %c2_i32_159 : i32 to vector<8x1xi32>
    %316 = arith.cmpi sgt, %41, %315 : vector<8x1xi32>
    %c0_160 = arith.constant 0 : index
    %c0_161 = arith.constant 0 : index
    %317 = vector.load %arg5[%c0_160, %c0_161] : memref<8x32xf32, #tpu.memory_space<vmem>>, vector<8x32xf32>
    %318 = vector.shape_cast %316 : vector<8x1xi1> to vector<8x1xi1>
    %319 = vector.broadcast %318 : vector<8x1xi1> to vector<8x32xi1>
    %320 = arith.select %319, %314, %317 : vector<8x32xi1>, vector<8x32xf32>
    %c0_162 = arith.constant 0 : index
    %c0_163 = arith.constant 0 : index
    %321 = vector.load %arg5[%c0_162, %c0_163] : memref<8x32xf32, #tpu.memory_space<vmem>>, vector<8x32xf32>
    tpu.vector_store %arg5[%c0_162, %c0_163], %320 {strides = array<i32>} : memref<8x32xf32, #tpu.memory_space<vmem>>, vector<8x32xf32>,
    %c0_164 = arith.constant 0 : index
    %c0_165 = arith.constant 0 : index
    %322 = vector.load %arg6[%c0_164, %c0_165] : memref<8x32xf32, #tpu.memory_space<vmem>>, vector<8x32xf32>
    %323 = vector.shape_cast %316 : vector<8x1xi1> to vector<8x1xi1>
    %324 = vector.broadcast %323 : vector<8x1xi1> to vector<8x32xi1>
    %325 = arith.select %324, %312, %322 : vector<8x32xi1>, vector<8x32xf32>
    %c0_166 = arith.constant 0 : index
    %c0_167 = arith.constant 0 : index
    %326 = vector.load %arg6[%c0_166, %c0_167] : memref<8x32xf32, #tpu.memory_space<vmem>>, vector<8x32xf32>
    tpu.vector_store %arg6[%c0_166, %c0_167], %325 {strides = array<i32>} : memref<8x32xf32, #tpu.memory_space<vmem>>, vector<8x32xf32>,
    %cst_168 = arith.constant 0.000000e+00 : f32
    %327 = vector.shape_cast %316 : vector<8x1xi1> to vector<8x1xi1>
    %328 = vector.broadcast %327 : vector<8x1xi1> to vector<8x32xi1>
    %329 = vector.broadcast %cst_168 : f32 to vector<8x32xf32>
    %330 = arith.select %328, %314, %329 : vector<8x32xi1>, vector<8x32xf32>
    %c2_169 = arith.constant 2 : index
    %c0_170 = arith.constant 0 : index
    %c0_171 = arith.constant 0 : index
    %331 = vector.load %arg4[%c2_169, %c0_170, %c0_171] : memref<8x8x64xf32, #tpu.memory_space<vmem>>, vector<1x8x32xf32>
    %332 = vector.shape_cast %331 : vector<1x8x32xf32> to vector<8x32xf32>
    %333 = vector.shape_cast %330 : vector<8x32xf32> to vector<1x8x32xf32>
    tpu.vector_store %arg4[%c2_169, %c0_170, %c0_171], %333 {strides = array<i32>} : memref<8x8x64xf32, #tpu.memory_space<vmem>>, vector<1x8x32xf32>,
    %c1_172 = arith.constant 1 : index
    %c5_173 = arith.constant 5 : index
    %c0_174 = arith.constant 0 : index
    %c0_175 = arith.constant 0 : index
    %334 = vector.load %arg2[%c1_172, %c5_173, %c0_174, %c0_175] : memref<2x8x8x128xf32, #tpu.memory_space<vmem>>, vector<1x1x8x128xf32>
    %335 = vector.shape_cast %334 : vector<1x1x8x128xf32> to vector<8x128xf32>
    %c0_176 = arith.constant 0 : index
    %c0_177 = arith.constant 0 : index
    %336 = vector.load %arg7[%c0_176, %c0_177] : memref<8x32xf32, #tpu.memory_space<vmem>>, vector<8x32xf32>
    %c0_178 = arith.constant 0 : index
    %c0_179 = arith.constant 0 : index
    %337 = vector.load %arg8[%c0_178, %c0_179] : memref<8x32xf32, #tpu.memory_space<vmem>>, vector<8x32xf32>
    %cst_180 = arith.constant dense<0.000000e+00> : vector<8x128xf32>
    %338 = tpu.matmul %336, %53, %cst_180 {dimension_numbers = #tpu.dot_dimension_numbers<[1], [0], [0], [1], [0, 0, 1, 1], [], []>} : vector<8x32xf32>, vector<32x128xf32>, vector<8x128xf32> -> vector<8x128xf32>
    %339 = arith.addf %335, %338 : vector<8x128xf32>
    %340 = vector.extract_strided_slice %339 {offsets = [0, 0], sizes = [8, 32], strides = [1, 1]} : vector<8x128xf32> to vector<8x32xf32>
    %cst_181 = arith.constant 5.000000e-01 : f32
    %341 = vector.broadcast %cst_181 : f32 to vector<8x32xf32>
    %342 = arith.mulf %341, %340 : vector<8x32xf32>
    %343 = math.tanh %342 : vector<8x32xf32>
    %cst_182 = arith.constant 1.000000e+00 : f32
    %344 = vector.broadcast %cst_182 : f32 to vector<8x32xf32>
    %345 = arith.addf %343, %344 : vector<8x32xf32>
    %cst_183 = arith.constant 5.000000e-01 : f32
    %346 = vector.broadcast %cst_183 : f32 to vector<8x32xf32>
    %347 = arith.mulf %346, %345 : vector<8x32xf32>
    %348 = vector.extract_strided_slice %339 {offsets = [0, 32], sizes = [8, 32], strides = [1, 1]} : vector<8x128xf32> to vector<8x32xf32>
    %cst_184 = arith.constant 5.000000e-01 : f32
    %349 = vector.broadcast %cst_184 : f32 to vector<8x32xf32>
    %350 = arith.mulf %349, %348 : vector<8x32xf32>
    %351 = math.tanh %350 : vector<8x32xf32>
    %cst_185 = arith.constant 1.000000e+00 : f32
    %352 = vector.broadcast %cst_185 : f32 to vector<8x32xf32>
    %353 = arith.addf %351, %352 : vector<8x32xf32>
    %cst_186 = arith.constant 5.000000e-01 : f32
    %354 = vector.broadcast %cst_186 : f32 to vector<8x32xf32>
    %355 = arith.mulf %354, %353 : vector<8x32xf32>
    %356 = vector.extract_strided_slice %339 {offsets = [0, 64], sizes = [8, 32], strides = [1, 1]} : vector<8x128xf32> to vector<8x32xf32>
    %357 = math.tanh %356 : vector<8x32xf32>
    %358 = vector.extract_strided_slice %339 {offsets = [0, 96], sizes = [8, 32], strides = [1, 1]} : vector<8x128xf32> to vector<8x32xf32>
    %cst_187 = arith.constant 5.000000e-01 : f32
    %359 = vector.broadcast %cst_187 : f32 to vector<8x32xf32>
    %360 = arith.mulf %359, %358 : vector<8x32xf32>
    %361 = math.tanh %360 : vector<8x32xf32>
    %cst_188 = arith.constant 1.000000e+00 : f32
    %362 = vector.broadcast %cst_188 : f32 to vector<8x32xf32>
    %363 = arith.addf %361, %362 : vector<8x32xf32>
    %cst_189 = arith.constant 5.000000e-01 : f32
    %364 = vector.broadcast %cst_189 : f32 to vector<8x32xf32>
    %365 = arith.mulf %364, %363 : vector<8x32xf32>
    %366 = arith.mulf %355, %337 : vector<8x32xf32>
    %367 = arith.mulf %347, %357 : vector<8x32xf32>
    %368 = arith.addf %366, %367 : vector<8x32xf32>
    %369 = math.tanh %368 : vector<8x32xf32>
    %370 = arith.mulf %365, %369 : vector<8x32xf32>
    %c5_i32_190 = arith.constant 5 : i32
    %371 = vector.broadcast %c5_i32_190 : i32 to vector<8x1xi32>
    %372 = arith.cmpi sgt, %41, %371 : vector<8x1xi32>
    %c0_191 = arith.constant 0 : index
    %c0_192 = arith.constant 0 : index
    %373 = vector.load %arg7[%c0_191, %c0_192] : memref<8x32xf32, #tpu.memory_space<vmem>>, vector<8x32xf32>
    %374 = vector.shape_cast %372 : vector<8x1xi1> to vector<8x1xi1>
    %375 = vector.broadcast %374 : vector<8x1xi1> to vector<8x32xi1>
    %376 = arith.select %375, %370, %373 : vector<8x32xi1>, vector<8x32xf32>
    %c0_193 = arith.constant 0 : index
    %c0_194 = arith.constant 0 : index
    %377 = vector.load %arg7[%c0_193, %c0_194] : memref<8x32xf32, #tpu.memory_space<vmem>>, vector<8x32xf32>
    tpu.vector_store %arg7[%c0_193, %c0_194], %376 {strides = array<i32>} : memref<8x32xf32, #tpu.memory_space<vmem>>, vector<8x32xf32>,
    %c0_195 = arith.constant 0 : index
    %c0_196 = arith.constant 0 : index
    %378 = vector.load %arg8[%c0_195, %c0_196] : memref<8x32xf32, #tpu.memory_space<vmem>>, vector<8x32xf32>
    %379 = vector.shape_cast %372 : vector<8x1xi1> to vector<8x1xi1>
    %380 = vector.broadcast %379 : vector<8x1xi1> to vector<8x32xi1>
    %381 = arith.select %380, %368, %378 : vector<8x32xi1>, vector<8x32xf32>
    %c0_197 = arith.constant 0 : index
    %c0_198 = arith.constant 0 : index
    %382 = vector.load %arg8[%c0_197, %c0_198] : memref<8x32xf32, #tpu.memory_space<vmem>>, vector<8x32xf32>
    tpu.vector_store %arg8[%c0_197, %c0_198], %381 {strides = array<i32>} : memref<8x32xf32, #tpu.memory_space<vmem>>, vector<8x32xf32>,
    %cst_199 = arith.constant 0.000000e+00 : f32
    %383 = vector.shape_cast %372 : vector<8x1xi1> to vector<8x1xi1>
    %384 = vector.broadcast %383 : vector<8x1xi1> to vector<8x32xi1>
    %385 = vector.broadcast %cst_199 : f32 to vector<8x32xf32>
    %386 = arith.select %384, %370, %385 : vector<8x32xi1>, vector<8x32xf32>
    %c5_200 = arith.constant 5 : index
    %c0_201 = arith.constant 0 : index
    %c32_202 = arith.constant 32 : index
    %387 = vector.load %arg4[%c5_200, %c0_201, %c32_202] : memref<8x8x64xf32, #tpu.memory_space<vmem>>, vector<1x8x32xf32>
    %388 = vector.shape_cast %387 : vector<1x8x32xf32> to vector<8x32xf32>
    %389 = vector.shape_cast %386 : vector<8x32xf32> to vector<1x8x32xf32>
    tpu.vector_store %arg4[%c5_200, %c0_201, %c32_202], %389 {strides = array<i32>} : memref<8x8x64xf32, #tpu.memory_space<vmem>>, vector<1x8x32xf32>,
    %c0_203 = arith.constant 0 : index
    %c3_204 = arith.constant 3 : index
    %c0_205 = arith.constant 0 : index
    %c0_206 = arith.constant 0 : index
    %390 = vector.load %arg2[%c0_203, %c3_204, %c0_205, %c0_206] : memref<2x8x8x128xf32, #tpu.memory_space<vmem>>, vector<1x1x8x128xf32>
    %391 = vector.shape_cast %390 : vector<1x1x8x128xf32> to vector<8x128xf32>
    %c0_207 = arith.constant 0 : index
    %c0_208 = arith.constant 0 : index
    %392 = vector.load %arg5[%c0_207, %c0_208] : memref<8x32xf32, #tpu.memory_space<vmem>>, vector<8x32xf32>
    %c0_209 = arith.constant 0 : index
    %c0_210 = arith.constant 0 : index
    %393 = vector.load %arg6[%c0_209, %c0_210] : memref<8x32xf32, #tpu.memory_space<vmem>>, vector<8x32xf32>
    %cst_211 = arith.constant dense<0.000000e+00> : vector<8x128xf32>
    %394 = tpu.matmul %392, %51, %cst_211 {dimension_numbers = #tpu.dot_dimension_numbers<[1], [0], [0], [1], [0, 0, 1, 1], [], []>} : vector<8x32xf32>, vector<32x128xf32>, vector<8x128xf32> -> vector<8x128xf32>
    %395 = arith.addf %391, %394 : vector<8x128xf32>
    %396 = vector.extract_strided_slice %395 {offsets = [0, 0], sizes = [8, 32], strides = [1, 1]} : vector<8x128xf32> to vector<8x32xf32>
    %cst_212 = arith.constant 5.000000e-01 : f32
    %397 = vector.broadcast %cst_212 : f32 to vector<8x32xf32>
    %398 = arith.mulf %397, %396 : vector<8x32xf32>
    %399 = math.tanh %398 : vector<8x32xf32>
    %cst_213 = arith.constant 1.000000e+00 : f32
    %400 = vector.broadcast %cst_213 : f32 to vector<8x32xf32>
    %401 = arith.addf %399, %400 : vector<8x32xf32>
    %cst_214 = arith.constant 5.000000e-01 : f32
    %402 = vector.broadcast %cst_214 : f32 to vector<8x32xf32>
    %403 = arith.mulf %402, %401 : vector<8x32xf32>
    %404 = vector.extract_strided_slice %395 {offsets = [0, 32], sizes = [8, 32], strides = [1, 1]} : vector<8x128xf32> to vector<8x32xf32>
    %cst_215 = arith.constant 5.000000e-01 : f32
    %405 = vector.broadcast %cst_215 : f32 to vector<8x32xf32>
    %406 = arith.mulf %405, %404 : vector<8x32xf32>
    %407 = math.tanh %406 : vector<8x32xf32>
    %cst_216 = arith.constant 1.000000e+00 : f32
    %408 = vector.broadcast %cst_216 : f32 to vector<8x32xf32>
    %409 = arith.addf %407, %408 : vector<8x32xf32>
    %cst_217 = arith.constant 5.000000e-01 : f32
    %410 = vector.broadcast %cst_217 : f32 to vector<8x32xf32>
    %411 = arith.mulf %410, %409 : vector<8x32xf32>
    %412 = vector.extract_strided_slice %395 {offsets = [0, 64], sizes = [8, 32], strides = [1, 1]} : vector<8x128xf32> to vector<8x32xf32>
    %413 = math.tanh %412 : vector<8x32xf32>
    %414 = vector.extract_strided_slice %395 {offsets = [0, 96], sizes = [8, 32], strides = [1, 1]} : vector<8x128xf32> to vector<8x32xf32>
    %cst_218 = arith.constant 5.000000e-01 : f32
    %415 = vector.broadcast %cst_218 : f32 to vector<8x32xf32>
    %416 = arith.mulf %415, %414 : vector<8x32xf32>
    %417 = math.tanh %416 : vector<8x32xf32>
    %cst_219 = arith.constant 1.000000e+00 : f32
    %418 = vector.broadcast %cst_219 : f32 to vector<8x32xf32>
    %419 = arith.addf %417, %418 : vector<8x32xf32>
    %cst_220 = arith.constant 5.000000e-01 : f32
    %420 = vector.broadcast %cst_220 : f32 to vector<8x32xf32>
    %421 = arith.mulf %420, %419 : vector<8x32xf32>
    %422 = arith.mulf %411, %393 : vector<8x32xf32>
    %423 = arith.mulf %403, %413 : vector<8x32xf32>
    %424 = arith.addf %422, %423 : vector<8x32xf32>
    %425 = math.tanh %424 : vector<8x32xf32>
    %426 = arith.mulf %421, %425 : vector<8x32xf32>
    %c3_i32_221 = arith.constant 3 : i32
    %427 = vector.broadcast %c3_i32_221 : i32 to vector<8x1xi32>
    %428 = arith.cmpi sgt, %41, %427 : vector<8x1xi32>
    %c0_222 = arith.constant 0 : index
    %c0_223 = arith.constant 0 : index
    %429 = vector.load %arg5[%c0_222, %c0_223] : memref<8x32xf32, #tpu.memory_space<vmem>>, vector<8x32xf32>
    %430 = vector.shape_cast %428 : vector<8x1xi1> to vector<8x1xi1>
    %431 = vector.broadcast %430 : vector<8x1xi1> to vector<8x32xi1>
    %432 = arith.select %431, %426, %429 : vector<8x32xi1>, vector<8x32xf32>
    %c0_224 = arith.constant 0 : index
    %c0_225 = arith.constant 0 : index
    %433 = vector.load %arg5[%c0_224, %c0_225] : memref<8x32xf32, #tpu.memory_space<vmem>>, vector<8x32xf32>
    tpu.vector_store %arg5[%c0_224, %c0_225], %432 {strides = array<i32>} : memref<8x32xf32, #tpu.memory_space<vmem>>, vector<8x32xf32>,
    %c0_226 = arith.constant 0 : index
    %c0_227 = arith.constant 0 : index
    %434 = vector.load %arg6[%c0_226, %c0_227] : memref<8x32xf32, #tpu.memory_space<vmem>>, vector<8x32xf32>
    %435 = vector.shape_cast %428 : vector<8x1xi1> to vector<8x1xi1>
    %436 = vector.broadcast %435 : vector<8x1xi1> to vector<8x32xi1>
    %437 = arith.select %436, %424, %434 : vector<8x32xi1>, vector<8x32xf32>
    %c0_228 = arith.constant 0 : index
    %c0_229 = arith.constant 0 : index
    %438 = vector.load %arg6[%c0_228, %c0_229] : memref<8x32xf32, #tpu.memory_space<vmem>>, vector<8x32xf32>
    tpu.vector_store %arg6[%c0_228, %c0_229], %437 {strides = array<i32>} : memref<8x32xf32, #tpu.memory_space<vmem>>, vector<8x32xf32>,
    %cst_230 = arith.constant 0.000000e+00 : f32
    %439 = vector.shape_cast %428 : vector<8x1xi1> to vector<8x1xi1>
    %440 = vector.broadcast %439 : vector<8x1xi1> to vector<8x32xi1>
    %441 = vector.broadcast %cst_230 : f32 to vector<8x32xf32>
    %442 = arith.select %440, %426, %441 : vector<8x32xi1>, vector<8x32xf32>
    %c3_231 = arith.constant 3 : index
    %c0_232 = arith.constant 0 : index
    %c0_233 = arith.constant 0 : index
    %443 = vector.load %arg4[%c3_231, %c0_232, %c0_233] : memref<8x8x64xf32, #tpu.memory_space<vmem>>, vector<1x8x32xf32>
    %444 = vector.shape_cast %443 : vector<1x8x32xf32> to vector<8x32xf32>
    %445 = vector.shape_cast %442 : vector<8x32xf32> to vector<1x8x32xf32>
    tpu.vector_store %arg4[%c3_231, %c0_232, %c0_233], %445 {strides = array<i32>} : memref<8x8x64xf32, #tpu.memory_space<vmem>>, vector<1x8x32xf32>,
    %c1_234 = arith.constant 1 : index
    %c4_235 = arith.constant 4 : index
    %c0_236 = arith.constant 0 : index
    %c0_237 = arith.constant 0 : index
    %446 = vector.load %arg2[%c1_234, %c4_235, %c0_236, %c0_237] : memref<2x8x8x128xf32, #tpu.memory_space<vmem>>, vector<1x1x8x128xf32>
    %447 = vector.shape_cast %446 : vector<1x1x8x128xf32> to vector<8x128xf32>
    %c0_238 = arith.constant 0 : index
    %c0_239 = arith.constant 0 : index
    %448 = vector.load %arg7[%c0_238, %c0_239] : memref<8x32xf32, #tpu.memory_space<vmem>>, vector<8x32xf32>
    %c0_240 = arith.constant 0 : index
    %c0_241 = arith.constant 0 : index
    %449 = vector.load %arg8[%c0_240, %c0_241] : memref<8x32xf32, #tpu.memory_space<vmem>>, vector<8x32xf32>
    %cst_242 = arith.constant dense<0.000000e+00> : vector<8x128xf32>
    %450 = tpu.matmul %448, %53, %cst_242 {dimension_numbers = #tpu.dot_dimension_numbers<[1], [0], [0], [1], [0, 0, 1, 1], [], []>} : vector<8x32xf32>, vector<32x128xf32>, vector<8x128xf32> -> vector<8x128xf32>
    %451 = arith.addf %447, %450 : vector<8x128xf32>
    %452 = vector.extract_strided_slice %451 {offsets = [0, 0], sizes = [8, 32], strides = [1, 1]} : vector<8x128xf32> to vector<8x32xf32>
    %cst_243 = arith.constant 5.000000e-01 : f32
    %453 = vector.broadcast %cst_243 : f32 to vector<8x32xf32>
    %454 = arith.mulf %453, %452 : vector<8x32xf32>
    %455 = math.tanh %454 : vector<8x32xf32>
    %cst_244 = arith.constant 1.000000e+00 : f32
    %456 = vector.broadcast %cst_244 : f32 to vector<8x32xf32>
    %457 = arith.addf %455, %456 : vector<8x32xf32>
    %cst_245 = arith.constant 5.000000e-01 : f32
    %458 = vector.broadcast %cst_245 : f32 to vector<8x32xf32>
    %459 = arith.mulf %458, %457 : vector<8x32xf32>
    %460 = vector.extract_strided_slice %451 {offsets = [0, 32], sizes = [8, 32], strides = [1, 1]} : vector<8x128xf32> to vector<8x32xf32>
    %cst_246 = arith.constant 5.000000e-01 : f32
    %461 = vector.broadcast %cst_246 : f32 to vector<8x32xf32>
    %462 = arith.mulf %461, %460 : vector<8x32xf32>
    %463 = math.tanh %462 : vector<8x32xf32>
    %cst_247 = arith.constant 1.000000e+00 : f32
    %464 = vector.broadcast %cst_247 : f32 to vector<8x32xf32>
    %465 = arith.addf %463, %464 : vector<8x32xf32>
    %cst_248 = arith.constant 5.000000e-01 : f32
    %466 = vector.broadcast %cst_248 : f32 to vector<8x32xf32>
    %467 = arith.mulf %466, %465 : vector<8x32xf32>
    %468 = vector.extract_strided_slice %451 {offsets = [0, 64], sizes = [8, 32], strides = [1, 1]} : vector<8x128xf32> to vector<8x32xf32>
    %469 = math.tanh %468 : vector<8x32xf32>
    %470 = vector.extract_strided_slice %451 {offsets = [0, 96], sizes = [8, 32], strides = [1, 1]} : vector<8x128xf32> to vector<8x32xf32>
    %cst_249 = arith.constant 5.000000e-01 : f32
    %471 = vector.broadcast %cst_249 : f32 to vector<8x32xf32>
    %472 = arith.mulf %471, %470 : vector<8x32xf32>
    %473 = math.tanh %472 : vector<8x32xf32>
    %cst_250 = arith.constant 1.000000e+00 : f32
    %474 = vector.broadcast %cst_250 : f32 to vector<8x32xf32>
    %475 = arith.addf %473, %474 : vector<8x32xf32>
    %cst_251 = arith.constant 5.000000e-01 : f32
    %476 = vector.broadcast %cst_251 : f32 to vector<8x32xf32>
    %477 = arith.mulf %476, %475 : vector<8x32xf32>
    %478 = arith.mulf %467, %449 : vector<8x32xf32>
    %479 = arith.mulf %459, %469 : vector<8x32xf32>
    %480 = arith.addf %478, %479 : vector<8x32xf32>
    %481 = math.tanh %480 : vector<8x32xf32>
    %482 = arith.mulf %477, %481 : vector<8x32xf32>
    %c4_i32_252 = arith.constant 4 : i32
    %483 = vector.broadcast %c4_i32_252 : i32 to vector<8x1xi32>
    %484 = arith.cmpi sgt, %41, %483 : vector<8x1xi32>
    %c0_253 = arith.constant 0 : index
    %c0_254 = arith.constant 0 : index
    %485 = vector.load %arg7[%c0_253, %c0_254] : memref<8x32xf32, #tpu.memory_space<vmem>>, vector<8x32xf32>
    %486 = vector.shape_cast %484 : vector<8x1xi1> to vector<8x1xi1>
    %487 = vector.broadcast %486 : vector<8x1xi1> to vector<8x32xi1>
    %488 = arith.select %487, %482, %485 : vector<8x32xi1>, vector<8x32xf32>
    %c0_255 = arith.constant 0 : index
    %c0_256 = arith.constant 0 : index
    %489 = vector.load %arg7[%c0_255, %c0_256] : memref<8x32xf32, #tpu.memory_space<vmem>>, vector<8x32xf32>
    tpu.vector_store %arg7[%c0_255, %c0_256], %488 {strides = array<i32>} : memref<8x32xf32, #tpu.memory_space<vmem>>, vector<8x32xf32>,
    %c0_257 = arith.constant 0 : index
    %c0_258 = arith.constant 0 : index
    %490 = vector.load %arg8[%c0_257, %c0_258] : memref<8x32xf32, #tpu.memory_space<vmem>>, vector<8x32xf32>
    %491 = vector.shape_cast %484 : vector<8x1xi1> to vector<8x1xi1>
    %492 = vector.broadcast %491 : vector<8x1xi1> to vector<8x32xi1>
    %493 = arith.select %492, %480, %490 : vector<8x32xi1>, vector<8x32xf32>
    %c0_259 = arith.constant 0 : index
    %c0_260 = arith.constant 0 : index
    %494 = vector.load %arg8[%c0_259, %c0_260] : memref<8x32xf32, #tpu.memory_space<vmem>>, vector<8x32xf32>
    tpu.vector_store %arg8[%c0_259, %c0_260], %493 {strides = array<i32>} : memref<8x32xf32, #tpu.memory_space<vmem>>, vector<8x32xf32>,
    %cst_261 = arith.constant 0.000000e+00 : f32
    %495 = vector.shape_cast %484 : vector<8x1xi1> to vector<8x1xi1>
    %496 = vector.broadcast %495 : vector<8x1xi1> to vector<8x32xi1>
    %497 = vector.broadcast %cst_261 : f32 to vector<8x32xf32>
    %498 = arith.select %496, %482, %497 : vector<8x32xi1>, vector<8x32xf32>
    %c4_262 = arith.constant 4 : index
    %c0_263 = arith.constant 0 : index
    %c32_264 = arith.constant 32 : index
    %499 = vector.load %arg4[%c4_262, %c0_263, %c32_264] : memref<8x8x64xf32, #tpu.memory_space<vmem>>, vector<1x8x32xf32>
    %500 = vector.shape_cast %499 : vector<1x8x32xf32> to vector<8x32xf32>
    %501 = vector.shape_cast %498 : vector<8x32xf32> to vector<1x8x32xf32>
    tpu.vector_store %arg4[%c4_262, %c0_263, %c32_264], %501 {strides = array<i32>} : memref<8x8x64xf32, #tpu.memory_space<vmem>>, vector<1x8x32xf32>,
    %c0_265 = arith.constant 0 : index
    %c4_266 = arith.constant 4 : index
    %c0_267 = arith.constant 0 : index
    %c0_268 = arith.constant 0 : index
    %502 = vector.load %arg2[%c0_265, %c4_266, %c0_267, %c0_268] : memref<2x8x8x128xf32, #tpu.memory_space<vmem>>, vector<1x1x8x128xf32>
    %503 = vector.shape_cast %502 : vector<1x1x8x128xf32> to vector<8x128xf32>
    %c0_269 = arith.constant 0 : index
    %c0_270 = arith.constant 0 : index
    %504 = vector.load %arg5[%c0_269, %c0_270] : memref<8x32xf32, #tpu.memory_space<vmem>>, vector<8x32xf32>
    %c0_271 = arith.constant 0 : index
    %c0_272 = arith.constant 0 : index
    %505 = vector.load %arg6[%c0_271, %c0_272] : memref<8x32xf32, #tpu.memory_space<vmem>>, vector<8x32xf32>
    %cst_273 = arith.constant dense<0.000000e+00> : vector<8x128xf32>
    %506 = tpu.matmul %504, %51, %cst_273 {dimension_numbers = #tpu.dot_dimension_numbers<[1], [0], [0], [1], [0, 0, 1, 1], [], []>} : vector<8x32xf32>, vector<32x128xf32>, vector<8x128xf32> -> vector<8x128xf32>
    %507 = arith.addf %503, %506 : vector<8x128xf32>
    %508 = vector.extract_strided_slice %507 {offsets = [0, 0], sizes = [8, 32], strides = [1, 1]} : vector<8x128xf32> to vector<8x32xf32>
    %cst_274 = arith.constant 5.000000e-01 : f32
    %509 = vector.broadcast %cst_274 : f32 to vector<8x32xf32>
    %510 = arith.mulf %509, %508 : vector<8x32xf32>
    %511 = math.tanh %510 : vector<8x32xf32>
    %cst_275 = arith.constant 1.000000e+00 : f32
    %512 = vector.broadcast %cst_275 : f32 to vector<8x32xf32>
    %513 = arith.addf %511, %512 : vector<8x32xf32>
    %cst_276 = arith.constant 5.000000e-01 : f32
    %514 = vector.broadcast %cst_276 : f32 to vector<8x32xf32>
    %515 = arith.mulf %514, %513 : vector<8x32xf32>
    %516 = vector.extract_strided_slice %507 {offsets = [0, 32], sizes = [8, 32], strides = [1, 1]} : vector<8x128xf32> to vector<8x32xf32>
    %cst_277 = arith.constant 5.000000e-01 : f32
    %517 = vector.broadcast %cst_277 : f32 to vector<8x32xf32>
    %518 = arith.mulf %517, %516 : vector<8x32xf32>
    %519 = math.tanh %518 : vector<8x32xf32>
    %cst_278 = arith.constant 1.000000e+00 : f32
    %520 = vector.broadcast %cst_278 : f32 to vector<8x32xf32>
    %521 = arith.addf %519, %520 : vector<8x32xf32>
    %cst_279 = arith.constant 5.000000e-01 : f32
    %522 = vector.broadcast %cst_279 : f32 to vector<8x32xf32>
    %523 = arith.mulf %522, %521 : vector<8x32xf32>
    %524 = vector.extract_strided_slice %507 {offsets = [0, 64], sizes = [8, 32], strides = [1, 1]} : vector<8x128xf32> to vector<8x32xf32>
    %525 = math.tanh %524 : vector<8x32xf32>
    %526 = vector.extract_strided_slice %507 {offsets = [0, 96], sizes = [8, 32], strides = [1, 1]} : vector<8x128xf32> to vector<8x32xf32>
    %cst_280 = arith.constant 5.000000e-01 : f32
    %527 = vector.broadcast %cst_280 : f32 to vector<8x32xf32>
    %528 = arith.mulf %527, %526 : vector<8x32xf32>
    %529 = math.tanh %528 : vector<8x32xf32>
    %cst_281 = arith.constant 1.000000e+00 : f32
    %530 = vector.broadcast %cst_281 : f32 to vector<8x32xf32>
    %531 = arith.addf %529, %530 : vector<8x32xf32>
    %cst_282 = arith.constant 5.000000e-01 : f32
    %532 = vector.broadcast %cst_282 : f32 to vector<8x32xf32>
    %533 = arith.mulf %532, %531 : vector<8x32xf32>
    %534 = arith.mulf %523, %505 : vector<8x32xf32>
    %535 = arith.mulf %515, %525 : vector<8x32xf32>
    %536 = arith.addf %534, %535 : vector<8x32xf32>
    %537 = math.tanh %536 : vector<8x32xf32>
    %538 = arith.mulf %533, %537 : vector<8x32xf32>
    %c4_i32_283 = arith.constant 4 : i32
    %539 = vector.broadcast %c4_i32_283 : i32 to vector<8x1xi32>
    %540 = arith.cmpi sgt, %41, %539 : vector<8x1xi32>
    %c0_284 = arith.constant 0 : index
    %c0_285 = arith.constant 0 : index
    %541 = vector.load %arg5[%c0_284, %c0_285] : memref<8x32xf32, #tpu.memory_space<vmem>>, vector<8x32xf32>
    %542 = vector.shape_cast %540 : vector<8x1xi1> to vector<8x1xi1>
    %543 = vector.broadcast %542 : vector<8x1xi1> to vector<8x32xi1>
    %544 = arith.select %543, %538, %541 : vector<8x32xi1>, vector<8x32xf32>
    %c0_286 = arith.constant 0 : index
    %c0_287 = arith.constant 0 : index
    %545 = vector.load %arg5[%c0_286, %c0_287] : memref<8x32xf32, #tpu.memory_space<vmem>>, vector<8x32xf32>
    tpu.vector_store %arg5[%c0_286, %c0_287], %544 {strides = array<i32>} : memref<8x32xf32, #tpu.memory_space<vmem>>, vector<8x32xf32>,
    %c0_288 = arith.constant 0 : index
    %c0_289 = arith.constant 0 : index
    %546 = vector.load %arg6[%c0_288, %c0_289] : memref<8x32xf32, #tpu.memory_space<vmem>>, vector<8x32xf32>
    %547 = vector.shape_cast %540 : vector<8x1xi1> to vector<8x1xi1>
    %548 = vector.broadcast %547 : vector<8x1xi1> to vector<8x32xi1>
    %549 = arith.select %548, %536, %546 : vector<8x32xi1>, vector<8x32xf32>
    %c0_290 = arith.constant 0 : index
    %c0_291 = arith.constant 0 : index
    %550 = vector.load %arg6[%c0_290, %c0_291] : memref<8x32xf32, #tpu.memory_space<vmem>>, vector<8x32xf32>
    tpu.vector_store %arg6[%c0_290, %c0_291], %549 {strides = array<i32>} : memref<8x32xf32, #tpu.memory_space<vmem>>, vector<8x32xf32>,
    %cst_292 = arith.constant 0.000000e+00 : f32
    %551 = vector.shape_cast %540 : vector<8x1xi1> to vector<8x1xi1>
    %552 = vector.broadcast %551 : vector<8x1xi1> to vector<8x32xi1>
    %553 = vector.broadcast %cst_292 : f32 to vector<8x32xf32>
    %554 = arith.select %552, %538, %553 : vector<8x32xi1>, vector<8x32xf32>
    %c4_293 = arith.constant 4 : index
    %c0_294 = arith.constant 0 : index
    %c0_295 = arith.constant 0 : index
    %555 = vector.load %arg4[%c4_293, %c0_294, %c0_295] : memref<8x8x64xf32, #tpu.memory_space<vmem>>, vector<1x8x32xf32>
    %556 = vector.shape_cast %555 : vector<1x8x32xf32> to vector<8x32xf32>
    %557 = vector.shape_cast %554 : vector<8x32xf32> to vector<1x8x32xf32>
    tpu.vector_store %arg4[%c4_293, %c0_294, %c0_295], %557 {strides = array<i32>} : memref<8x8x64xf32, #tpu.memory_space<vmem>>, vector<1x8x32xf32>,
    %c1_296 = arith.constant 1 : index
    %c3_297 = arith.constant 3 : index
    %c0_298 = arith.constant 0 : index
    %c0_299 = arith.constant 0 : index
    %558 = vector.load %arg2[%c1_296, %c3_297, %c0_298, %c0_299] : memref<2x8x8x128xf32, #tpu.memory_space<vmem>>, vector<1x1x8x128xf32>
    %559 = vector.shape_cast %558 : vector<1x1x8x128xf32> to vector<8x128xf32>
    %c0_300 = arith.constant 0 : index
    %c0_301 = arith.constant 0 : index
    %560 = vector.load %arg7[%c0_300, %c0_301] : memref<8x32xf32, #tpu.memory_space<vmem>>, vector<8x32xf32>
    %c0_302 = arith.constant 0 : index
    %c0_303 = arith.constant 0 : index
    %561 = vector.load %arg8[%c0_302, %c0_303] : memref<8x32xf32, #tpu.memory_space<vmem>>, vector<8x32xf32>
    %cst_304 = arith.constant dense<0.000000e+00> : vector<8x128xf32>
    %562 = tpu.matmul %560, %53, %cst_304 {dimension_numbers = #tpu.dot_dimension_numbers<[1], [0], [0], [1], [0, 0, 1, 1], [], []>} : vector<8x32xf32>, vector<32x128xf32>, vector<8x128xf32> -> vector<8x128xf32>
    %563 = arith.addf %559, %562 : vector<8x128xf32>
    %564 = vector.extract_strided_slice %563 {offsets = [0, 0], sizes = [8, 32], strides = [1, 1]} : vector<8x128xf32> to vector<8x32xf32>
    %cst_305 = arith.constant 5.000000e-01 : f32
    %565 = vector.broadcast %cst_305 : f32 to vector<8x32xf32>
    %566 = arith.mulf %565, %564 : vector<8x32xf32>
    %567 = math.tanh %566 : vector<8x32xf32>
    %cst_306 = arith.constant 1.000000e+00 : f32
    %568 = vector.broadcast %cst_306 : f32 to vector<8x32xf32>
    %569 = arith.addf %567, %568 : vector<8x32xf32>
    %cst_307 = arith.constant 5.000000e-01 : f32
    %570 = vector.broadcast %cst_307 : f32 to vector<8x32xf32>
    %571 = arith.mulf %570, %569 : vector<8x32xf32>
    %572 = vector.extract_strided_slice %563 {offsets = [0, 32], sizes = [8, 32], strides = [1, 1]} : vector<8x128xf32> to vector<8x32xf32>
    %cst_308 = arith.constant 5.000000e-01 : f32
    %573 = vector.broadcast %cst_308 : f32 to vector<8x32xf32>
    %574 = arith.mulf %573, %572 : vector<8x32xf32>
    %575 = math.tanh %574 : vector<8x32xf32>
    %cst_309 = arith.constant 1.000000e+00 : f32
    %576 = vector.broadcast %cst_309 : f32 to vector<8x32xf32>
    %577 = arith.addf %575, %576 : vector<8x32xf32>
    %cst_310 = arith.constant 5.000000e-01 : f32
    %578 = vector.broadcast %cst_310 : f32 to vector<8x32xf32>
    %579 = arith.mulf %578, %577 : vector<8x32xf32>
    %580 = vector.extract_strided_slice %563 {offsets = [0, 64], sizes = [8, 32], strides = [1, 1]} : vector<8x128xf32> to vector<8x32xf32>
    %581 = math.tanh %580 : vector<8x32xf32>
    %582 = vector.extract_strided_slice %563 {offsets = [0, 96], sizes = [8, 32], strides = [1, 1]} : vector<8x128xf32> to vector<8x32xf32>
    %cst_311 = arith.constant 5.000000e-01 : f32
    %583 = vector.broadcast %cst_311 : f32 to vector<8x32xf32>
    %584 = arith.mulf %583, %582 : vector<8x32xf32>
    %585 = math.tanh %584 : vector<8x32xf32>
    %cst_312 = arith.constant 1.000000e+00 : f32
    %586 = vector.broadcast %cst_312 : f32 to vector<8x32xf32>
    %587 = arith.addf %585, %586 : vector<8x32xf32>
    %cst_313 = arith.constant 5.000000e-01 : f32
    %588 = vector.broadcast %cst_313 : f32 to vector<8x32xf32>
    %589 = arith.mulf %588, %587 : vector<8x32xf32>
    %590 = arith.mulf %579, %561 : vector<8x32xf32>
    %591 = arith.mulf %571, %581 : vector<8x32xf32>
    %592 = arith.addf %590, %591 : vector<8x32xf32>
    %593 = math.tanh %592 : vector<8x32xf32>
    %594 = arith.mulf %589, %593 : vector<8x32xf32>
    %c3_i32_314 = arith.constant 3 : i32
    %595 = vector.broadcast %c3_i32_314 : i32 to vector<8x1xi32>
    %596 = arith.cmpi sgt, %41, %595 : vector<8x1xi32>
    %c0_315 = arith.constant 0 : index
    %c0_316 = arith.constant 0 : index
    %597 = vector.load %arg7[%c0_315, %c0_316] : memref<8x32xf32, #tpu.memory_space<vmem>>, vector<8x32xf32>
    %598 = vector.shape_cast %596 : vector<8x1xi1> to vector<8x1xi1>
    %599 = vector.broadcast %598 : vector<8x1xi1> to vector<8x32xi1>
    %600 = arith.select %599, %594, %597 : vector<8x32xi1>, vector<8x32xf32>
    %c0_317 = arith.constant 0 : index
    %c0_318 = arith.constant 0 : index
    %601 = vector.load %arg7[%c0_317, %c0_318] : memref<8x32xf32, #tpu.memory_space<vmem>>, vector<8x32xf32>
    tpu.vector_store %arg7[%c0_317, %c0_318], %600 {strides = array<i32>} : memref<8x32xf32, #tpu.memory_space<vmem>>, vector<8x32xf32>,
    %c0_319 = arith.constant 0 : index
    %c0_320 = arith.constant 0 : index
    %602 = vector.load %arg8[%c0_319, %c0_320] : memref<8x32xf32, #tpu.memory_space<vmem>>, vector<8x32xf32>
    %603 = vector.shape_cast %596 : vector<8x1xi1> to vector<8x1xi1>
    %604 = vector.broadcast %603 : vector<8x1xi1> to vector<8x32xi1>
    %605 = arith.select %604, %592, %602 : vector<8x32xi1>, vector<8x32xf32>
    %c0_321 = arith.constant 0 : index
    %c0_322 = arith.constant 0 : index
    %606 = vector.load %arg8[%c0_321, %c0_322] : memref<8x32xf32, #tpu.memory_space<vmem>>, vector<8x32xf32>
    tpu.vector_store %arg8[%c0_321, %c0_322], %605 {strides = array<i32>} : memref<8x32xf32, #tpu.memory_space<vmem>>, vector<8x32xf32>,
    %cst_323 = arith.constant 0.000000e+00 : f32
    %607 = vector.shape_cast %596 : vector<8x1xi1> to vector<8x1xi1>
    %608 = vector.broadcast %607 : vector<8x1xi1> to vector<8x32xi1>
    %609 = vector.broadcast %cst_323 : f32 to vector<8x32xf32>
    %610 = arith.select %608, %594, %609 : vector<8x32xi1>, vector<8x32xf32>
    %c3_324 = arith.constant 3 : index
    %c0_325 = arith.constant 0 : index
    %c32_326 = arith.constant 32 : index
    %611 = vector.load %arg4[%c3_324, %c0_325, %c32_326] : memref<8x8x64xf32, #tpu.memory_space<vmem>>, vector<1x8x32xf32>
    %612 = vector.shape_cast %611 : vector<1x8x32xf32> to vector<8x32xf32>
    %613 = vector.shape_cast %610 : vector<8x32xf32> to vector<1x8x32xf32>
    tpu.vector_store %arg4[%c3_324, %c0_325, %c32_326], %613 {strides = array<i32>} : memref<8x8x64xf32, #tpu.memory_space<vmem>>, vector<1x8x32xf32>,
    %c0_327 = arith.constant 0 : index
    %c5_328 = arith.constant 5 : index
    %c0_329 = arith.constant 0 : index
    %c0_330 = arith.constant 0 : index
    %614 = vector.load %arg2[%c0_327, %c5_328, %c0_329, %c0_330] : memref<2x8x8x128xf32, #tpu.memory_space<vmem>>, vector<1x1x8x128xf32>
    %615 = vector.shape_cast %614 : vector<1x1x8x128xf32> to vector<8x128xf32>
    %c0_331 = arith.constant 0 : index
    %c0_332 = arith.constant 0 : index
    %616 = vector.load %arg5[%c0_331, %c0_332] : memref<8x32xf32, #tpu.memory_space<vmem>>, vector<8x32xf32>
    %c0_333 = arith.constant 0 : index
    %c0_334 = arith.constant 0 : index
    %617 = vector.load %arg6[%c0_333, %c0_334] : memref<8x32xf32, #tpu.memory_space<vmem>>, vector<8x32xf32>
    %cst_335 = arith.constant dense<0.000000e+00> : vector<8x128xf32>
    %618 = tpu.matmul %616, %51, %cst_335 {dimension_numbers = #tpu.dot_dimension_numbers<[1], [0], [0], [1], [0, 0, 1, 1], [], []>} : vector<8x32xf32>, vector<32x128xf32>, vector<8x128xf32> -> vector<8x128xf32>
    %619 = arith.addf %615, %618 : vector<8x128xf32>
    %620 = vector.extract_strided_slice %619 {offsets = [0, 0], sizes = [8, 32], strides = [1, 1]} : vector<8x128xf32> to vector<8x32xf32>
    %cst_336 = arith.constant 5.000000e-01 : f32
    %621 = vector.broadcast %cst_336 : f32 to vector<8x32xf32>
    %622 = arith.mulf %621, %620 : vector<8x32xf32>
    %623 = math.tanh %622 : vector<8x32xf32>
    %cst_337 = arith.constant 1.000000e+00 : f32
    %624 = vector.broadcast %cst_337 : f32 to vector<8x32xf32>
    %625 = arith.addf %623, %624 : vector<8x32xf32>
    %cst_338 = arith.constant 5.000000e-01 : f32
    %626 = vector.broadcast %cst_338 : f32 to vector<8x32xf32>
    %627 = arith.mulf %626, %625 : vector<8x32xf32>
    %628 = vector.extract_strided_slice %619 {offsets = [0, 32], sizes = [8, 32], strides = [1, 1]} : vector<8x128xf32> to vector<8x32xf32>
    %cst_339 = arith.constant 5.000000e-01 : f32
    %629 = vector.broadcast %cst_339 : f32 to vector<8x32xf32>
    %630 = arith.mulf %629, %628 : vector<8x32xf32>
    %631 = math.tanh %630 : vector<8x32xf32>
    %cst_340 = arith.constant 1.000000e+00 : f32
    %632 = vector.broadcast %cst_340 : f32 to vector<8x32xf32>
    %633 = arith.addf %631, %632 : vector<8x32xf32>
    %cst_341 = arith.constant 5.000000e-01 : f32
    %634 = vector.broadcast %cst_341 : f32 to vector<8x32xf32>
    %635 = arith.mulf %634, %633 : vector<8x32xf32>
    %636 = vector.extract_strided_slice %619 {offsets = [0, 64], sizes = [8, 32], strides = [1, 1]} : vector<8x128xf32> to vector<8x32xf32>
    %637 = math.tanh %636 : vector<8x32xf32>
    %638 = vector.extract_strided_slice %619 {offsets = [0, 96], sizes = [8, 32], strides = [1, 1]} : vector<8x128xf32> to vector<8x32xf32>
    %cst_342 = arith.constant 5.000000e-01 : f32
    %639 = vector.broadcast %cst_342 : f32 to vector<8x32xf32>
    %640 = arith.mulf %639, %638 : vector<8x32xf32>
    %641 = math.tanh %640 : vector<8x32xf32>
    %cst_343 = arith.constant 1.000000e+00 : f32
    %642 = vector.broadcast %cst_343 : f32 to vector<8x32xf32>
    %643 = arith.addf %641, %642 : vector<8x32xf32>
    %cst_344 = arith.constant 5.000000e-01 : f32
    %644 = vector.broadcast %cst_344 : f32 to vector<8x32xf32>
    %645 = arith.mulf %644, %643 : vector<8x32xf32>
    %646 = arith.mulf %635, %617 : vector<8x32xf32>
    %647 = arith.mulf %627, %637 : vector<8x32xf32>
    %648 = arith.addf %646, %647 : vector<8x32xf32>
    %649 = math.tanh %648 : vector<8x32xf32>
    %650 = arith.mulf %645, %649 : vector<8x32xf32>
    %c5_i32_345 = arith.constant 5 : i32
    %651 = vector.broadcast %c5_i32_345 : i32 to vector<8x1xi32>
    %652 = arith.cmpi sgt, %41, %651 : vector<8x1xi32>
    %c0_346 = arith.constant 0 : index
    %c0_347 = arith.constant 0 : index
    %653 = vector.load %arg5[%c0_346, %c0_347] : memref<8x32xf32, #tpu.memory_space<vmem>>, vector<8x32xf32>
    %654 = vector.shape_cast %652 : vector<8x1xi1> to vector<8x1xi1>
    %655 = vector.broadcast %654 : vector<8x1xi1> to vector<8x32xi1>
    %656 = arith.select %655, %650, %653 : vector<8x32xi1>, vector<8x32xf32>
    %c0_348 = arith.constant 0 : index
    %c0_349 = arith.constant 0 : index
    %657 = vector.load %arg5[%c0_348, %c0_349] : memref<8x32xf32, #tpu.memory_space<vmem>>, vector<8x32xf32>
    tpu.vector_store %arg5[%c0_348, %c0_349], %656 {strides = array<i32>} : memref<8x32xf32, #tpu.memory_space<vmem>>, vector<8x32xf32>,
    %c0_350 = arith.constant 0 : index
    %c0_351 = arith.constant 0 : index
    %658 = vector.load %arg6[%c0_350, %c0_351] : memref<8x32xf32, #tpu.memory_space<vmem>>, vector<8x32xf32>
    %659 = vector.shape_cast %652 : vector<8x1xi1> to vector<8x1xi1>
    %660 = vector.broadcast %659 : vector<8x1xi1> to vector<8x32xi1>
    %661 = arith.select %660, %648, %658 : vector<8x32xi1>, vector<8x32xf32>
    %c0_352 = arith.constant 0 : index
    %c0_353 = arith.constant 0 : index
    %662 = vector.load %arg6[%c0_352, %c0_353] : memref<8x32xf32, #tpu.memory_space<vmem>>, vector<8x32xf32>
    tpu.vector_store %arg6[%c0_352, %c0_353], %661 {strides = array<i32>} : memref<8x32xf32, #tpu.memory_space<vmem>>, vector<8x32xf32>,
    %cst_354 = arith.constant 0.000000e+00 : f32
    %663 = vector.shape_cast %652 : vector<8x1xi1> to vector<8x1xi1>
    %664 = vector.broadcast %663 : vector<8x1xi1> to vector<8x32xi1>
    %665 = vector.broadcast %cst_354 : f32 to vector<8x32xf32>
    %666 = arith.select %664, %650, %665 : vector<8x32xi1>, vector<8x32xf32>
    %c5_355 = arith.constant 5 : index
    %c0_356 = arith.constant 0 : index
    %c0_357 = arith.constant 0 : index
    %667 = vector.load %arg4[%c5_355, %c0_356, %c0_357] : memref<8x8x64xf32, #tpu.memory_space<vmem>>, vector<1x8x32xf32>
    %668 = vector.shape_cast %667 : vector<1x8x32xf32> to vector<8x32xf32>
    %669 = vector.shape_cast %666 : vector<8x32xf32> to vector<1x8x32xf32>
    tpu.vector_store %arg4[%c5_355, %c0_356, %c0_357], %669 {strides = array<i32>} : memref<8x8x64xf32, #tpu.memory_space<vmem>>, vector<1x8x32xf32>,
    %c1_358 = arith.constant 1 : index
    %c2_359 = arith.constant 2 : index
    %c0_360 = arith.constant 0 : index
    %c0_361 = arith.constant 0 : index
    %670 = vector.load %arg2[%c1_358, %c2_359, %c0_360, %c0_361] : memref<2x8x8x128xf32, #tpu.memory_space<vmem>>, vector<1x1x8x128xf32>
    %671 = vector.shape_cast %670 : vector<1x1x8x128xf32> to vector<8x128xf32>
    %c0_362 = arith.constant 0 : index
    %c0_363 = arith.constant 0 : index
    %672 = vector.load %arg7[%c0_362, %c0_363] : memref<8x32xf32, #tpu.memory_space<vmem>>, vector<8x32xf32>
    %c0_364 = arith.constant 0 : index
    %c0_365 = arith.constant 0 : index
    %673 = vector.load %arg8[%c0_364, %c0_365] : memref<8x32xf32, #tpu.memory_space<vmem>>, vector<8x32xf32>
    %cst_366 = arith.constant dense<0.000000e+00> : vector<8x128xf32>
    %674 = tpu.matmul %672, %53, %cst_366 {dimension_numbers = #tpu.dot_dimension_numbers<[1], [0], [0], [1], [0, 0, 1, 1], [], []>} : vector<8x32xf32>, vector<32x128xf32>, vector<8x128xf32> -> vector<8x128xf32>
    %675 = arith.addf %671, %674 : vector<8x128xf32>
    %676 = vector.extract_strided_slice %675 {offsets = [0, 0], sizes = [8, 32], strides = [1, 1]} : vector<8x128xf32> to vector<8x32xf32>
    %cst_367 = arith.constant 5.000000e-01 : f32
    %677 = vector.broadcast %cst_367 : f32 to vector<8x32xf32>
    %678 = arith.mulf %677, %676 : vector<8x32xf32>
    %679 = math.tanh %678 : vector<8x32xf32>
    %cst_368 = arith.constant 1.000000e+00 : f32
    %680 = vector.broadcast %cst_368 : f32 to vector<8x32xf32>
    %681 = arith.addf %679, %680 : vector<8x32xf32>
    %cst_369 = arith.constant 5.000000e-01 : f32
    %682 = vector.broadcast %cst_369 : f32 to vector<8x32xf32>
    %683 = arith.mulf %682, %681 : vector<8x32xf32>
    %684 = vector.extract_strided_slice %675 {offsets = [0, 32], sizes = [8, 32], strides = [1, 1]} : vector<8x128xf32> to vector<8x32xf32>
    %cst_370 = arith.constant 5.000000e-01 : f32
    %685 = vector.broadcast %cst_370 : f32 to vector<8x32xf32>
    %686 = arith.mulf %685, %684 : vector<8x32xf32>
    %687 = math.tanh %686 : vector<8x32xf32>
    %cst_371 = arith.constant 1.000000e+00 : f32
    %688 = vector.broadcast %cst_371 : f32 to vector<8x32xf32>
    %689 = arith.addf %687, %688 : vector<8x32xf32>
    %cst_372 = arith.constant 5.000000e-01 : f32
    %690 = vector.broadcast %cst_372 : f32 to vector<8x32xf32>
    %691 = arith.mulf %690, %689 : vector<8x32xf32>
    %692 = vector.extract_strided_slice %675 {offsets = [0, 64], sizes = [8, 32], strides = [1, 1]} : vector<8x128xf32> to vector<8x32xf32>
    %693 = math.tanh %692 : vector<8x32xf32>
    %694 = vector.extract_strided_slice %675 {offsets = [0, 96], sizes = [8, 32], strides = [1, 1]} : vector<8x128xf32> to vector<8x32xf32>
    %cst_373 = arith.constant 5.000000e-01 : f32
    %695 = vector.broadcast %cst_373 : f32 to vector<8x32xf32>
    %696 = arith.mulf %695, %694 : vector<8x32xf32>
    %697 = math.tanh %696 : vector<8x32xf32>
    %cst_374 = arith.constant 1.000000e+00 : f32
    %698 = vector.broadcast %cst_374 : f32 to vector<8x32xf32>
    %699 = arith.addf %697, %698 : vector<8x32xf32>
    %cst_375 = arith.constant 5.000000e-01 : f32
    %700 = vector.broadcast %cst_375 : f32 to vector<8x32xf32>
    %701 = arith.mulf %700, %699 : vector<8x32xf32>
    %702 = arith.mulf %691, %673 : vector<8x32xf32>
    %703 = arith.mulf %683, %693 : vector<8x32xf32>
    %704 = arith.addf %702, %703 : vector<8x32xf32>
    %705 = math.tanh %704 : vector<8x32xf32>
    %706 = arith.mulf %701, %705 : vector<8x32xf32>
    %c2_i32_376 = arith.constant 2 : i32
    %707 = vector.broadcast %c2_i32_376 : i32 to vector<8x1xi32>
    %708 = arith.cmpi sgt, %41, %707 : vector<8x1xi32>
    %c0_377 = arith.constant 0 : index
    %c0_378 = arith.constant 0 : index
    %709 = vector.load %arg7[%c0_377, %c0_378] : memref<8x32xf32, #tpu.memory_space<vmem>>, vector<8x32xf32>
    %710 = vector.shape_cast %708 : vector<8x1xi1> to vector<8x1xi1>
    %711 = vector.broadcast %710 : vector<8x1xi1> to vector<8x32xi1>
    %712 = arith.select %711, %706, %709 : vector<8x32xi1>, vector<8x32xf32>
    %c0_379 = arith.constant 0 : index
    %c0_380 = arith.constant 0 : index
    %713 = vector.load %arg7[%c0_379, %c0_380] : memref<8x32xf32, #tpu.memory_space<vmem>>, vector<8x32xf32>
    tpu.vector_store %arg7[%c0_379, %c0_380], %712 {strides = array<i32>} : memref<8x32xf32, #tpu.memory_space<vmem>>, vector<8x32xf32>,
    %c0_381 = arith.constant 0 : index
    %c0_382 = arith.constant 0 : index
    %714 = vector.load %arg8[%c0_381, %c0_382] : memref<8x32xf32, #tpu.memory_space<vmem>>, vector<8x32xf32>
    %715 = vector.shape_cast %708 : vector<8x1xi1> to vector<8x1xi1>
    %716 = vector.broadcast %715 : vector<8x1xi1> to vector<8x32xi1>
    %717 = arith.select %716, %704, %714 : vector<8x32xi1>, vector<8x32xf32>
    %c0_383 = arith.constant 0 : index
    %c0_384 = arith.constant 0 : index
    %718 = vector.load %arg8[%c0_383, %c0_384] : memref<8x32xf32, #tpu.memory_space<vmem>>, vector<8x32xf32>
    tpu.vector_store %arg8[%c0_383, %c0_384], %717 {strides = array<i32>} : memref<8x32xf32, #tpu.memory_space<vmem>>, vector<8x32xf32>,
    %cst_385 = arith.constant 0.000000e+00 : f32
    %719 = vector.shape_cast %708 : vector<8x1xi1> to vector<8x1xi1>
    %720 = vector.broadcast %719 : vector<8x1xi1> to vector<8x32xi1>
    %721 = vector.broadcast %cst_385 : f32 to vector<8x32xf32>
    %722 = arith.select %720, %706, %721 : vector<8x32xi1>, vector<8x32xf32>
    %c2_386 = arith.constant 2 : index
    %c0_387 = arith.constant 0 : index
    %c32_388 = arith.constant 32 : index
    %723 = vector.load %arg4[%c2_386, %c0_387, %c32_388] : memref<8x8x64xf32, #tpu.memory_space<vmem>>, vector<1x8x32xf32>
    %724 = vector.shape_cast %723 : vector<1x8x32xf32> to vector<8x32xf32>
    %725 = vector.shape_cast %722 : vector<8x32xf32> to vector<1x8x32xf32>
    tpu.vector_store %arg4[%c2_386, %c0_387, %c32_388], %725 {strides = array<i32>} : memref<8x8x64xf32, #tpu.memory_space<vmem>>, vector<1x8x32xf32>,
    %c0_389 = arith.constant 0 : index
    %c6_390 = arith.constant 6 : index
    %c0_391 = arith.constant 0 : index
    %c0_392 = arith.constant 0 : index
    %726 = vector.load %arg2[%c0_389, %c6_390, %c0_391, %c0_392] : memref<2x8x8x128xf32, #tpu.memory_space<vmem>>, vector<1x1x8x128xf32>
    %727 = vector.shape_cast %726 : vector<1x1x8x128xf32> to vector<8x128xf32>
    %c0_393 = arith.constant 0 : index
    %c0_394 = arith.constant 0 : index
    %728 = vector.load %arg5[%c0_393, %c0_394] : memref<8x32xf32, #tpu.memory_space<vmem>>, vector<8x32xf32>
    %c0_395 = arith.constant 0 : index
    %c0_396 = arith.constant 0 : index
    %729 = vector.load %arg6[%c0_395, %c0_396] : memref<8x32xf32, #tpu.memory_space<vmem>>, vector<8x32xf32>
    %cst_397 = arith.constant dense<0.000000e+00> : vector<8x128xf32>
    %730 = tpu.matmul %728, %51, %cst_397 {dimension_numbers = #tpu.dot_dimension_numbers<[1], [0], [0], [1], [0, 0, 1, 1], [], []>} : vector<8x32xf32>, vector<32x128xf32>, vector<8x128xf32> -> vector<8x128xf32>
    %731 = arith.addf %727, %730 : vector<8x128xf32>
    %732 = vector.extract_strided_slice %731 {offsets = [0, 0], sizes = [8, 32], strides = [1, 1]} : vector<8x128xf32> to vector<8x32xf32>
    %cst_398 = arith.constant 5.000000e-01 : f32
    %733 = vector.broadcast %cst_398 : f32 to vector<8x32xf32>
    %734 = arith.mulf %733, %732 : vector<8x32xf32>
    %735 = math.tanh %734 : vector<8x32xf32>
    %cst_399 = arith.constant 1.000000e+00 : f32
    %736 = vector.broadcast %cst_399 : f32 to vector<8x32xf32>
    %737 = arith.addf %735, %736 : vector<8x32xf32>
    %cst_400 = arith.constant 5.000000e-01 : f32
    %738 = vector.broadcast %cst_400 : f32 to vector<8x32xf32>
    %739 = arith.mulf %738, %737 : vector<8x32xf32>
    %740 = vector.extract_strided_slice %731 {offsets = [0, 32], sizes = [8, 32], strides = [1, 1]} : vector<8x128xf32> to vector<8x32xf32>
    %cst_401 = arith.constant 5.000000e-01 : f32
    %741 = vector.broadcast %cst_401 : f32 to vector<8x32xf32>
    %742 = arith.mulf %741, %740 : vector<8x32xf32>
    %743 = math.tanh %742 : vector<8x32xf32>
    %cst_402 = arith.constant 1.000000e+00 : f32
    %744 = vector.broadcast %cst_402 : f32 to vector<8x32xf32>
    %745 = arith.addf %743, %744 : vector<8x32xf32>
    %cst_403 = arith.constant 5.000000e-01 : f32
    %746 = vector.broadcast %cst_403 : f32 to vector<8x32xf32>
    %747 = arith.mulf %746, %745 : vector<8x32xf32>
    %748 = vector.extract_strided_slice %731 {offsets = [0, 64], sizes = [8, 32], strides = [1, 1]} : vector<8x128xf32> to vector<8x32xf32>
    %749 = math.tanh %748 : vector<8x32xf32>
    %750 = vector.extract_strided_slice %731 {offsets = [0, 96], sizes = [8, 32], strides = [1, 1]} : vector<8x128xf32> to vector<8x32xf32>
    %cst_404 = arith.constant 5.000000e-01 : f32
    %751 = vector.broadcast %cst_404 : f32 to vector<8x32xf32>
    %752 = arith.mulf %751, %750 : vector<8x32xf32>
    %753 = math.tanh %752 : vector<8x32xf32>
    %cst_405 = arith.constant 1.000000e+00 : f32
    %754 = vector.broadcast %cst_405 : f32 to vector<8x32xf32>
    %755 = arith.addf %753, %754 : vector<8x32xf32>
    %cst_406 = arith.constant 5.000000e-01 : f32
    %756 = vector.broadcast %cst_406 : f32 to vector<8x32xf32>
    %757 = arith.mulf %756, %755 : vector<8x32xf32>
    %758 = arith.mulf %747, %729 : vector<8x32xf32>
    %759 = arith.mulf %739, %749 : vector<8x32xf32>
    %760 = arith.addf %758, %759 : vector<8x32xf32>
    %761 = math.tanh %760 : vector<8x32xf32>
    %762 = arith.mulf %757, %761 : vector<8x32xf32>
    %c6_i32_407 = arith.constant 6 : i32
    %763 = vector.broadcast %c6_i32_407 : i32 to vector<8x1xi32>
    %764 = arith.cmpi sgt, %41, %763 : vector<8x1xi32>
    %c0_408 = arith.constant 0 : index
    %c0_409 = arith.constant 0 : index
    %765 = vector.load %arg5[%c0_408, %c0_409] : memref<8x32xf32, #tpu.memory_space<vmem>>, vector<8x32xf32>
    %766 = vector.shape_cast %764 : vector<8x1xi1> to vector<8x1xi1>
    %767 = vector.broadcast %766 : vector<8x1xi1> to vector<8x32xi1>
    %768 = arith.select %767, %762, %765 : vector<8x32xi1>, vector<8x32xf32>
    %c0_410 = arith.constant 0 : index
    %c0_411 = arith.constant 0 : index
    %769 = vector.load %arg5[%c0_410, %c0_411] : memref<8x32xf32, #tpu.memory_space<vmem>>, vector<8x32xf32>
    tpu.vector_store %arg5[%c0_410, %c0_411], %768 {strides = array<i32>} : memref<8x32xf32, #tpu.memory_space<vmem>>, vector<8x32xf32>,
    %c0_412 = arith.constant 0 : index
    %c0_413 = arith.constant 0 : index
    %770 = vector.load %arg6[%c0_412, %c0_413] : memref<8x32xf32, #tpu.memory_space<vmem>>, vector<8x32xf32>
    %771 = vector.shape_cast %764 : vector<8x1xi1> to vector<8x1xi1>
    %772 = vector.broadcast %771 : vector<8x1xi1> to vector<8x32xi1>
    %773 = arith.select %772, %760, %770 : vector<8x32xi1>, vector<8x32xf32>
    %c0_414 = arith.constant 0 : index
    %c0_415 = arith.constant 0 : index
    %774 = vector.load %arg6[%c0_414, %c0_415] : memref<8x32xf32, #tpu.memory_space<vmem>>, vector<8x32xf32>
    tpu.vector_store %arg6[%c0_414, %c0_415], %773 {strides = array<i32>} : memref<8x32xf32, #tpu.memory_space<vmem>>, vector<8x32xf32>,
    %cst_416 = arith.constant 0.000000e+00 : f32
    %775 = vector.shape_cast %764 : vector<8x1xi1> to vector<8x1xi1>
    %776 = vector.broadcast %775 : vector<8x1xi1> to vector<8x32xi1>
    %777 = vector.broadcast %cst_416 : f32 to vector<8x32xf32>
    %778 = arith.select %776, %762, %777 : vector<8x32xi1>, vector<8x32xf32>
    %c6_417 = arith.constant 6 : index
    %c0_418 = arith.constant 0 : index
    %c0_419 = arith.constant 0 : index
    %779 = vector.load %arg4[%c6_417, %c0_418, %c0_419] : memref<8x8x64xf32, #tpu.memory_space<vmem>>, vector<1x8x32xf32>
    %780 = vector.shape_cast %779 : vector<1x8x32xf32> to vector<8x32xf32>
    %781 = vector.shape_cast %778 : vector<8x32xf32> to vector<1x8x32xf32>
    tpu.vector_store %arg4[%c6_417, %c0_418, %c0_419], %781 {strides = array<i32>} : memref<8x8x64xf32, #tpu.memory_space<vmem>>, vector<1x8x32xf32>,
    %c1_420 = arith.constant 1 : index
    %c1_421 = arith.constant 1 : index
    %c0_422 = arith.constant 0 : index
    %c0_423 = arith.constant 0 : index
    %782 = vector.load %arg2[%c1_420, %c1_421, %c0_422, %c0_423] : memref<2x8x8x128xf32, #tpu.memory_space<vmem>>, vector<1x1x8x128xf32>
    %783 = vector.shape_cast %782 : vector<1x1x8x128xf32> to vector<8x128xf32>
    %c0_424 = arith.constant 0 : index
    %c0_425 = arith.constant 0 : index
    %784 = vector.load %arg7[%c0_424, %c0_425] : memref<8x32xf32, #tpu.memory_space<vmem>>, vector<8x32xf32>
    %c0_426 = arith.constant 0 : index
    %c0_427 = arith.constant 0 : index
    %785 = vector.load %arg8[%c0_426, %c0_427] : memref<8x32xf32, #tpu.memory_space<vmem>>, vector<8x32xf32>
    %cst_428 = arith.constant dense<0.000000e+00> : vector<8x128xf32>
    %786 = tpu.matmul %784, %53, %cst_428 {dimension_numbers = #tpu.dot_dimension_numbers<[1], [0], [0], [1], [0, 0, 1, 1], [], []>} : vector<8x32xf32>, vector<32x128xf32>, vector<8x128xf32> -> vector<8x128xf32>
    %787 = arith.addf %783, %786 : vector<8x128xf32>
    %788 = vector.extract_strided_slice %787 {offsets = [0, 0], sizes = [8, 32], strides = [1, 1]} : vector<8x128xf32> to vector<8x32xf32>
    %cst_429 = arith.constant 5.000000e-01 : f32
    %789 = vector.broadcast %cst_429 : f32 to vector<8x32xf32>
    %790 = arith.mulf %789, %788 : vector<8x32xf32>
    %791 = math.tanh %790 : vector<8x32xf32>
    %cst_430 = arith.constant 1.000000e+00 : f32
    %792 = vector.broadcast %cst_430 : f32 to vector<8x32xf32>
    %793 = arith.addf %791, %792 : vector<8x32xf32>
    %cst_431 = arith.constant 5.000000e-01 : f32
    %794 = vector.broadcast %cst_431 : f32 to vector<8x32xf32>
    %795 = arith.mulf %794, %793 : vector<8x32xf32>
    %796 = vector.extract_strided_slice %787 {offsets = [0, 32], sizes = [8, 32], strides = [1, 1]} : vector<8x128xf32> to vector<8x32xf32>
    %cst_432 = arith.constant 5.000000e-01 : f32
    %797 = vector.broadcast %cst_432 : f32 to vector<8x32xf32>
    %798 = arith.mulf %797, %796 : vector<8x32xf32>
    %799 = math.tanh %798 : vector<8x32xf32>
    %cst_433 = arith.constant 1.000000e+00 : f32
    %800 = vector.broadcast %cst_433 : f32 to vector<8x32xf32>
    %801 = arith.addf %799, %800 : vector<8x32xf32>
    %cst_434 = arith.constant 5.000000e-01 : f32
    %802 = vector.broadcast %cst_434 : f32 to vector<8x32xf32>
    %803 = arith.mulf %802, %801 : vector<8x32xf32>
    %804 = vector.extract_strided_slice %787 {offsets = [0, 64], sizes = [8, 32], strides = [1, 1]} : vector<8x128xf32> to vector<8x32xf32>
    %805 = math.tanh %804 : vector<8x32xf32>
    %806 = vector.extract_strided_slice %787 {offsets = [0, 96], sizes = [8, 32], strides = [1, 1]} : vector<8x128xf32> to vector<8x32xf32>
    %cst_435 = arith.constant 5.000000e-01 : f32
    %807 = vector.broadcast %cst_435 : f32 to vector<8x32xf32>
    %808 = arith.mulf %807, %806 : vector<8x32xf32>
    %809 = math.tanh %808 : vector<8x32xf32>
    %cst_436 = arith.constant 1.000000e+00 : f32
    %810 = vector.broadcast %cst_436 : f32 to vector<8x32xf32>
    %811 = arith.addf %809, %810 : vector<8x32xf32>
    %cst_437 = arith.constant 5.000000e-01 : f32
    %812 = vector.broadcast %cst_437 : f32 to vector<8x32xf32>
    %813 = arith.mulf %812, %811 : vector<8x32xf32>
    %814 = arith.mulf %803, %785 : vector<8x32xf32>
    %815 = arith.mulf %795, %805 : vector<8x32xf32>
    %816 = arith.addf %814, %815 : vector<8x32xf32>
    %817 = math.tanh %816 : vector<8x32xf32>
    %818 = arith.mulf %813, %817 : vector<8x32xf32>
    %c1_i32_438 = arith.constant 1 : i32
    %819 = vector.broadcast %c1_i32_438 : i32 to vector<8x1xi32>
    %820 = arith.cmpi sgt, %41, %819 : vector<8x1xi32>
    %c0_439 = arith.constant 0 : index
    %c0_440 = arith.constant 0 : index
    %821 = vector.load %arg7[%c0_439, %c0_440] : memref<8x32xf32, #tpu.memory_space<vmem>>, vector<8x32xf32>
    %822 = vector.shape_cast %820 : vector<8x1xi1> to vector<8x1xi1>
    %823 = vector.broadcast %822 : vector<8x1xi1> to vector<8x32xi1>
    %824 = arith.select %823, %818, %821 : vector<8x32xi1>, vector<8x32xf32>
    %c0_441 = arith.constant 0 : index
    %c0_442 = arith.constant 0 : index
    %825 = vector.load %arg7[%c0_441, %c0_442] : memref<8x32xf32, #tpu.memory_space<vmem>>, vector<8x32xf32>
    tpu.vector_store %arg7[%c0_441, %c0_442], %824 {strides = array<i32>} : memref<8x32xf32, #tpu.memory_space<vmem>>, vector<8x32xf32>,
    %c0_443 = arith.constant 0 : index
    %c0_444 = arith.constant 0 : index
    %826 = vector.load %arg8[%c0_443, %c0_444] : memref<8x32xf32, #tpu.memory_space<vmem>>, vector<8x32xf32>
    %827 = vector.shape_cast %820 : vector<8x1xi1> to vector<8x1xi1>
    %828 = vector.broadcast %827 : vector<8x1xi1> to vector<8x32xi1>
    %829 = arith.select %828, %816, %826 : vector<8x32xi1>, vector<8x32xf32>
    %c0_445 = arith.constant 0 : index
    %c0_446 = arith.constant 0 : index
    %830 = vector.load %arg8[%c0_445, %c0_446] : memref<8x32xf32, #tpu.memory_space<vmem>>, vector<8x32xf32>
    tpu.vector_store %arg8[%c0_445, %c0_446], %829 {strides = array<i32>} : memref<8x32xf32, #tpu.memory_space<vmem>>, vector<8x32xf32>,
    %cst_447 = arith.constant 0.000000e+00 : f32
    %831 = vector.shape_cast %820 : vector<8x1xi1> to vector<8x1xi1>
    %832 = vector.broadcast %831 : vector<8x1xi1> to vector<8x32xi1>
    %833 = vector.broadcast %cst_447 : f32 to vector<8x32xf32>
    %834 = arith.select %832, %818, %833 : vector<8x32xi1>, vector<8x32xf32>
    %c1_448 = arith.constant 1 : index
    %c0_449 = arith.constant 0 : index
    %c32_450 = arith.constant 32 : index
    %835 = vector.load %arg4[%c1_448, %c0_449, %c32_450] : memref<8x8x64xf32, #tpu.memory_space<vmem>>, vector<1x8x32xf32>
    %836 = vector.shape_cast %835 : vector<1x8x32xf32> to vector<8x32xf32>
    %837 = vector.shape_cast %834 : vector<8x32xf32> to vector<1x8x32xf32>
    tpu.vector_store %arg4[%c1_448, %c0_449, %c32_450], %837 {strides = array<i32>} : memref<8x8x64xf32, #tpu.memory_space<vmem>>, vector<1x8x32xf32>,
    %c0_451 = arith.constant 0 : index
    %c7_452 = arith.constant 7 : index
    %c0_453 = arith.constant 0 : index
    %c0_454 = arith.constant 0 : index
    %838 = vector.load %arg2[%c0_451, %c7_452, %c0_453, %c0_454] : memref<2x8x8x128xf32, #tpu.memory_space<vmem>>, vector<1x1x8x128xf32>
    %839 = vector.shape_cast %838 : vector<1x1x8x128xf32> to vector<8x128xf32>
    %c0_455 = arith.constant 0 : index
    %c0_456 = arith.constant 0 : index
    %840 = vector.load %arg5[%c0_455, %c0_456] : memref<8x32xf32, #tpu.memory_space<vmem>>, vector<8x32xf32>
    %c0_457 = arith.constant 0 : index
    %c0_458 = arith.constant 0 : index
    %841 = vector.load %arg6[%c0_457, %c0_458] : memref<8x32xf32, #tpu.memory_space<vmem>>, vector<8x32xf32>
    %cst_459 = arith.constant dense<0.000000e+00> : vector<8x128xf32>
    %842 = tpu.matmul %840, %51, %cst_459 {dimension_numbers = #tpu.dot_dimension_numbers<[1], [0], [0], [1], [0, 0, 1, 1], [], []>} : vector<8x32xf32>, vector<32x128xf32>, vector<8x128xf32> -> vector<8x128xf32>
    %843 = arith.addf %839, %842 : vector<8x128xf32>
    %844 = vector.extract_strided_slice %843 {offsets = [0, 0], sizes = [8, 32], strides = [1, 1]} : vector<8x128xf32> to vector<8x32xf32>
    %cst_460 = arith.constant 5.000000e-01 : f32
    %845 = vector.broadcast %cst_460 : f32 to vector<8x32xf32>
    %846 = arith.mulf %845, %844 : vector<8x32xf32>
    %847 = math.tanh %846 : vector<8x32xf32>
    %cst_461 = arith.constant 1.000000e+00 : f32
    %848 = vector.broadcast %cst_461 : f32 to vector<8x32xf32>
    %849 = arith.addf %847, %848 : vector<8x32xf32>
    %cst_462 = arith.constant 5.000000e-01 : f32
    %850 = vector.broadcast %cst_462 : f32 to vector<8x32xf32>
    %851 = arith.mulf %850, %849 : vector<8x32xf32>
    %852 = vector.extract_strided_slice %843 {offsets = [0, 32], sizes = [8, 32], strides = [1, 1]} : vector<8x128xf32> to vector<8x32xf32>
    %cst_463 = arith.constant 5.000000e-01 : f32
    %853 = vector.broadcast %cst_463 : f32 to vector<8x32xf32>
    %854 = arith.mulf %853, %852 : vector<8x32xf32>
    %855 = math.tanh %854 : vector<8x32xf32>
    %cst_464 = arith.constant 1.000000e+00 : f32
    %856 = vector.broadcast %cst_464 : f32 to vector<8x32xf32>
    %857 = arith.addf %855, %856 : vector<8x32xf32>
    %cst_465 = arith.constant 5.000000e-01 : f32
    %858 = vector.broadcast %cst_465 : f32 to vector<8x32xf32>
    %859 = arith.mulf %858, %857 : vector<8x32xf32>
    %860 = vector.extract_strided_slice %843 {offsets = [0, 64], sizes = [8, 32], strides = [1, 1]} : vector<8x128xf32> to vector<8x32xf32>
    %861 = math.tanh %860 : vector<8x32xf32>
    %862 = vector.extract_strided_slice %843 {offsets = [0, 96], sizes = [8, 32], strides = [1, 1]} : vector<8x128xf32> to vector<8x32xf32>
    %cst_466 = arith.constant 5.000000e-01 : f32
    %863 = vector.broadcast %cst_466 : f32 to vector<8x32xf32>
    %864 = arith.mulf %863, %862 : vector<8x32xf32>
    %865 = math.tanh %864 : vector<8x32xf32>
    %cst_467 = arith.constant 1.000000e+00 : f32
    %866 = vector.broadcast %cst_467 : f32 to vector<8x32xf32>
    %867 = arith.addf %865, %866 : vector<8x32xf32>
    %cst_468 = arith.constant 5.000000e-01 : f32
    %868 = vector.broadcast %cst_468 : f32 to vector<8x32xf32>
    %869 = arith.mulf %868, %867 : vector<8x32xf32>
    %870 = arith.mulf %859, %841 : vector<8x32xf32>
    %871 = arith.mulf %851, %861 : vector<8x32xf32>
    %872 = arith.addf %870, %871 : vector<8x32xf32>
    %873 = math.tanh %872 : vector<8x32xf32>
    %874 = arith.mulf %869, %873 : vector<8x32xf32>
    %c7_i32_469 = arith.constant 7 : i32
    %875 = vector.broadcast %c7_i32_469 : i32 to vector<8x1xi32>
    %876 = arith.cmpi sgt, %41, %875 : vector<8x1xi32>
    %c0_470 = arith.constant 0 : index
    %c0_471 = arith.constant 0 : index
    %877 = vector.load %arg5[%c0_470, %c0_471] : memref<8x32xf32, #tpu.memory_space<vmem>>, vector<8x32xf32>
    %878 = vector.shape_cast %876 : vector<8x1xi1> to vector<8x1xi1>
    %879 = vector.broadcast %878 : vector<8x1xi1> to vector<8x32xi1>
    %880 = arith.select %879, %874, %877 : vector<8x32xi1>, vector<8x32xf32>
    %c0_472 = arith.constant 0 : index
    %c0_473 = arith.constant 0 : index
    %881 = vector.load %arg5[%c0_472, %c0_473] : memref<8x32xf32, #tpu.memory_space<vmem>>, vector<8x32xf32>
    tpu.vector_store %arg5[%c0_472, %c0_473], %880 {strides = array<i32>} : memref<8x32xf32, #tpu.memory_space<vmem>>, vector<8x32xf32>,
    %c0_474 = arith.constant 0 : index
    %c0_475 = arith.constant 0 : index
    %882 = vector.load %arg6[%c0_474, %c0_475] : memref<8x32xf32, #tpu.memory_space<vmem>>, vector<8x32xf32>
    %883 = vector.shape_cast %876 : vector<8x1xi1> to vector<8x1xi1>
    %884 = vector.broadcast %883 : vector<8x1xi1> to vector<8x32xi1>
    %885 = arith.select %884, %872, %882 : vector<8x32xi1>, vector<8x32xf32>
    %c0_476 = arith.constant 0 : index
    %c0_477 = arith.constant 0 : index
    %886 = vector.load %arg6[%c0_476, %c0_477] : memref<8x32xf32, #tpu.memory_space<vmem>>, vector<8x32xf32>
    tpu.vector_store %arg6[%c0_476, %c0_477], %885 {strides = array<i32>} : memref<8x32xf32, #tpu.memory_space<vmem>>, vector<8x32xf32>,
    %cst_478 = arith.constant 0.000000e+00 : f32
    %887 = vector.shape_cast %876 : vector<8x1xi1> to vector<8x1xi1>
    %888 = vector.broadcast %887 : vector<8x1xi1> to vector<8x32xi1>
    %889 = vector.broadcast %cst_478 : f32 to vector<8x32xf32>
    %890 = arith.select %888, %874, %889 : vector<8x32xi1>, vector<8x32xf32>
    %c7_479 = arith.constant 7 : index
    %c0_480 = arith.constant 0 : index
    %c0_481 = arith.constant 0 : index
    %891 = vector.load %arg4[%c7_479, %c0_480, %c0_481] : memref<8x8x64xf32, #tpu.memory_space<vmem>>, vector<1x8x32xf32>
    %892 = vector.shape_cast %891 : vector<1x8x32xf32> to vector<8x32xf32>
    %893 = vector.shape_cast %890 : vector<8x32xf32> to vector<1x8x32xf32>
    tpu.vector_store %arg4[%c7_479, %c0_480, %c0_481], %893 {strides = array<i32>} : memref<8x8x64xf32, #tpu.memory_space<vmem>>, vector<1x8x32xf32>,
    %c1_482 = arith.constant 1 : index
    %c0_483 = arith.constant 0 : index
    %c0_484 = arith.constant 0 : index
    %c0_485 = arith.constant 0 : index
    %894 = vector.load %arg2[%c1_482, %c0_483, %c0_484, %c0_485] : memref<2x8x8x128xf32, #tpu.memory_space<vmem>>, vector<1x1x8x128xf32>
    %895 = vector.shape_cast %894 : vector<1x1x8x128xf32> to vector<8x128xf32>
    %c0_486 = arith.constant 0 : index
    %c0_487 = arith.constant 0 : index
    %896 = vector.load %arg7[%c0_486, %c0_487] : memref<8x32xf32, #tpu.memory_space<vmem>>, vector<8x32xf32>
    %c0_488 = arith.constant 0 : index
    %c0_489 = arith.constant 0 : index
    %897 = vector.load %arg8[%c0_488, %c0_489] : memref<8x32xf32, #tpu.memory_space<vmem>>, vector<8x32xf32>
    %cst_490 = arith.constant dense<0.000000e+00> : vector<8x128xf32>
    %898 = tpu.matmul %896, %53, %cst_490 {dimension_numbers = #tpu.dot_dimension_numbers<[1], [0], [0], [1], [0, 0, 1, 1], [], []>} : vector<8x32xf32>, vector<32x128xf32>, vector<8x128xf32> -> vector<8x128xf32>
    %899 = arith.addf %895, %898 : vector<8x128xf32>
    %900 = vector.extract_strided_slice %899 {offsets = [0, 0], sizes = [8, 32], strides = [1, 1]} : vector<8x128xf32> to vector<8x32xf32>
    %cst_491 = arith.constant 5.000000e-01 : f32
    %901 = vector.broadcast %cst_491 : f32 to vector<8x32xf32>
    %902 = arith.mulf %901, %900 : vector<8x32xf32>
    %903 = math.tanh %902 : vector<8x32xf32>
    %cst_492 = arith.constant 1.000000e+00 : f32
    %904 = vector.broadcast %cst_492 : f32 to vector<8x32xf32>
    %905 = arith.addf %903, %904 : vector<8x32xf32>
    %cst_493 = arith.constant 5.000000e-01 : f32
    %906 = vector.broadcast %cst_493 : f32 to vector<8x32xf32>
    %907 = arith.mulf %906, %905 : vector<8x32xf32>
    %908 = vector.extract_strided_slice %899 {offsets = [0, 32], sizes = [8, 32], strides = [1, 1]} : vector<8x128xf32> to vector<8x32xf32>
    %cst_494 = arith.constant 5.000000e-01 : f32
    %909 = vector.broadcast %cst_494 : f32 to vector<8x32xf32>
    %910 = arith.mulf %909, %908 : vector<8x32xf32>
    %911 = math.tanh %910 : vector<8x32xf32>
    %cst_495 = arith.constant 1.000000e+00 : f32
    %912 = vector.broadcast %cst_495 : f32 to vector<8x32xf32>
    %913 = arith.addf %911, %912 : vector<8x32xf32>
    %cst_496 = arith.constant 5.000000e-01 : f32
    %914 = vector.broadcast %cst_496 : f32 to vector<8x32xf32>
    %915 = arith.mulf %914, %913 : vector<8x32xf32>
    %916 = vector.extract_strided_slice %899 {offsets = [0, 64], sizes = [8, 32], strides = [1, 1]} : vector<8x128xf32> to vector<8x32xf32>
    %917 = math.tanh %916 : vector<8x32xf32>
    %918 = vector.extract_strided_slice %899 {offsets = [0, 96], sizes = [8, 32], strides = [1, 1]} : vector<8x128xf32> to vector<8x32xf32>
    %cst_497 = arith.constant 5.000000e-01 : f32
    %919 = vector.broadcast %cst_497 : f32 to vector<8x32xf32>
    %920 = arith.mulf %919, %918 : vector<8x32xf32>
    %921 = math.tanh %920 : vector<8x32xf32>
    %cst_498 = arith.constant 1.000000e+00 : f32
    %922 = vector.broadcast %cst_498 : f32 to vector<8x32xf32>
    %923 = arith.addf %921, %922 : vector<8x32xf32>
    %cst_499 = arith.constant 5.000000e-01 : f32
    %924 = vector.broadcast %cst_499 : f32 to vector<8x32xf32>
    %925 = arith.mulf %924, %923 : vector<8x32xf32>
    %926 = arith.mulf %915, %897 : vector<8x32xf32>
    %927 = arith.mulf %907, %917 : vector<8x32xf32>
    %928 = arith.addf %926, %927 : vector<8x32xf32>
    %929 = math.tanh %928 : vector<8x32xf32>
    %930 = arith.mulf %925, %929 : vector<8x32xf32>
    %c0_i32_500 = arith.constant 0 : i32
    %931 = vector.broadcast %c0_i32_500 : i32 to vector<8x1xi32>
    %932 = arith.cmpi sgt, %41, %931 : vector<8x1xi32>
    %c0_501 = arith.constant 0 : index
    %c0_502 = arith.constant 0 : index
    %933 = vector.load %arg7[%c0_501, %c0_502] : memref<8x32xf32, #tpu.memory_space<vmem>>, vector<8x32xf32>
    %934 = vector.shape_cast %932 : vector<8x1xi1> to vector<8x1xi1>
    %935 = vector.broadcast %934 : vector<8x1xi1> to vector<8x32xi1>
    %936 = arith.select %935, %930, %933 : vector<8x32xi1>, vector<8x32xf32>
    %c0_503 = arith.constant 0 : index
    %c0_504 = arith.constant 0 : index
    %937 = vector.load %arg7[%c0_503, %c0_504] : memref<8x32xf32, #tpu.memory_space<vmem>>, vector<8x32xf32>
    tpu.vector_store %arg7[%c0_503, %c0_504], %936 {strides = array<i32>} : memref<8x32xf32, #tpu.memory_space<vmem>>, vector<8x32xf32>,
    %c0_505 = arith.constant 0 : index
    %c0_506 = arith.constant 0 : index
    %938 = vector.load %arg8[%c0_505, %c0_506] : memref<8x32xf32, #tpu.memory_space<vmem>>, vector<8x32xf32>
    %939 = vector.shape_cast %932 : vector<8x1xi1> to vector<8x1xi1>
    %940 = vector.broadcast %939 : vector<8x1xi1> to vector<8x32xi1>
    %941 = arith.select %940, %928, %938 : vector<8x32xi1>, vector<8x32xf32>
    %c0_507 = arith.constant 0 : index
    %c0_508 = arith.constant 0 : index
    %942 = vector.load %arg8[%c0_507, %c0_508] : memref<8x32xf32, #tpu.memory_space<vmem>>, vector<8x32xf32>
    tpu.vector_store %arg8[%c0_507, %c0_508], %941 {strides = array<i32>} : memref<8x32xf32, #tpu.memory_space<vmem>>, vector<8x32xf32>,
    %cst_509 = arith.constant 0.000000e+00 : f32
    %943 = vector.shape_cast %932 : vector<8x1xi1> to vector<8x1xi1>
    %944 = vector.broadcast %943 : vector<8x1xi1> to vector<8x32xi1>
    %945 = vector.broadcast %cst_509 : f32 to vector<8x32xf32>
    %946 = arith.select %944, %930, %945 : vector<8x32xi1>, vector<8x32xf32>
    %c0_510 = arith.constant 0 : index
    %c0_511 = arith.constant 0 : index
    %c32_512 = arith.constant 32 : index
    %947 = vector.load %arg4[%c0_510, %c0_511, %c32_512] : memref<8x8x64xf32, #tpu.memory_space<vmem>>, vector<1x8x32xf32>
    %948 = vector.shape_cast %947 : vector<1x8x32xf32> to vector<8x32xf32>
    %949 = vector.shape_cast %946 : vector<8x32xf32> to vector<1x8x32xf32>
    tpu.vector_store %arg4[%c0_510, %c0_511, %c32_512], %949 {strides = array<i32>} : memref<8x8x64xf32, #tpu.memory_space<vmem>>, vector<1x8x32xf32>,
    return
  }
  func.func @transform_0(%arg0: i32, %arg1: memref<8xi32, #tpu.memory_space<smem>>) -> (i32, i32, i32, i32) {
    %c0_i32 = arith.constant 0 : i32
    %c0_i32_0 = arith.constant 0 : i32
    %c0_i32_1 = arith.constant 0 : i32
    %c0_i32_2 = arith.constant 0 : i32
    %c0_i32_3 = arith.constant 0 : i32
    return %c0_i32, %c0_i32_0, %c0_i32_1, %c0_i32_2 : i32, i32, i32, i32
  }
  func.func @transform_1(%arg0: i32, %arg1: memref<8xi32, #tpu.memory_space<smem>>) -> (i32, i32, i32) {
    %c0_i32 = arith.constant 0 : i32
    %c0_i32_0 = arith.constant 0 : i32
    %c0_i32_1 = arith.constant 0 : i32
    %c0_i32_2 = arith.constant 0 : i32
    return %c0_i32, %c0_i32_0, %c0_i32_1 : i32, i32, i32
  }
  func.func @transform_2(%arg0: i32, %arg1: memref<8xi32, #tpu.memory_space<smem>>) -> (i32, i32, i32) {
    %c0_i32 = arith.constant 0 : i32
    %c0_i32_0 = arith.constant 0 : i32
    %c0_i32_1 = arith.constant 0 : i32
    %c0_i32_2 = arith.constant 0 : i32
    return %c0_i32, %c0_i32_0, %c0_i32_1 : i32, i32, i32
  }
}

</mosaic_0001>

<llo_original>
// kernel: sentence_encoder_forward.2
$region0: #{sentence_encoder_forward.2}
  #allocation0 [shape = 'u32[]', space=smem, size = 0x4, offset = 0x4, fixed_abs, tag = 'smem constant byte address 0x4 - core index']
  #allocation1 [shape = 'u32[144,128]{1,0:T(1,128)}', space=vmem, size = 0x12000, scoped, tag = 'internal scratch']
  #allocation2 [shape = 'f32[8,32]{1,0:T(8,128)}', space=vmem, size = 0x1000, scoped, tag = 'scratch operand']
  #allocation3 [shape = 'f32[8,32]{1,0:T(8,128)}', space=vmem, size = 0x1000, scoped, tag = 'scratch operand']
  #allocation4 [shape = 'f32[8,32]{1,0:T(8,128)}', space=vmem, size = 0x1000, scoped, tag = 'scratch operand']
  #allocation5 [shape = 'f32[8,32]{1,0:T(8,128)}', space=vmem, size = 0x1000, scoped, tag = 'scratch operand']
  #allocation6 [shape = 's32[1]{0}', space=sflag, size = 0x4, scoped, tag = 'scoped memory for sentence_encoder_forward.2']
  #allocation7 [shape = 'u8[512]{0}', space=smem, size = 0x200, scoped, tag = 'prefetched SMEM operand 0']
  %s0 = inlined_call_operand.vmem [shape: s32[8], index: 0, kind: input, shape index: {}]
  %s1 = inlined_call_operand.vmem [shape: f32[2,8,8,128], index: 1, kind: input, shape index: {}]
  %s2 = inlined_call_operand.vmem [shape: f32[2,32,128], index: 2, kind: input, shape index: {}]
  %s3 = inlined_call_operand.vmem [shape: f32[8,8,64], index: 3, kind: output, shape index: {}]
  %s4 = sld [smem:[#allocation0]]
  $region18: #{sentence_encoder_forward.2} parent=0
    _
  %s6 = ssub.s32 1, %s4
  %s7 = scalar_select 0, %s6, %s4
  %s8 = sshll.u32 %s0, 4
  %s9 = int_to_ptr.vmem [resolvable:$true] %s8
  %11 = dma.vmem_to_smem %s9, 16, [#allocation7], [#allocation6]
  %12 = dma.done [#allocation6], 16
  %13 = sfence
  // Predicated region
  $region2: #{sentence_encoder_forward.2} parent=0 // pred_check
    _
  $region3: #{sentence_encoder_forward.2} parent=0 // pred_check_branch
    %15 = sbr.rel (0) target = $region5
  $region4: #{sentence_encoder_forward.2} parent=0 // pred_region
    _
  $region5: #{sentence_encoder_forward.2} parent=0 // pred_fallthru
    _
  // Predicated region
  $region6: #{sentence_encoder_forward.2} parent=0 // pred_check
    _
  $region7: #{sentence_encoder_forward.2} parent=0 // pred_check_branch
    %17 = sbr.rel (0) target = $region9
  $region8: #{sentence_encoder_forward.2} parent=0 // pred_region
    _
  $region9: #{sentence_encoder_forward.2} parent=0 // pred_fallthru
    _
  %v18 = vlaneseq
  %v19 = vshrl.u32 %v18, 7
  %vm20 = vcmp.eq.s32.totalorder %v19, 0
  %s21 = sld [smem:[#allocation7]]
  %v22 = vstv %s21
  %v23 = vsel %vm20, %v22, 0
  %vm24 = vcmp.eq.s32.totalorder %v19, 1
  %s25 = sld [smem:[#allocation7 + $0x1]]
  %v26 = vstv %s25
  %v27 = vsel %vm24, %v26, %v23
  %vm28 = vcmp.eq.s32.totalorder %v19, 2
  %s29 = sld [smem:[#allocation7 + $0x2]]
  %v30 = vstv %s29
  %v31 = vsel %vm28, %v30, %v27
  %vm32 = vcmp.eq.s32.totalorder %v19, 3
  %s33 = sld [smem:[#allocation7 + $0x3]]
  %v34 = vstv %s33
  %v35 = vsel %vm32, %v34, %v31
  %vm36 = vcmp.eq.s32.totalorder %v19, 4
  %s37 = sld [smem:[#allocation7 + $0x4]]
  %v38 = vstv %s37
  %v39 = vsel %vm36, %v38, %v35
  %vm40 = vcmp.eq.s32.totalorder %v19, 5
  %s41 = sld [smem:[#allocation7 + $0x5]]
  %v42 = vstv %s41
  %v43 = vsel %vm40, %v42, %v39
  %vm44 = vcmp.eq.s32.totalorder %v19, 6
  %s45 = sld [smem:[#allocation7 + $0x6]]
  %v46 = vstv %s45
  %v47 = vsel %vm44, %v46, %v43
  %vm48 = vcmp.eq.s32.totalorder %v19, 7
  %s49 = sld [smem:[#allocation7 + $0x7]]
  %v50 = vstv %s49
  %v51 = vsel %vm48, %v50, %v47
  %vm52 = vcmask 261120
  %53 = vst.msk [vmem:[#allocation2] sm:$0xff] %vm52, 0.0
  %54 = vst.msk [vmem:[#allocation3] sm:$0xff] %vm52, 0.0
  %55 = vst.msk [vmem:[#allocation4] sm:$0xff] %vm52, 0.0
  %56 = vst.msk [vmem:[#allocation5] sm:$0xff] %vm52, 0.0
  %v57 = vld [vmem:[%s2] sm:$0xff]
  %v58 = vld [vmem:[%s2 + $0x8] sm:$0xff]
  %v59 = vld [vmem:[%s2 + $0x10] sm:$0xff]
  %v60 = vld [vmem:[%s2 + $0x18] sm:$0xff]
  %s61 = scalar_lea.vmem %s2, 32
  %v62 = vld [vmem:[%s61] sm:$0xff]
  %v63 = vld [vmem:[%s61 + $0x8] sm:$0xff]
  %v64 = vld [vmem:[%s61 + $0x10] sm:$0xff]
  %v65 = vld [vmem:[%s61 + $0x18] sm:$0xff]
  %v66 = vld [vmem:[%s1] sm:$0xff]
  %v67 = vld [vmem:[#allocation2] sm:$0xff]
  %v68 = vld [vmem:[#allocation3] sm:$0xff]
  %v70 = vsel %vm52, %v67, 0
  %72 = vmatprep.subr.mxu0 0.0
  %73 = vmatpush1.msra.mxu0 %v57
  %74 = vmatprep.subr.mxu0 0.0
  %75 = vmatpush1.msra.mxu0 %v58
  %76 = vmatprep.subr.mxu0 0.0
  %77 = vmatpush1.msra.mxu0 %v59
  %78 = vmatprep.subr.mxu0 0.0
  %79 = vmatpush1.msra.mxu0 %v60
  %80 = vmatprep.subr.mxu0 0.0
  %81 = vmatpush1.msra.mxu0 0.0
  %82 = vmatprep.subr.mxu0 0.0
  %83 = vmatpush1.msra.mxu0 0.0
  %84 = vmatprep.subr.mxu0 0.0
  %85 = vmatpush1.msra.mxu0 0.0
  %86 = vmatprep.subr.mxu0 0.0
  %87 = vmatpush1.msra.mxu0 0.0
  %88 = vmatprep.subr.mxu0 0.0
  %89 = vmatpush1.msra.mxu0 0.0
  %90 = vmatprep.subr.mxu0 0.0
  %91 = vmatpush1.msra.mxu0 0.0
  %92 = vmatprep.subr.mxu0 0.0
  %93 = vmatpush1.msra.mxu0 0.0
  %94 = vmatprep.subr.mxu0 0.0
  %95 = vmatpush1.msra.mxu0 0.0
  %96 = vmatprep.subr.mxu0 0.0
  %97 = vmatpush1.msra.mxu0 0.0
  %98 = vmatprep.subr.mxu0 0.0
  %99 = vmatpush1.msra.mxu0 0.0
  %100 = vmatprep.subr.mxu0 0.0
  %101 = vmatpush1.msra.mxu0 0.0
  %102 = vmatprep.subr.mxu0 0.0
  %103 = vmatpush1.msra.mxu0 0.0
  %104 = vmatprep.subr.mxu0 0.0
  %105 = vmatpush1.msra.mxu0 0.0
  %106 = vmatprep.subr.mxu0 0.0
  %107 = vmatpush1.msra.mxu0 0.0
  %108 = vmatprep.subr.mxu0 0.0
  %109 = vmatpush1.msra.mxu0 0.0
  %110 = vmatprep.subr.mxu0 0.0
  %111 = vmatpush1.msra.mxu0 0.0
  %112 = vmatprep.subr.mxu0 0.0
  %113 = vmatpush1.msra.mxu0 0.0
  %114 = vmatprep.subr.mxu0 0.0
  %115 = vmatpush1.msra.mxu0 0.0
  %116 = vmatprep.subr.mxu0 0.0
  %117 = vmatpush1.msra.mxu0 0.0
  %118 = vmatprep.subr.mxu0 0.0
  %119 = vmatpush1.msra.mxu0 0.0
  %120 = vmatprep.subr.mxu0 0.0
  %121 = vmatpush1.msra.mxu0 0.0
  %122 = vmatprep.subr.mxu0 0.0
  %123 = vmatpush1.msra.mxu0 0.0
  %124 = vmatprep.subr.mxu0 0.0
  %125 = vmatpush1.msra.mxu0 0.0
  %126 = vmatprep.subr.mxu0 0.0
  %127 = vmatpush1.msra.mxu0 0.0
  %128 = vmatprep.subr.mxu0 0.0
  %129 = vmatpush1.msra.mxu0 0.0
  %130 = vmatprep.subr.mxu0 0.0
  %131 = vmatpush1.msra.mxu0 0.0
  %132 = vmatprep.subr.mxu0 0.0
  %133 = vmatpush1.msra.mxu0 0.0
  %134 = vmatprep.subr.mxu0 0.0
  %135 = vmatpush1.msra.mxu0 0.0
  %136 = vmatprep.mubr.f32.mxu0 0.0
  %137 = vmatmul.mubr.f32.gmra.mrb[0].mxu0 %v70
  %v138 = vpop.f32.mrb[0].mxu0
  %v139 = vadd.f32 0.0, %v138
  %v140 = vpop.f32.mrb[0].mxu0
  %141 = vdwg.mxu0
  %v142 = vadd.f32 %v66, %v139
  %v143 = vmul.f32 %v142, 0.5
  %v144 = vtanh.pop %v143
  %v145 = vadd.f32 %v144, 1.0
  %v146 = vmul.f32 %v145, 0.5
  %v147 = vtanh.pop %v142
  %149 = vrot.lane.b32.xlu0 %v68, 32
  %v150 = vpop.permute.xlu0 %149
  %v152 = vmul.f32 %v146, %v150
  %154 = vrot.lane.b32.xlu0 %v147, 64
  %v155 = vpop.permute.xlu0 %154
  %v157 = vmul.f32 %v146, %v155
  %159 = vrot.lane.b32.xlu0 %v157, 32
  %v160 = vpop.permute.xlu0 %159
  %v162 = vadd.f32 %v152, %v160
  %v163 = vtanh.pop %v162
  %165 = vrot.lane.b32.xlu0 %v163, 64
  %v166 = vpop.permute.xlu0 %165
  %v168 = vmul.f32 %v146, %v166
  %vm169 = vcmp.gt.s32.totalorder %v51, 0
  %v170 = vsel %vm169, 1, 0
  %vm171 = vcmp.eq.s32.totalorder %v170, 1
  %172 = vrot.lane.b32.xlu0 %v67, 96
  %v173 = vpop.permute.xlu0 %172
  %v175 = vsel %vm171, %v168, %v173
  %177 = vrot.lane.b32.xlu0 %v175, 32
  %v178 = vpop.permute.xlu0 %177
  %180 = vst.msk [vmem:[#allocation2] sm:$0xff] %vm52, %v178
  %v181 = vld [vmem:[#allocation3] sm:$0xff]
  %183 = vrot.lane.b32.xlu0 %v181, 32
  %v184 = vpop.permute.xlu0 %183
  %v186 = vsel %vm171, %v162, %v184
  %188 = vrot.lane.b32.xlu0 %v186, 96
  %v189 = vpop.permute.xlu0 %188
  %191 = vst.msk [vmem:[#allocation3] sm:$0xff] %vm52, %v189
  %v192 = vsel %vm171, %v168, 0.0
  %194 = vrot.lane.b32.xlu0 %v192, 32
  %v195 = vpop.permute.xlu0 %194
  %197 = vst.msk [vmem:[%s3] sm:$0xff] %vm52, %v195
  %s198 = scalar_lea.vmem %s1, 120
  %v199 = vld [vmem:[%s198] sm:$0xff]
  %v200 = vld [vmem:[#allocation4] sm:$0xff]
  %v201 = vld [vmem:[#allocation5] sm:$0xff]
  %v203 = vsel %vm52, %v200, 0
  %205 = vmatprep.subr.mxu0 0.0
  %206 = vmatpush1.msra.mxu0 %v62
  %207 = vmatprep.subr.mxu0 0.0
  %208 = vmatpush1.msra.mxu0 %v63
  %209 = vmatprep.subr.mxu0 0.0
  %210 = vmatpush1.msra.mxu0 %v64
  %211 = vmatprep.subr.mxu0 0.0
  %212 = vmatpush1.msra.mxu0 %v65
  %213 = vmatprep.subr.mxu0 0.0
  %214 = vmatpush1.msra.mxu0 0.0
  %215 = vmatprep.subr.mxu0 0.0
  %216 = vmatpush1.msra.mxu0 0.0
  %217 = vmatprep.subr.mxu0 0.0
  %218 = vmatpush1.msra.mxu0 0.0
  %219 = vmatprep.subr.mxu0 0.0
  %220 = vmatpush1.msra.mxu0 0.0
  %221 = vmatprep.subr.mxu0 0.0
  %222 = vmatpush1.msra.mxu0 0.0
  %223 = vmatprep.subr.mxu0 0.0
  %224 = vmatpush1.msra.mxu0 0.0
  %225 = vmatprep.subr.mxu0 0.0
  %226 = vmatpush1.msra.mxu0 0.0
  %227 = vmatprep.subr.mxu0 0.0
  %228 = vmatpush1.msra.mxu0 0.0
  %229 = vmatprep.subr.mxu0 0.0
  %230 = vmatpush1.msra.mxu0 0.0
  %231 = vmatprep.subr.mxu0 0.0
  %232 = vmatpush1.msra.mxu0 0.0
  %233 = vmatprep.subr.mxu0 0.0
  %234 = vmatpush1.msra.mxu0 0.0
  %235 = vmatprep.subr.mxu0 0.0
  %236 = vmatpush1.msra.mxu0 0.0
  %237 = vmatprep.subr.mxu0 0.0
  %238 = vmatpush1.msra.mxu0 0.0
  %239 = vmatprep.subr.mxu0 0.0
  %240 = vmatpush1.msra.mxu0 0.0
  %241 = vmatprep.subr.mxu0 0.0
  %242 = vmatpush1.msra.mxu0 0.0
  %243 = vmatprep.subr.mxu0 0.0
  %244 = vmatpush1.msra.mxu0 0.0
  %245 = vmatprep.subr.mxu0 0.0
  %246 = vmatpush1.msra.mxu0 0.0
  %247 = vmatprep.subr.mxu0 0.0
  %248 = vmatpush1.msra.mxu0 0.0
  %249 = vmatprep.subr.mxu0 0.0
  %250 = vmatpush1.msra.mxu0 0.0
  %251 = vmatprep.subr.mxu0 0.0
  %252 = vmatpush1.msra.mxu0 0.0
  %253 = vmatprep.subr.mxu0 0.0
  %254 = vmatpush1.msra.mxu0 0.0
  %255 = vmatprep.subr.mxu0 0.0
  %256 = vmatpush1.msra.mxu0 0.0
  %257 = vmatprep.subr.mxu0 0.0
  %258 = vmatpush1.msra.mxu0 0.0
  %259 = vmatprep.subr.mxu0 0.0
  %260 = vmatpush1.msra.mxu0 0.0
  %261 = vmatprep.subr.mxu0 0.0
  %262 = vmatpush1.msra.mxu0 0.0
  %263 = vmatprep.subr.mxu0 0.0
  %264 = vmatpush1.msra.mxu0 0.0
  %265 = vmatprep.subr.mxu0 0.0
  %266 = vmatpush1.msra.mxu0 0.0
  %267 = vmatprep.subr.mxu0 0.0
  %268 = vmatpush1.msra.mxu0 0.0
  %269 = vmatprep.mubr.f32.mxu0 0.0
  %270 = vmatmul.mubr.f32.gmra.mrb[0].mxu0 %v203
  %v271 = vpop.f32.mrb[0].mxu0
  %v272 = vadd.f32 0.0, %v271
  %v273 = vpop.f32.mrb[0].mxu0
  %274 = vdwg.mxu0
  %v275 = vadd.f32 %v199, %v272
  %v276 = vmul.f32 %v275, 0.5
  %v277 = vtanh.pop %v276
  %v278 = vadd.f32 %v277, 1.0
  %v279 = vmul.f32 %v278, 0.5
  %v280 = vtanh.pop %v275
  %282 = vrot.lane.b32.xlu0 %v201, 32
  %v283 = vpop.permute.xlu0 %282
  %v285 = vmul.f32 %v279, %v283
  %287 = vrot.lane.b32.xlu0 %v280, 64
  %v288 = vpop.permute.xlu0 %287
  %v290 = vmul.f32 %v279, %v288
  %292 = vrot.lane.b32.xlu0 %v290, 32
  %v293 = vpop.permute.xlu0 %292
  %v295 = vadd.f32 %v285, %v293
  %v296 = vtanh.pop %v295
  %298 = vrot.lane.b32.xlu0 %v296, 64
  %v299 = vpop.permute.xlu0 %298
  %v301 = vmul.f32 %v279, %v299
  %vm302 = vcmp.gt.s32.totalorder %v51, 7
  %v303 = vsel %vm302, 1, 0
  %vm304 = vcmp.eq.s32.totalorder %v303, 1
  %305 = vrot.lane.b32.xlu0 %v200, 96
  %v306 = vpop.permute.xlu0 %305
  %v308 = vsel %vm304, %v301, %v306
  %310 = vrot.lane.b32.xlu0 %v308, 32
  %v311 = vpop.permute.xlu0 %310
  %313 = vst.msk [vmem:[#allocation4] sm:$0xff] %vm52, %v311
  %v314 = vld [vmem:[#allocation5] sm:$0xff]
  %316 = vrot.lane.b32.xlu0 %v314, 32
  %v317 = vpop.permute.xlu0 %316
  %v319 = vsel %vm304, %v295, %v317
  %321 = vrot.lane.b32.xlu0 %v319, 96
  %v322 = vpop.permute.xlu0 %321
  %324 = vst.msk [vmem:[#allocation5] sm:$0xff] %vm52, %v322
  %v325 = vsel %vm304, %v301, 0.0
  %327 = vrot.lane.b32.xlu0 %v325, 64
  %v328 = vpop.permute.xlu0 %327
  %s330 = scalar_lea.vmem %s3, 56
  %vm331 = vcmask 523520
  %332 = vst.msk [vmem:[%s330] sm:$0xff] %vm331, %v328
  %s333 = scalar_lea.vmem %s1, 8
  %v334 = vld [vmem:[%s333] sm:$0xff]
  %v335 = vld [vmem:[#allocation2] sm:$0xff]
  %v336 = vld [vmem:[#allocation3] sm:$0xff]
  %v338 = vsel %vm52, %v335, 0
  %340 = vmatprep.subr.mxu0 0.0
  %341 = vmatpush1.msra.mxu0 %v57
  %342 = vmatprep.subr.mxu0 0.0
  %343 = vmatpush1.msra.mxu0 %v58
  %344 = vmatprep.subr.mxu0 0.0
  %345 = vmatpush1.msra.mxu0 %v59
  %346 = vmatprep.subr.mxu0 0.0
  %347 = vmatpush1.msra.mxu0 %v60
  %348 = vmatprep.subr.mxu0 0.0
  %349 = vmatpush1.msra.mxu0 0.0
  %350 = vmatprep.subr.mxu0 0.0
  %351 = vmatpush1.msra.mxu0 0.0
  %352 = vmatprep.subr.mxu0 0.0
  %353 = vmatpush1.msra.mxu0 0.0
  %354 = vmatprep.subr.mxu0 0.0
  %355 = vmatpush1.msra.mxu0 0.0
  %356 = vmatprep.subr.mxu0 0.0
  %357 = vmatpush1.msra.mxu0 0.0
  %358 = vmatprep.subr.mxu0 0.0
  %359 = vmatpush1.msra.mxu0 0.0
  %360 = vmatprep.subr.mxu0 0.0
  %361 = vmatpush1.msra.mxu0 0.0
  %362 = vmatprep.subr.mxu0 0.0
  %363 = vmatpush1.msra.mxu0 0.0
  %364 = vmatprep.subr.mxu0 0.0
  %365 = vmatpush1.msra.mxu0 0.0
  %366 = vmatprep.subr.mxu0 0.0
  %367 = vmatpush1.msra.mxu0 0.0
  %368 = vmatprep.subr.mxu0 0.0
  %369 = vmatpush1.msra.mxu0 0.0
  %370 = vmatprep.subr.mxu0 0.0
  %371 = vmatpush1.msra.mxu0 0.0
  %372 = vmatprep.subr.mxu0 0.0
  %373 = vmatpush1.msra.mxu0 0.0
  %374 = vmatprep.subr.mxu0 0.0
  %375 = vmatpush1.msra.mxu0 0.0
  %376 = vmatprep.subr.mxu0 0.0
  %377 = vmatpush1.msra.mxu0 0.0
  %378 = vmatprep.subr.mxu0 0.0
  %379 = vmatpush1.msra.mxu0 0.0
  %380 = vmatprep.subr.mxu0 0.0
  %381 = vmatpush1.msra.mxu0 0.0
  %382 = vmatprep.subr.mxu0 0.0
  %383 = vmatpush1.msra.mxu0 0.0
  %384 = vmatprep.subr.mxu0 0.0
  %385 = vmatpush1.msra.mxu0 0.0
  %386 = vmatprep.subr.mxu0 0.0
  %387 = vmatpush1.msra.mxu0 0.0
  %388 = vmatprep.subr.mxu0 0.0
  %389 = vmatpush1.msra.mxu0 0.0
  %390 = vmatprep.subr.mxu0 0.0
  %391 = vmatpush1.msra.mxu0 0.0
  %392 = vmatprep.subr.mxu0 0.0
  %393 = vmatpush1.msra.mxu0 0.0
  %394 = vmatprep.subr.mxu0 0.0
  %395 = vmatpush1.msra.mxu0 0.0
  %396 = vmatprep.subr.mxu0 0.0
  %397 = vmatpush1.msra.mxu0 0.0
  %398 = vmatprep.subr.mxu0 0.0
  %399 = vmatpush1.msra.mxu0 0.0
  %400 = vmatprep.subr.mxu0 0.0
  %401 = vmatpush1.msra.mxu0 0.0
  %402 = vmatprep.subr.mxu0 0.0
  %403 = vmatpush1.msra.mxu0 0.0
  %404 = vmatprep.mubr.f32.mxu0 0.0
  %405 = vmatmul.mubr.f32.gmra.mrb[0].mxu0 %v338
  %v406 = vpop.f32.mrb[0].mxu0
  %v407 = vadd.f32 0.0, %v406
  %v408 = vpop.f32.mrb[0].mxu0
  %409 = vdwg.mxu0
  %v410 = vadd.f32 %v334, %v407
  %v411 = vmul.f32 %v410, 0.5
  %v412 = vtanh.pop %v411
  %v413 = vadd.f32 %v412, 1.0
  %v414 = vmul.f32 %v413, 0.5
  %v415 = vtanh.pop %v410
  %417 = vrot.lane.b32.xlu0 %v336, 32
  %v418 = vpop.permute.xlu0 %417
  %v420 = vmul.f32 %v414, %v418
  %422 = vrot.lane.b32.xlu0 %v415, 64
  %v423 = vpop.permute.xlu0 %422
  %v425 = vmul.f32 %v414, %v423
  %427 = vrot.lane.b32.xlu0 %v425, 32
  %v428 = vpop.permute.xlu0 %427
  %v430 = vadd.f32 %v420, %v428
  %v431 = vtanh.pop %v430
  %433 = vrot.lane.b32.xlu0 %v431, 64
  %v434 = vpop.permute.xlu0 %433
  %v436 = vmul.f32 %v414, %v434
  %vm437 = vcmp.gt.s32.totalorder %v51, 1
  %v438 = vsel %vm437, 1, 0
  %vm439 = vcmp.eq.s32.totalorder %v438, 1
  %440 = vrot.lane.b32.xlu0 %v335, 96
  %v441 = vpop.permute.xlu0 %440
  %v443 = vsel %vm439, %v436, %v441
  %445 = vrot.lane.b32.xlu0 %v443, 32
  %v446 = vpop.permute.xlu0 %445
  %448 = vst.msk [vmem:[#allocation2] sm:$0xff] %vm52, %v446
  %v449 = vld [vmem:[#allocation3] sm:$0xff]
  %451 = vrot.lane.b32.xlu0 %v449, 32
  %v452 = vpop.permute.xlu0 %451
  %v454 = vsel %vm439, %v430, %v452
  %456 = vrot.lane.b32.xlu0 %v454, 96
  %v457 = vpop.permute.xlu0 %456
  %459 = vst.msk [vmem:[#allocation3] sm:$0xff] %vm52, %v457
  %v460 = vsel %vm439, %v436, 0.0
  %462 = vrot.lane.b32.xlu0 %v460, 32
  %v463 = vpop.permute.xlu0 %462
  %s465 = scalar_lea.vmem %s3, 8
  %466 = vst.msk [vmem:[%s465] sm:$0xff] %vm52, %v463
  %s467 = scalar_lea.vmem %s1, 112
  %v468 = vld [vmem:[%s467] sm:$0xff]
  %v469 = vld [vmem:[#allocation4] sm:$0xff]
  %v470 = vld [vmem:[#allocation5] sm:$0xff]
  %v472 = vsel %vm52, %v469, 0
  %474 = vmatprep.subr.mxu0 0.0
  %475 = vmatpush1.msra.mxu0 %v62
  %476 = vmatprep.subr.mxu0 0.0
  %477 = vmatpush1.msra.mxu0 %v63
  %478 = vmatprep.subr.mxu0 0.0
  %479 = vmatpush1.msra.mxu0 %v64
  %480 = vmatprep.subr.mxu0 0.0
  %481 = vmatpush1.msra.mxu0 %v65
  %482 = vmatprep.subr.mxu0 0.0
  %483 = vmatpush1.msra.mxu0 0.0
  %484 = vmatprep.subr.mxu0 0.0
  %485 = vmatpush1.msra.mxu0 0.0
  %486 = vmatprep.subr.mxu0 0.0
  %487 = vmatpush1.msra.mxu0 0.0
  %488 = vmatprep.subr.mxu0 0.0
  %489 = vmatpush1.msra.mxu0 0.0
  %490 = vmatprep.subr.mxu0 0.0
  %491 = vmatpush1.msra.mxu0 0.0
  %492 = vmatprep.subr.mxu0 0.0
  %493 = vmatpush1.msra.mxu0 0.0
  %494 = vmatprep.subr.mxu0 0.0
  %495 = vmatpush1.msra.mxu0 0.0
  %496 = vmatprep.subr.mxu0 0.0
  %497 = vmatpush1.msra.mxu0 0.0
  %498 = vmatprep.subr.mxu0 0.0
  %499 = vmatpush1.msra.mxu0 0.0
  %500 = vmatprep.subr.mxu0 0.0
  %501 = vmatpush1.msra.mxu0 0.0
  %502 = vmatprep.subr.mxu0 0.0
  %503 = vmatpush1.msra.mxu0 0.0
  %504 = vmatprep.subr.mxu0 0.0
  %505 = vmatpush1.msra.mxu0 0.0
  %506 = vmatprep.subr.mxu0 0.0
  %507 = vmatpush1.msra.mxu0 0.0
  %508 = vmatprep.subr.mxu0 0.0
  %509 = vmatpush1.msra.mxu0 0.0
  %510 = vmatprep.subr.mxu0 0.0
  %511 = vmatpush1.msra.mxu0 0.0
  %512 = vmatprep.subr.mxu0 0.0
  %513 = vmatpush1.msra.mxu0 0.0
  %514 = vmatprep.subr.mxu0 0.0
  %515 = vmatpush1.msra.mxu0 0.0
  %516 = vmatprep.subr.mxu0 0.0
  %517 = vmatpush1.msra.mxu0 0.0
  %518 = vmatprep.subr.mxu0 0.0
  %519 = vmatpush1.msra.mxu0 0.0
  %520 = vmatprep.subr.mxu0 0.0
  %521 = vmatpush1.msra.mxu0 0.0
  %522 = vmatprep.subr.mxu0 0.0
  %523 = vmatpush1.msra.mxu0 0.0
  %524 = vmatprep.subr.mxu0 0.0
  %525 = vmatpush1.msra.mxu0 0.0
  %526 = vmatprep.subr.mxu0 0.0
  %527 = vmatpush1.msra.mxu0 0.0
  %528 = vmatprep.subr.mxu0 0.0
  %529 = vmatpush1.msra.mxu0 0.0
  %530 = vmatprep.subr.mxu0 0.0
  %531 = vmatpush1.msra.mxu0 0.0
  %532 = vmatprep.subr.mxu0 0.0
  %533 = vmatpush1.msra.mxu0 0.0
  %534 = vmatprep.subr.mxu0 0.0
  %535 = vmatpush1.msra.mxu0 0.0
  %536 = vmatprep.subr.mxu0 0.0
  %537 = vmatpush1.msra.mxu0 0.0
  %538 = vmatprep.mubr.f32.mxu0 0.0
  %539 = vmatmul.mubr.f32.gmra.mrb[0].mxu0 %v472
  %v540 = vpop.f32.mrb[0].mxu0
  %v541 = vadd.f32 0.0, %v540
  %v542 = vpop.f32.mrb[0].mxu0
  %543 = vdwg.mxu0
  %v544 = vadd.f32 %v468, %v541
  %v545 = vmul.f32 %v544, 0.5
  %v546 = vtanh.pop %v545
  %v547 = vadd.f32 %v546, 1.0
  %v548 = vmul.f32 %v547, 0.5
  %v549 = vtanh.pop %v544
  %551 = vrot.lane.b32.xlu0 %v470, 32
  %v552 = vpop.permute.xlu0 %551
  %v554 = vmul.f32 %v548, %v552
  %556 = vrot.lane.b32.xlu0 %v549, 64
  %v557 = vpop.permute.xlu0 %556
  %v559 = vmul.f32 %v548, %v557
  %561 = vrot.lane.b32.xlu0 %v559, 32
  %v562 = vpop.permute.xlu0 %561
  %v564 = vadd.f32 %v554, %v562
  %v565 = vtanh.pop %v564
  %567 = vrot.lane.b32.xlu0 %v565, 64
  %v568 = vpop.permute.xlu0 %567
  %v570 = vmul.f32 %v548, %v568
  %vm571 = vcmp.gt.s32.totalorder %v51, 6
  %v572 = vsel %vm571, 1, 0
  %vm573 = vcmp.eq.s32.totalorder %v572, 1
  %574 = vrot.lane.b32.xlu0 %v469, 96
  %v575 = vpop.permute.xlu0 %574
  %v577 = vsel %vm573, %v570, %v575
  %579 = vrot.lane.b32.xlu0 %v577, 32
  %v580 = vpop.permute.xlu0 %579
  %582 = vst.msk [vmem:[#allocation4] sm:$0xff] %vm52, %v580
  %v583 = vld [vmem:[#allocation5] sm:$0xff]
  %585 = vrot.lane.b32.xlu0 %v583, 32
  %v586 = vpop.permute.xlu0 %585
  %v588 = vsel %vm573, %v564, %v586
  %590 = vrot.lane.b32.xlu0 %v588, 96
  %v591 = vpop.permute.xlu0 %590
  %593 = vst.msk [vmem:[#allocation5] sm:$0xff] %vm52, %v591
  %v594 = vsel %vm573, %v570, 0.0
  %596 = vrot.lane.b32.xlu0 %v594, 64
  %v597 = vpop.permute.xlu0 %596
  %s599 = scalar_lea.vmem %s3, 48
  %600 = vst.msk [vmem:[%s599] sm:$0xff] %vm331, %v597
  %s601 = scalar_lea.vmem %s1, 16
  %v602 = vld [vmem:[%s601] sm:$0xff]
  %v603 = vld [vmem:[#allocation2] sm:$0xff]
  %v604 = vld [vmem:[#allocation3] sm:$0xff]
  %v606 = vsel %vm52, %v603, 0
  %608 = vmatprep.subr.mxu0 0.0
  %609 = vmatpush1.msra.mxu0 %v57
  %610 = vmatprep.subr.mxu0 0.0
  %611 = vmatpush1.msra.mxu0 %v58
  %612 = vmatprep.subr.mxu0 0.0
  %613 = vmatpush1.msra.mxu0 %v59
  %614 = vmatprep.subr.mxu0 0.0
  %615 = vmatpush1.msra.mxu0 %v60
  %616 = vmatprep.subr.mxu0 0.0
  %617 = vmatpush1.msra.mxu0 0.0
  %618 = vmatprep.subr.mxu0 0.0
  %619 = vmatpush1.msra.mxu0 0.0
  %620 = vmatprep.subr.mxu0 0.0
  %621 = vmatpush1.msra.mxu0 0.0
  %622 = vmatprep.subr.mxu0 0.0
  %623 = vmatpush1.msra.mxu0 0.0
  %624 = vmatprep.subr.mxu0 0.0
  %625 = vmatpush1.msra.mxu0 0.0
  %626 = vmatprep.subr.mxu0 0.0
  %627 = vmatpush1.msra.mxu0 0.0
  %628 = vmatprep.subr.mxu0 0.0
  %629 = vmatpush1.msra.mxu0 0.0
  %630 = vmatprep.subr.mxu0 0.0
  %631 = vmatpush1.msra.mxu0 0.0
  %632 = vmatprep.subr.mxu0 0.0
  %633 = vmatpush1.msra.mxu0 0.0
  %634 = vmatprep.subr.mxu0 0.0
  %635 = vmatpush1.msra.mxu0 0.0
  %636 = vmatprep.subr.mxu0 0.0
  %637 = vmatpush1.msra.mxu0 0.0
  %638 = vmatprep.subr.mxu0 0.0
  %639 = vmatpush1.msra.mxu0 0.0
  %640 = vmatprep.subr.mxu0 0.0
  %641 = vmatpush1.msra.mxu0 0.0
  %642 = vmatprep.subr.mxu0 0.0
  %643 = vmatpush1.msra.mxu0 0.0
  %644 = vmatprep.subr.mxu0 0.0
  %645 = vmatpush1.msra.mxu0 0.0
  %646 = vmatprep.subr.mxu0 0.0
  %647 = vmatpush1.msra.mxu0 0.0
  %648 = vmatprep.subr.mxu0 0.0
  %649 = vmatpush1.msra.mxu0 0.0
  %650 = vmatprep.subr.mxu0 0.0
  %651 = vmatpush1.msra.mxu0 0.0
  %652 = vmatprep.subr.mxu0 0.0
  %653 = vmatpush1.msra.mxu0 0.0
  %654 = vmatprep.subr.mxu0 0.0
  %655 = vmatpush1.msra.mxu0 0.0
  %656 = vmatprep.subr.mxu0 0.0
  %657 = vmatpush1.msra.mxu0 0.0
  %658 = vmatprep.subr.mxu0 0.0
  %659 = vmatpush1.msra.mxu0 0.0
  %660 = vmatprep.subr.mxu0 0.0
  %661 = vmatpush1.msra.mxu0 0.0
  %662 = vmatprep.subr.mxu0 0.0
  %663 = vmatpush1.msra.mxu0 0.0
  %664 = vmatprep.subr.mxu0 0.0
  %665 = vmatpush1.msra.mxu0 0.0
  %666 = vmatprep.subr.mxu0 0.0
  %667 = vmatpush1.msra.mxu0 0.0
  %668 = vmatprep.subr.mxu0 0.0
  %669 = vmatpush1.msra.mxu0 0.0
  %670 = vmatprep.subr.mxu0 0.0
  %671 = vmatpush1.msra.mxu0 0.0
  %672 = vmatprep.mubr.f32.mxu0 0.0
  %673 = vmatmul.mubr.f32.gmra.mrb[0].mxu0 %v606
  %v674 = vpop.f32.mrb[0].mxu0
  %v675 = vadd.f32 0.0, %v674
  %v676 = vpop.f32.mrb[0].mxu0
  %677 = vdwg.mxu0
  %v678 = vadd.f32 %v602, %v675
  %v679 = vmul.f32 %v678, 0.5
  %v680 = vtanh.pop %v679
  %v681 = vadd.f32 %v680, 1.0
  %v682 = vmul.f32 %v681, 0.5
  %v683 = vtanh.pop %v678
  %685 = vrot.lane.b32.xlu0 %v604, 32
  %v686 = vpop.permute.xlu0 %685
  %v688 = vmul.f32 %v682, %v686
  %690 = vrot.lane.b32.xlu0 %v683, 64
  %v691 = vpop.permute.xlu0 %690
  %v693 = vmul.f32 %v682, %v691
  %695 = vrot.lane.b32.xlu0 %v693, 32
  %v696 = vpop.permute.xlu0 %695
  %v698 = vadd.f32 %v688, %v696
  %v699 = vtanh.pop %v698
  %701 = vrot.lane.b32.xlu0 %v699, 64
  %v702 = vpop.permute.xlu0 %701
  %v704 = vmul.f32 %v682, %v702
  %vm705 = vcmp.gt.s32.totalorder %v51, 2
  %v706 = vsel %vm705, 1, 0
  %vm707 = vcmp.eq.s32.totalorder %v706, 1
  %708 = vrot.lane.b32.xlu0 %v603, 96
  %v709 = vpop.permute.xlu0 %708
  %v711 = vsel %vm707, %v704, %v709
  %713 = vrot.lane.b32.xlu0 %v711, 32
  %v714 = vpop.permute.xlu0 %713
  %716 = vst.msk [vmem:[#allocation2] sm:$0xff] %vm52, %v714
  %v717 = vld [vmem:[#allocation3] sm:$0xff]
  %719 = vrot.lane.b32.xlu0 %v717, 32
  %v720 = vpop.permute.xlu0 %719
  %v722 = vsel %vm707, %v698, %v720
  %724 = vrot.lane.b32.xlu0 %v722, 96
  %v725 = vpop.permute.xlu0 %724
  %727 = vst.msk [vmem:[#allocation3] sm:$0xff] %vm52, %v725
  %v728 = vsel %vm707, %v704, 0.0
  %730 = vrot.lane.b32.xlu0 %v728, 32
  %v731 = vpop.permute.xlu0 %730
  %s733 = scalar_lea.vmem %s3, 16
  %734 = vst.msk [vmem:[%s733] sm:$0xff] %vm52, %v731
  %s735 = scalar_lea.vmem %s1, 104
  %v736 = vld [vmem:[%s735] sm:$0xff]
  %v737 = vld [vmem:[#allocation4] sm:$0xff]
  %v738 = vld [vmem:[#allocation5] sm:$0xff]
  %v740 = vsel %vm52, %v737, 0
  %742 = vmatprep.subr.mxu0 0.0
  %743 = vmatpush1.msra.mxu0 %v62
  %744 = vmatprep.subr.mxu0 0.0
  %745 = vmatpush1.msra.mxu0 %v63
  %746 = vmatprep.subr.mxu0 0.0
  %747 = vmatpush1.msra.mxu0 %v64
  %748 = vmatprep.subr.mxu0 0.0
  %749 = vmatpush1.msra.mxu0 %v65
  %750 = vmatprep.subr.mxu0 0.0
  %751 = vmatpush1.msra.mxu0 0.0
  %752 = vmatprep.subr.mxu0 0.0
  %753 = vmatpush1.msra.mxu0 0.0
  %754 = vmatprep.subr.mxu0 0.0
  %755 = vmatpush1.msra.mxu0 0.0
  %756 = vmatprep.subr.mxu0 0.0
  %757 = vmatpush1.msra.mxu0 0.0
  %758 = vmatprep.subr.mxu0 0.0
  %759 = vmatpush1.msra.mxu0 0.0
  %760 = vmatprep.subr.mxu0 0.0
  %761 = vmatpush1.msra.mxu0 0.0
  %762 = vmatprep.subr.mxu0 0.0
  %763 = vmatpush1.msra.mxu0 0.0
  %764 = vmatprep.subr.mxu0 0.0
  %765 = vmatpush1.msra.mxu0 0.0
  %766 = vmatprep.subr.mxu0 0.0
  %767 = vmatpush1.msra.mxu0 0.0
  %768 = vmatprep.subr.mxu0 0.0
  %769 = vmatpush1.msra.mxu0 0.0
  %770 = vmatprep.subr.mxu0 0.0
  %771 = vmatpush1.msra.mxu0 0.0
  %772 = vmatprep.subr.mxu0 0.0
  %773 = vmatpush1.msra.mxu0 0.0
  %774 = vmatprep.subr.mxu0 0.0
  %775 = vmatpush1.msra.mxu0 0.0
  %776 = vmatprep.subr.mxu0 0.0
  %777 = vmatpush1.msra.mxu0 0.0
  %778 = vmatprep.subr.mxu0 0.0
  %779 = vmatpush1.msra.mxu0 0.0
  %780 = vmatprep.subr.mxu0 0.0
  %781 = vmatpush1.msra.mxu0 0.0
  %782 = vmatprep.subr.mxu0 0.0
  %783 = vmatpush1.msra.mxu0 0.0
  %784 = vmatprep.subr.mxu0 0.0
  %785 = vmatpush1.msra.mxu0 0.0
  %786 = vmatprep.subr.mxu0 0.0
  %787 = vmatpush1.msra.mxu0 0.0
  %788 = vmatprep.subr.mxu0 0.0
  %789 = vmatpush1.msra.mxu0 0.0
  %790 = vmatprep.subr.mxu0 0.0
  %791 = vmatpush1.msra.mxu0 0.0
  %792 = vmatprep.subr.mxu0 0.0
  %793 = vmatpush1.msra.mxu0 0.0
  %794 = vmatprep.subr.mxu0 0.0
  %795 = vmatpush1.msra.mxu0 0.0
  %796 = vmatprep.subr.mxu0 0.0
  %797 = vmatpush1.msra.mxu0 0.0
  %798 = vmatprep.subr.mxu0 0.0
  %799 = vmatpush1.msra.mxu0 0.0
  %800 = vmatprep.subr.mxu0 0.0
  %801 = vmatpush1.msra.mxu0 0.0
  %802 = vmatprep.subr.mxu0 0.0
  %803 = vmatpush1.msra.mxu0 0.0
  %804 = vmatprep.subr.mxu0 0.0
  %805 = vmatpush1.msra.mxu0 0.0
  %806 = vmatprep.mubr.f32.mxu0 0.0
  %807 = vmatmul.mubr.f32.gmra.mrb[0].mxu0 %v740
  %v808 = vpop.f32.mrb[0].mxu0
  %v809 = vadd.f32 0.0, %v808
  %v810 = vpop.f32.mrb[0].mxu0
  %811 = vdwg.mxu0
  %v812 = vadd.f32 %v736, %v809
  %v813 = vmul.f32 %v812, 0.5
  %v814 = vtanh.pop %v813
  %v815 = vadd.f32 %v814, 1.0
  %v816 = vmul.f32 %v815, 0.5
  %v817 = vtanh.pop %v812
  %819 = vrot.lane.b32.xlu0 %v738, 32
  %v820 = vpop.permute.xlu0 %819
  %v822 = vmul.f32 %v816, %v820
  %824 = vrot.lane.b32.xlu0 %v817, 64
  %v825 = vpop.permute.xlu0 %824
  %v827 = vmul.f32 %v816, %v825
  %829 = vrot.lane.b32.xlu0 %v827, 32
  %v830 = vpop.permute.xlu0 %829
  %v832 = vadd.f32 %v822, %v830
  %v833 = vtanh.pop %v832
  %835 = vrot.lane.b32.xlu0 %v833, 64
  %v836 = vpop.permute.xlu0 %835
  %v838 = vmul.f32 %v816, %v836
  %vm839 = vcmp.gt.s32.totalorder %v51, 5
  %v840 = vsel %vm839, 1, 0
  %vm841 = vcmp.eq.s32.totalorder %v840, 1
  %842 = vrot.lane.b32.xlu0 %v737, 96
  %v843 = vpop.permute.xlu0 %842
  %v845 = vsel %vm841, %v838, %v843
  %847 = vrot.lane.b32.xlu0 %v845, 32
  %v848 = vpop.permute.xlu0 %847
  %850 = vst.msk [vmem:[#allocation4] sm:$0xff] %vm52, %v848
  %v851 = vld [vmem:[#allocation5] sm:$0xff]
  %853 = vrot.lane.b32.xlu0 %v851, 32
  %v854 = vpop.permute.xlu0 %853
  %v856 = vsel %vm841, %v832, %v854
  %858 = vrot.lane.b32.xlu0 %v856, 96
  %v859 = vpop.permute.xlu0 %858
  %861 = vst.msk [vmem:[#allocation5] sm:$0xff] %vm52, %v859
  %v862 = vsel %vm841, %v838, 0.0
  %864 = vrot.lane.b32.xlu0 %v862, 64
  %v865 = vpop.permute.xlu0 %864
  %s867 = scalar_lea.vmem %s3, 40
  %868 = vst.msk [vmem:[%s867] sm:$0xff] %vm331, %v865
  %s869 = scalar_lea.vmem %s1, 24
  %v870 = vld [vmem:[%s869] sm:$0xff]
  %v871 = vld [vmem:[#allocation2] sm:$0xff]
  %v872 = vld [vmem:[#allocation3] sm:$0xff]
  %v874 = vsel %vm52, %v871, 0
  %876 = vmatprep.subr.mxu0 0.0
  %877 = vmatpush1.msra.mxu0 %v57
  %878 = vmatprep.subr.mxu0 0.0
  %879 = vmatpush1.msra.mxu0 %v58
  %880 = vmatprep.subr.mxu0 0.0
  %881 = vmatpush1.msra.mxu0 %v59
  %882 = vmatprep.subr.mxu0 0.0
  %883 = vmatpush1.msra.mxu0 %v60
  %884 = vmatprep.subr.mxu0 0.0
  %885 = vmatpush1.msra.mxu0 0.0
  %886 = vmatprep.subr.mxu0 0.0
  %887 = vmatpush1.msra.mxu0 0.0
  %888 = vmatprep.subr.mxu0 0.0
  %889 = vmatpush1.msra.mxu0 0.0
  %890 = vmatprep.subr.mxu0 0.0
  %891 = vmatpush1.msra.mxu0 0.0
  %892 = vmatprep.subr.mxu0 0.0
  %893 = vmatpush1.msra.mxu0 0.0
  %894 = vmatprep.subr.mxu0 0.0
  %895 = vmatpush1.msra.mxu0 0.0
  %896 = vmatprep.subr.mxu0 0.0
  %897 = vmatpush1.msra.mxu0 0.0
  %898 = vmatprep.subr.mxu0 0.0
  %899 = vmatpush1.msra.mxu0 0.0
  %900 = vmatprep.subr.mxu0 0.0
  %901 = vmatpush1.msra.mxu0 0.0
  %902 = vmatprep.subr.mxu0 0.0
  %903 = vmatpush1.msra.mxu0 0.0
  %904 = vmatprep.subr.mxu0 0.0
  %905 = vmatpush1.msra.mxu0 0.0
  %906 = vmatprep.subr.mxu0 0.0
  %907 = vmatpush1.msra.mxu0 0.0
  %908 = vmatprep.subr.mxu0 0.0
  %909 = vmatpush1.msra.mxu0 0.0
  %910 = vmatprep.subr.mxu0 0.0
  %911 = vmatpush1.msra.mxu0 0.0
  %912 = vmatprep.subr.mxu0 0.0
  %913 = vmatpush1.msra.mxu0 0.0
  %914 = vmatprep.subr.mxu0 0.0
  %915 = vmatpush1.msra.mxu0 0.0
  %916 = vmatprep.subr.mxu0 0.0
  %917 = vmatpush1.msra.mxu0 0.0
  %918 = vmatprep.subr.mxu0 0.0
  %919 = vmatpush1.msra.mxu0 0.0
  %920 = vmatprep.subr.mxu0 0.0
  %921 = vmatpush1.msra.mxu0 0.0
  %922 = vmatprep.subr.mxu0 0.0
  %923 = vmatpush1.msra.mxu0 0.0
  %924 = vmatprep.subr.mxu0 0.0
  %925 = vmatpush1.msra.mxu0 0.0
  %926 = vmatprep.subr.mxu0 0.0
  %927 = vmatpush1.msra.mxu0 0.0
  %928 = vmatprep.subr.mxu0 0.0
  %929 = vmatpush1.msra.mxu0 0.0
  %930 = vmatprep.subr.mxu0 0.0
  %931 = vmatpush1.msra.mxu0 0.0
  %932 = vmatprep.subr.mxu0 0.0
  %933 = vmatpush1.msra.mxu0 0.0
  %934 = vmatprep.subr.mxu0 0.0
  %935 = vmatpush1.msra.mxu0 0.0
  %936 = vmatprep.subr.mxu0 0.0
  %937 = vmatpush1.msra.mxu0 0.0
  %938 = vmatprep.subr.mxu0 0.0
  %939 = vmatpush1.msra.mxu0 0.0
  %940 = vmatprep.mubr.f32.mxu0 0.0
  %941 = vmatmul.mubr.f32.gmra.mrb[0].mxu0 %v874
  %v942 = vpop.f32.mrb[0].mxu0
  %v943 = vadd.f32 0.0, %v942
  %v944 = vpop.f32.mrb[0].mxu0
  %945 = vdwg.mxu0
  %v946 = vadd.f32 %v870, %v943
  %v947 = vmul.f32 %v946, 0.5
  %v948 = vtanh.pop %v947
  %v949 = vadd.f32 %v948, 1.0
  %v950 = vmul.f32 %v949, 0.5
  %v951 = vtanh.pop %v946
  %953 = vrot.lane.b32.xlu0 %v872, 32
  %v954 = vpop.permute.xlu0 %953
  %v956 = vmul.f32 %v950, %v954
  %958 = vrot.lane.b32.xlu0 %v951, 64
  %v959 = vpop.permute.xlu0 %958
  %v961 = vmul.f32 %v950, %v959
  %963 = vrot.lane.b32.xlu0 %v961, 32
  %v964 = vpop.permute.xlu0 %963
  %v966 = vadd.f32 %v956, %v964
  %v967 = vtanh.pop %v966
  %969 = vrot.lane.b32.xlu0 %v967, 64
  %v970 = vpop.permute.xlu0 %969
  %v972 = vmul.f32 %v950, %v970
  %vm973 = vcmp.gt.s32.totalorder %v51, 3
  %v974 = vsel %vm973, 1, 0
  %vm975 = vcmp.eq.s32.totalorder %v974, 1
  %976 = vrot.lane.b32.xlu0 %v871, 96
  %v977 = vpop.permute.xlu0 %976
  %v979 = vsel %vm975, %v972, %v977
  %981 = vrot.lane.b32.xlu0 %v979, 32
  %v982 = vpop.permute.xlu0 %981
  %984 = vst.msk [vmem:[#allocation2] sm:$0xff] %vm52, %v982
  %v985 = vld [vmem:[#allocation3] sm:$0xff]
  %987 = vrot.lane.b32.xlu0 %v985, 32
  %v988 = vpop.permute.xlu0 %987
  %v990 = vsel %vm975, %v966, %v988
  %992 = vrot.lane.b32.xlu0 %v990, 96
  %v993 = vpop.permute.xlu0 %992
  %995 = vst.msk [vmem:[#allocation3] sm:$0xff] %vm52, %v993
  %v996 = vsel %vm975, %v972, 0.0
  %998 = vrot.lane.b32.xlu0 %v996, 32
  %v999 = vpop.permute.xlu0 %998
  %s1001 = scalar_lea.vmem %s3, 24
  %1002 = vst.msk [vmem:[%s1001] sm:$0xff] %vm52, %v999
  %s1003 = scalar_lea.vmem %s1, 96
  %v1004 = vld [vmem:[%s1003] sm:$0xff]
  %v1005 = vld [vmem:[#allocation4] sm:$0xff]
  %v1006 = vld [vmem:[#allocation5] sm:$0xff]
  %v1008 = vsel %vm52, %v1005, 0
  %1010 = vmatprep.subr.mxu0 0.0
  %1011 = vmatpush1.msra.mxu0 %v62
  %1012 = vmatprep.subr.mxu0 0.0
  %1013 = vmatpush1.msra.mxu0 %v63
  %1014 = vmatprep.subr.mxu0 0.0
  %1015 = vmatpush1.msra.mxu0 %v64
  %1016 = vmatprep.subr.mxu0 0.0
  %1017 = vmatpush1.msra.mxu0 %v65
  %1018 = vmatprep.subr.mxu0 0.0
  %1019 = vmatpush1.msra.mxu0 0.0
  %1020 = vmatprep.subr.mxu0 0.0
  %1021 = vmatpush1.msra.mxu0 0.0
  %1022 = vmatprep.subr.mxu0 0.0
  %1023 = vmatpush1.msra.mxu0 0.0
  %1024 = vmatprep.subr.mxu0 0.0
  %1025 = vmatpush1.msra.mxu0 0.0
  %1026 = vmatprep.subr.mxu0 0.0
  %1027 = vmatpush1.msra.mxu0 0.0
  %1028 = vmatprep.subr.mxu0 0.0
  %1029 = vmatpush1.msra.mxu0 0.0
  %1030 = vmatprep.subr.mxu0 0.0
  %1031 = vmatpush1.msra.mxu0 0.0
  %1032 = vmatprep.subr.mxu0 0.0
  %1033 = vmatpush1.msra.mxu0 0.0
  %1034 = vmatprep.subr.mxu0 0.0
  %1035 = vmatpush1.msra.mxu0 0.0
  %1036 = vmatprep.subr.mxu0 0.0
  %1037 = vmatpush1.msra.mxu0 0.0
  %1038 = vmatprep.subr.mxu0 0.0
  %1039 = vmatpush1.msra.mxu0 0.0
  %1040 = vmatprep.subr.mxu0 0.0
  %1041 = vmatpush1.msra.mxu0 0.0
  %1042 = vmatprep.subr.mxu0 0.0
  %1043 = vmatpush1.msra.mxu0 0.0
  %1044 = vmatprep.subr.mxu0 0.0
  %1045 = vmatpush1.msra.mxu0 0.0
  %1046 = vmatprep.subr.mxu0 0.0
  %1047 = vmatpush1.msra.mxu0 0.0
  %1048 = vmatprep.subr.mxu0 0.0
  %1049 = vmatpush1.msra.mxu0 0.0
  %1050 = vmatprep.subr.mxu0 0.0
  %1051 = vmatpush1.msra.mxu0 0.0
  %1052 = vmatprep.subr.mxu0 0.0
  %1053 = vmatpush1.msra.mxu0 0.0
  %1054 = vmatprep.subr.mxu0 0.0
  %1055 = vmatpush1.msra.mxu0 0.0
  %1056 = vmatprep.subr.mxu0 0.0
  %1057 = vmatpush1.msra.mxu0 0.0
  %1058 = vmatprep.subr.mxu0 0.0
  %1059 = vmatpush1.msra.mxu0 0.0
  %1060 = vmatprep.subr.mxu0 0.0
  %1061 = vmatpush1.msra.mxu0 0.0
  %1062 = vmatprep.subr.mxu0 0.0
  %1063 = vmatpush1.msra.mxu0 0.0
  %1064 = vmatprep.subr.mxu0 0.0
  %1065 = vmatpush1.msra.mxu0 0.0
  %1066 = vmatprep.subr.mxu0 0.0
  %1067 = vmatpush1.msra.mxu0 0.0
  %1068 = vmatprep.subr.mxu0 0.0
  %1069 = vmatpush1.msra.mxu0 0.0
  %1070 = vmatprep.subr.mxu0 0.0
  %1071 = vmatpush1.msra.mxu0 0.0
  %1072 = vmatprep.subr.mxu0 0.0
  %1073 = vmatpush1.msra.mxu0 0.0
  %1074 = vmatprep.mubr.f32.mxu0 0.0
  %1075 = vmatmul.mubr.f32.gmra.mrb[0].mxu0 %v1008
  %v1076 = vpop.f32.mrb[0].mxu0
  %v1077 = vadd.f32 0.0, %v1076
  %v1078 = vpop.f32.mrb[0].mxu0
  %1079 = vdwg.mxu0
  %v1080 = vadd.f32 %v1004, %v1077
  %v1081 = vmul.f32 %v1080, 0.5
  %v1082 = vtanh.pop %v1081
  %v1083 = vadd.f32 %v1082, 1.0
  %v1084 = vmul.f32 %v1083, 0.5
  %v1085 = vtanh.pop %v1080
  %1087 = vrot.lane.b32.xlu0 %v1006, 32
  %v1088 = vpop.permute.xlu0 %1087
  %v1090 = vmul.f32 %v1084, %v1088
  %1092 = vrot.lane.b32.xlu0 %v1085, 64
  %v1093 = vpop.permute.xlu0 %1092
  %v1095 = vmul.f32 %v1084, %v1093
  %1097 = vrot.lane.b32.xlu0 %v1095, 32
  %v1098 = vpop.permute.xlu0 %1097
  %v1100 = vadd.f32 %v1090, %v1098
  %v1101 = vtanh.pop %v1100
  %1103 = vrot.lane.b32.xlu0 %v1101, 64
  %v1104 = vpop.permute.xlu0 %1103
  %v1106 = vmul.f32 %v1084, %v1104
  %vm1107 = vcmp.gt.s32.totalorder %v51, 4
  %v1108 = vsel %vm1107, 1, 0
  %vm1109 = vcmp.eq.s32.totalorder %v1108, 1
  %1110 = vrot.lane.b32.xlu0 %v1005, 96
  %v1111 = vpop.permute.xlu0 %1110
  %v1113 = vsel %vm1109, %v1106, %v1111
  %1115 = vrot.lane.b32.xlu0 %v1113, 32
  %v1116 = vpop.permute.xlu0 %1115
  %1118 = vst.msk [vmem:[#allocation4] sm:$0xff] %vm52, %v1116
  %v1119 = vld [vmem:[#allocation5] sm:$0xff]
  %1121 = vrot.lane.b32.xlu0 %v1119, 32
  %v1122 = vpop.permute.xlu0 %1121
  %v1124 = vsel %vm1109, %v1100, %v1122
  %1126 = vrot.lane.b32.xlu0 %v1124, 96
  %v1127 = vpop.permute.xlu0 %1126
  %1129 = vst.msk [vmem:[#allocation5] sm:$0xff] %vm52, %v1127
  %v1130 = vsel %vm1109, %v1106, 0.0
  %1132 = vrot.lane.b32.xlu0 %v1130, 64
  %v1133 = vpop.permute.xlu0 %1132
  %s1135 = scalar_lea.vmem %s3, 32
  %1136 = vst.msk [vmem:[%s1135] sm:$0xff] %vm331, %v1133
  %s1137 = scalar_lea.vmem %s1, 32
  %v1138 = vld [vmem:[%s1137] sm:$0xff]
  %v1139 = vld [vmem:[#allocation2] sm:$0xff]
  %v1140 = vld [vmem:[#allocation3] sm:$0xff]
  %v1142 = vsel %vm52, %v1139, 0
  %1144 = vmatprep.subr.mxu0 0.0
  %1145 = vmatpush1.msra.mxu0 %v57
  %1146 = vmatprep.subr.mxu0 0.0
  %1147 = vmatpush1.msra.mxu0 %v58
  %1148 = vmatprep.subr.mxu0 0.0
  %1149 = vmatpush1.msra.mxu0 %v59
  %1150 = vmatprep.subr.mxu0 0.0
  %1151 = vmatpush1.msra.mxu0 %v60
  %1152 = vmatprep.subr.mxu0 0.0
  %1153 = vmatpush1.msra.mxu0 0.0
  %1154 = vmatprep.subr.mxu0 0.0
  %1155 = vmatpush1.msra.mxu0 0.0
  %1156 = vmatprep.subr.mxu0 0.0
  %1157 = vmatpush1.msra.mxu0 0.0
  %1158 = vmatprep.subr.mxu0 0.0
  %1159 = vmatpush1.msra.mxu0 0.0
  %1160 = vmatprep.subr.mxu0 0.0
  %1161 = vmatpush1.msra.mxu0 0.0
  %1162 = vmatprep.subr.mxu0 0.0
  %1163 = vmatpush1.msra.mxu0 0.0
  %1164 = vmatprep.subr.mxu0 0.0
  %1165 = vmatpush1.msra.mxu0 0.0
  %1166 = vmatprep.subr.mxu0 0.0
  %1167 = vmatpush1.msra.mxu0 0.0
  %1168 = vmatprep.subr.mxu0 0.0
  %1169 = vmatpush1.msra.mxu0 0.0
  %1170 = vmatprep.subr.mxu0 0.0
  %1171 = vmatpush1.msra.mxu0 0.0
  %1172 = vmatprep.subr.mxu0 0.0
  %1173 = vmatpush1.msra.mxu0 0.0
  %1174 = vmatprep.subr.mxu0 0.0
  %1175 = vmatpush1.msra.mxu0 0.0
  %1176 = vmatprep.subr.mxu0 0.0
  %1177 = vmatpush1.msra.mxu0 0.0
  %1178 = vmatprep.subr.mxu0 0.0
  %1179 = vmatpush1.msra.mxu0 0.0
  %1180 = vmatprep.subr.mxu0 0.0
  %1181 = vmatpush1.msra.mxu0 0.0
  %1182 = vmatprep.subr.mxu0 0.0
  %1183 = vmatpush1.msra.mxu0 0.0
  %1184 = vmatprep.subr.mxu0 0.0
  %1185 = vmatpush1.msra.mxu0 0.0
  %1186 = vmatprep.subr.mxu0 0.0
  %1187 = vmatpush1.msra.mxu0 0.0
  %1188 = vmatprep.subr.mxu0 0.0
  %1189 = vmatpush1.msra.mxu0 0.0
  %1190 = vmatprep.subr.mxu0 0.0
  %1191 = vmatpush1.msra.mxu0 0.0
  %1192 = vmatprep.subr.mxu0 0.0
  %1193 = vmatpush1.msra.mxu0 0.0
  %1194 = vmatprep.subr.mxu0 0.0
  %1195 = vmatpush1.msra.mxu0 0.0
  %1196 = vmatprep.subr.mxu0 0.0
  %1197 = vmatpush1.msra.mxu0 0.0
  %1198 = vmatprep.subr.mxu0 0.0
  %1199 = vmatpush1.msra.mxu0 0.0
  %1200 = vmatprep.subr.mxu0 0.0
  %1201 = vmatpush1.msra.mxu0 0.0
  %1202 = vmatprep.subr.mxu0 0.0
  %1203 = vmatpush1.msra.mxu0 0.0
  %1204 = vmatprep.subr.mxu0 0.0
  %1205 = vmatpush1.msra.mxu0 0.0
  %1206 = vmatprep.subr.mxu0 0.0
  %1207 = vmatpush1.msra.mxu0 0.0
  %1208 = vmatprep.mubr.f32.mxu0 0.0
  %1209 = vmatmul.mubr.f32.gmra.mrb[0].mxu0 %v1142
  %v1210 = vpop.f32.mrb[0].mxu0
  %v1211 = vadd.f32 0.0, %v1210
  %v1212 = vpop.f32.mrb[0].mxu0
  %1213 = vdwg.mxu0
  %v1214 = vadd.f32 %v1138, %v1211
  %v1215 = vmul.f32 %v1214, 0.5
  %v1216 = vtanh.pop %v1215
  %v1217 = vadd.f32 %v1216, 1.0
  %v1218 = vmul.f32 %v1217, 0.5
  %v1219 = vtanh.pop %v1214
  %1221 = vrot.lane.b32.xlu0 %v1140, 32
  %v1222 = vpop.permute.xlu0 %1221
  %v1224 = vmul.f32 %v1218, %v1222
  %1226 = vrot.lane.b32.xlu0 %v1219, 64
  %v1227 = vpop.permute.xlu0 %1226
  %v1229 = vmul.f32 %v1218, %v1227
  %1231 = vrot.lane.b32.xlu0 %v1229, 32
  %v1232 = vpop.permute.xlu0 %1231
  %v1234 = vadd.f32 %v1224, %v1232
  %v1235 = vtanh.pop %v1234
  %1237 = vrot.lane.b32.xlu0 %v1235, 64
  %v1238 = vpop.permute.xlu0 %1237
  %v1240 = vmul.f32 %v1218, %v1238
  %1241 = vrot.lane.b32.xlu0 %v1139, 96
  %v1242 = vpop.permute.xlu0 %1241
  %v1244 = vsel %vm1109, %v1240, %v1242
  %1246 = vrot.lane.b32.xlu0 %v1244, 32
  %v1247 = vpop.permute.xlu0 %1246
  %1249 = vst.msk [vmem:[#allocation2] sm:$0xff] %vm52, %v1247
  %v1250 = vld [vmem:[#allocation3] sm:$0xff]
  %1252 = vrot.lane.b32.xlu0 %v1250, 32
  %v1253 = vpop.permute.xlu0 %1252
  %v1255 = vsel %vm1109, %v1234, %v1253
  %1257 = vrot.lane.b32.xlu0 %v1255, 96
  %v1258 = vpop.permute.xlu0 %1257
  %1260 = vst.msk [vmem:[#allocation3] sm:$0xff] %vm52, %v1258
  %v1261 = vsel %vm1109, %v1240, 0.0
  %1263 = vrot.lane.b32.xlu0 %v1261, 32
  %v1264 = vpop.permute.xlu0 %1263
  %1266 = vst.msk [vmem:[%s1135] sm:$0xff] %vm52, %v1264
  %s1267 = scalar_lea.vmem %s1, 88
  %v1268 = vld [vmem:[%s1267] sm:$0xff]
  %v1269 = vld [vmem:[#allocation4] sm:$0xff]
  %v1270 = vld [vmem:[#allocation5] sm:$0xff]
  %v1272 = vsel %vm52, %v1269, 0
  %1274 = vmatprep.subr.mxu0 0.0
  %1275 = vmatpush1.msra.mxu0 %v62
  %1276 = vmatprep.subr.mxu0 0.0
  %1277 = vmatpush1.msra.mxu0 %v63
  %1278 = vmatprep.subr.mxu0 0.0
  %1279 = vmatpush1.msra.mxu0 %v64
  %1280 = vmatprep.subr.mxu0 0.0
  %1281 = vmatpush1.msra.mxu0 %v65
  %1282 = vmatprep.subr.mxu0 0.0
  %1283 = vmatpush1.msra.mxu0 0.0
  %1284 = vmatprep.subr.mxu0 0.0
  %1285 = vmatpush1.msra.mxu0 0.0
  %1286 = vmatprep.subr.mxu0 0.0
  %1287 = vmatpush1.msra.mxu0 0.0
  %1288 = vmatprep.subr.mxu0 0.0
  %1289 = vmatpush1.msra.mxu0 0.0
  %1290 = vmatprep.subr.mxu0 0.0
  %1291 = vmatpush1.msra.mxu0 0.0
  %1292 = vmatprep.subr.mxu0 0.0
  %1293 = vmatpush1.msra.mxu0 0.0
  %1294 = vmatprep.subr.mxu0 0.0
  %1295 = vmatpush1.msra.mxu0 0.0
  %1296 = vmatprep.subr.mxu0 0.0
  %1297 = vmatpush1.msra.mxu0 0.0
  %1298 = vmatprep.subr.mxu0 0.0
  %1299 = vmatpush1.msra.mxu0 0.0
  %1300 = vmatprep.subr.mxu0 0.0
  %1301 = vmatpush1.msra.mxu0 0.0
  %1302 = vmatprep.subr.mxu0 0.0
  %1303 = vmatpush1.msra.mxu0 0.0
  %1304 = vmatprep.subr.mxu0 0.0
  %1305 = vmatpush1.msra.mxu0 0.0
  %1306 = vmatprep.subr.mxu0 0.0
  %1307 = vmatpush1.msra.mxu0 0.0
  %1308 = vmatprep.subr.mxu0 0.0
  %1309 = vmatpush1.msra.mxu0 0.0
  %1310 = vmatprep.subr.mxu0 0.0
  %1311 = vmatpush1.msra.mxu0 0.0
  %1312 = vmatprep.subr.mxu0 0.0
  %1313 = vmatpush1.msra.mxu0 0.0
  %1314 = vmatprep.subr.mxu0 0.0
  %1315 = vmatpush1.msra.mxu0 0.0
  %1316 = vmatprep.subr.mxu0 0.0
  %1317 = vmatpush1.msra.mxu0 0.0
  %1318 = vmatprep.subr.mxu0 0.0
  %1319 = vmatpush1.msra.mxu0 0.0
  %1320 = vmatprep.subr.mxu0 0.0
  %1321 = vmatpush1.msra.mxu0 0.0
  %1322 = vmatprep.subr.mxu0 0.0
  %1323 = vmatpush1.msra.mxu0 0.0
  %1324 = vmatprep.subr.mxu0 0.0
  %1325 = vmatpush1.msra.mxu0 0.0
  %1326 = vmatprep.subr.mxu0 0.0
  %1327 = vmatpush1.msra.mxu0 0.0
  %1328 = vmatprep.subr.mxu0 0.0
  %1329 = vmatpush1.msra.mxu0 0.0
  %1330 = vmatprep.subr.mxu0 0.0
  %1331 = vmatpush1.msra.mxu0 0.0
  %1332 = vmatprep.subr.mxu0 0.0
  %1333 = vmatpush1.msra.mxu0 0.0
  %1334 = vmatprep.subr.mxu0 0.0
  %1335 = vmatpush1.msra.mxu0 0.0
  %1336 = vmatprep.subr.mxu0 0.0
  %1337 = vmatpush1.msra.mxu0 0.0
  %1338 = vmatprep.mubr.f32.mxu0 0.0
  %1339 = vmatmul.mubr.f32.gmra.mrb[0].mxu0 %v1272
  %v1340 = vpop.f32.mrb[0].mxu0
  %v1341 = vadd.f32 0.0, %v1340
  %v1342 = vpop.f32.mrb[0].mxu0
  %1343 = vdwg.mxu0
  %v1344 = vadd.f32 %v1268, %v1341
  %v1345 = vmul.f32 %v1344, 0.5
  %v1346 = vtanh.pop %v1345
  %v1347 = vadd.f32 %v1346, 1.0
  %v1348 = vmul.f32 %v1347, 0.5
  %v1349 = vtanh.pop %v1344
  %1351 = vrot.lane.b32.xlu0 %v1270, 32
  %v1352 = vpop.permute.xlu0 %1351
  %v1354 = vmul.f32 %v1348, %v1352
  %1356 = vrot.lane.b32.xlu0 %v1349, 64
  %v1357 = vpop.permute.xlu0 %1356
  %v1359 = vmul.f32 %v1348, %v1357
  %1361 = vrot.lane.b32.xlu0 %v1359, 32
  %v1362 = vpop.permute.xlu0 %1361
  %v1364 = vadd.f32 %v1354, %v1362
  %v1365 = vtanh.pop %v1364
  %1367 = vrot.lane.b32.xlu0 %v1365, 64
  %v1368 = vpop.permute.xlu0 %1367
  %v1370 = vmul.f32 %v1348, %v1368
  %1371 = vrot.lane.b32.xlu0 %v1269, 96
  %v1372 = vpop.permute.xlu0 %1371
  %v1374 = vsel %vm975, %v1370, %v1372
  %1376 = vrot.lane.b32.xlu0 %v1374, 32
  %v1377 = vpop.permute.xlu0 %1376
  %1379 = vst.msk [vmem:[#allocation4] sm:$0xff] %vm52, %v1377
  %v1380 = vld [vmem:[#allocation5] sm:$0xff]
  %1382 = vrot.lane.b32.xlu0 %v1380, 32
  %v1383 = vpop.permute.xlu0 %1382
  %v1385 = vsel %vm975, %v1364, %v1383
  %1387 = vrot.lane.b32.xlu0 %v1385, 96
  %v1388 = vpop.permute.xlu0 %1387
  %1390 = vst.msk [vmem:[#allocation5] sm:$0xff] %vm52, %v1388
  %v1391 = vsel %vm975, %v1370, 0.0
  %1393 = vrot.lane.b32.xlu0 %v1391, 64
  %v1394 = vpop.permute.xlu0 %1393
  %1396 = vst.msk [vmem:[%s1001] sm:$0xff] %vm331, %v1394
  %s1397 = scalar_lea.vmem %s1, 40
  %v1398 = vld [vmem:[%s1397] sm:$0xff]
  %v1399 = vld [vmem:[#allocation2] sm:$0xff]
  %v1400 = vld [vmem:[#allocation3] sm:$0xff]
  %v1402 = vsel %vm52, %v1399, 0
  %1404 = vmatprep.subr.mxu0 0.0
  %1405 = vmatpush1.msra.mxu0 %v57
  %1406 = vmatprep.subr.mxu0 0.0
  %1407 = vmatpush1.msra.mxu0 %v58
  %1408 = vmatprep.subr.mxu0 0.0
  %1409 = vmatpush1.msra.mxu0 %v59
  %1410 = vmatprep.subr.mxu0 0.0
  %1411 = vmatpush1.msra.mxu0 %v60
  %1412 = vmatprep.subr.mxu0 0.0
  %1413 = vmatpush1.msra.mxu0 0.0
  %1414 = vmatprep.subr.mxu0 0.0
  %1415 = vmatpush1.msra.mxu0 0.0
  %1416 = vmatprep.subr.mxu0 0.0
  %1417 = vmatpush1.msra.mxu0 0.0
  %1418 = vmatprep.subr.mxu0 0.0
  %1419 = vmatpush1.msra.mxu0 0.0
  %1420 = vmatprep.subr.mxu0 0.0
  %1421 = vmatpush1.msra.mxu0 0.0
  %1422 = vmatprep.subr.mxu0 0.0
  %1423 = vmatpush1.msra.mxu0 0.0
  %1424 = vmatprep.subr.mxu0 0.0
  %1425 = vmatpush1.msra.mxu0 0.0
  %1426 = vmatprep.subr.mxu0 0.0
  %1427 = vmatpush1.msra.mxu0 0.0
  %1428 = vmatprep.subr.mxu0 0.0
  %1429 = vmatpush1.msra.mxu0 0.0
  %1430 = vmatprep.subr.mxu0 0.0
  %1431 = vmatpush1.msra.mxu0 0.0
  %1432 = vmatprep.subr.mxu0 0.0
  %1433 = vmatpush1.msra.mxu0 0.0
  %1434 = vmatprep.subr.mxu0 0.0
  %1435 = vmatpush1.msra.mxu0 0.0
  %1436 = vmatprep.subr.mxu0 0.0
  %1437 = vmatpush1.msra.mxu0 0.0
  %1438 = vmatprep.subr.mxu0 0.0
  %1439 = vmatpush1.msra.mxu0 0.0
  %1440 = vmatprep.subr.mxu0 0.0
  %1441 = vmatpush1.msra.mxu0 0.0
  %1442 = vmatprep.subr.mxu0 0.0
  %1443 = vmatpush1.msra.mxu0 0.0
  %1444 = vmatprep.subr.mxu0 0.0
  %1445 = vmatpush1.msra.mxu0 0.0
  %1446 = vmatprep.subr.mxu0 0.0
  %1447 = vmatpush1.msra.mxu0 0.0
  %1448 = vmatprep.subr.mxu0 0.0
  %1449 = vmatpush1.msra.mxu0 0.0
  %1450 = vmatprep.subr.mxu0 0.0
  %1451 = vmatpush1.msra.mxu0 0.0
  %1452 = vmatprep.subr.mxu0 0.0
  %1453 = vmatpush1.msra.mxu0 0.0
  %1454 = vmatprep.subr.mxu0 0.0
  %1455 = vmatpush1.msra.mxu0 0.0
  %1456 = vmatprep.subr.mxu0 0.0
  %1457 = vmatpush1.msra.mxu0 0.0
  %1458 = vmatprep.subr.mxu0 0.0
  %1459 = vmatpush1.msra.mxu0 0.0
  %1460 = vmatprep.subr.mxu0 0.0
  %1461 = vmatpush1.msra.mxu0 0.0
  %1462 = vmatprep.subr.mxu0 0.0
  %1463 = vmatpush1.msra.mxu0 0.0
  %1464 = vmatprep.subr.mxu0 0.0
  %1465 = vmatpush1.msra.mxu0 0.0
  %1466 = vmatprep.subr.mxu0 0.0
  %1467 = vmatpush1.msra.mxu0 0.0
  %1468 = vmatprep.mubr.f32.mxu0 0.0
  %1469 = vmatmul.mubr.f32.gmra.mrb[0].mxu0 %v1402
  %v1470 = vpop.f32.mrb[0].mxu0
  %v1471 = vadd.f32 0.0, %v1470
  %v1472 = vpop.f32.mrb[0].mxu0
  %1473 = vdwg.mxu0
  %v1474 = vadd.f32 %v1398, %v1471
  %v1475 = vmul.f32 %v1474, 0.5
  %v1476 = vtanh.pop %v1475
  %v1477 = vadd.f32 %v1476, 1.0
  %v1478 = vmul.f32 %v1477, 0.5
  %v1479 = vtanh.pop %v1474
  %1481 = vrot.lane.b32.xlu0 %v1400, 32
  %v1482 = vpop.permute.xlu0 %1481
  %v1484 = vmul.f32 %v1478, %v1482
  %1486 = vrot.lane.b32.xlu0 %v1479, 64
  %v1487 = vpop.permute.xlu0 %1486
  %v1489 = vmul.f32 %v1478, %v1487
  %1491 = vrot.lane.b32.xlu0 %v1489, 32
  %v1492 = vpop.permute.xlu0 %1491
  %v1494 = vadd.f32 %v1484, %v1492
  %v1495 = vtanh.pop %v1494
  %1497 = vrot.lane.b32.xlu0 %v1495, 64
  %v1498 = vpop.permute.xlu0 %1497
  %v1500 = vmul.f32 %v1478, %v1498
  %1501 = vrot.lane.b32.xlu0 %v1399, 96
  %v1502 = vpop.permute.xlu0 %1501
  %v1504 = vsel %vm841, %v1500, %v1502
  %1506 = vrot.lane.b32.xlu0 %v1504, 32
  %v1507 = vpop.permute.xlu0 %1506
  %1509 = vst.msk [vmem:[#allocation2] sm:$0xff] %vm52, %v1507
  %v1510 = vld [vmem:[#allocation3] sm:$0xff]
  %1512 = vrot.lane.b32.xlu0 %v1510, 32
  %v1513 = vpop.permute.xlu0 %1512
  %v1515 = vsel %vm841, %v1494, %v1513
  %1517 = vrot.lane.b32.xlu0 %v1515, 96
  %v1518 = vpop.permute.xlu0 %1517
  %1520 = vst.msk [vmem:[#allocation3] sm:$0xff] %vm52, %v1518
  %v1521 = vsel %vm841, %v1500, 0.0
  %1523 = vrot.lane.b32.xlu0 %v1521, 32
  %v1524 = vpop.permute.xlu0 %1523
  %1526 = vst.msk [vmem:[%s867] sm:$0xff] %vm52, %v1524
  %s1527 = scalar_lea.vmem %s1, 80
  %v1528 = vld [vmem:[%s1527] sm:$0xff]
  %v1529 = vld [vmem:[#allocation4] sm:$0xff]
  %v1530 = vld [vmem:[#allocation5] sm:$0xff]
  %v1532 = vsel %vm52, %v1529, 0
  %1534 = vmatprep.subr.mxu0 0.0
  %1535 = vmatpush1.msra.mxu0 %v62
  %1536 = vmatprep.subr.mxu0 0.0
  %1537 = vmatpush1.msra.mxu0 %v63
  %1538 = vmatprep.subr.mxu0 0.0
  %1539 = vmatpush1.msra.mxu0 %v64
  %1540 = vmatprep.subr.mxu0 0.0
  %1541 = vmatpush1.msra.mxu0 %v65
  %1542 = vmatprep.subr.mxu0 0.0
  %1543 = vmatpush1.msra.mxu0 0.0
  %1544 = vmatprep.subr.mxu0 0.0
  %1545 = vmatpush1.msra.mxu0 0.0
  %1546 = vmatprep.subr.mxu0 0.0
  %1547 = vmatpush1.msra.mxu0 0.0
  %1548 = vmatprep.subr.mxu0 0.0
  %1549 = vmatpush1.msra.mxu0 0.0
  %1550 = vmatprep.subr.mxu0 0.0
  %1551 = vmatpush1.msra.mxu0 0.0
  %1552 = vmatprep.subr.mxu0 0.0
  %1553 = vmatpush1.msra.mxu0 0.0
  %1554 = vmatprep.subr.mxu0 0.0
  %1555 = vmatpush1.msra.mxu0 0.0
  %1556 = vmatprep.subr.mxu0 0.0
  %1557 = vmatpush1.msra.mxu0 0.0
  %1558 = vmatprep.subr.mxu0 0.0
  %1559 = vmatpush1.msra.mxu0 0.0
  %1560 = vmatprep.subr.mxu0 0.0
  %1561 = vmatpush1.msra.mxu0 0.0
  %1562 = vmatprep.subr.mxu0 0.0
  %1563 = vmatpush1.msra.mxu0 0.0
  %1564 = vmatprep.subr.mxu0 0.0
  %1565 = vmatpush1.msra.mxu0 0.0
  %1566 = vmatprep.subr.mxu0 0.0
  %1567 = vmatpush1.msra.mxu0 0.0
  %1568 = vmatprep.subr.mxu0 0.0
  %1569 = vmatpush1.msra.mxu0 0.0
  %1570 = vmatprep.subr.mxu0 0.0
  %1571 = vmatpush1.msra.mxu0 0.0
  %1572 = vmatprep.subr.mxu0 0.0
  %1573 = vmatpush1.msra.mxu0 0.0
  %1574 = vmatprep.subr.mxu0 0.0
  %1575 = vmatpush1.msra.mxu0 0.0
  %1576 = vmatprep.subr.mxu0 0.0
  %1577 = vmatpush1.msra.mxu0 0.0
  %1578 = vmatprep.subr.mxu0 0.0
  %1579 = vmatpush1.msra.mxu0 0.0
  %1580 = vmatprep.subr.mxu0 0.0
  %1581 = vmatpush1.msra.mxu0 0.0
  %1582 = vmatprep.subr.mxu0 0.0
  %1583 = vmatpush1.msra.mxu0 0.0
  %1584 = vmatprep.subr.mxu0 0.0
  %1585 = vmatpush1.msra.mxu0 0.0
  %1586 = vmatprep.subr.mxu0 0.0
  %1587 = vmatpush1.msra.mxu0 0.0
  %1588 = vmatprep.subr.mxu0 0.0
  %1589 = vmatpush1.msra.mxu0 0.0
  %1590 = vmatprep.subr.mxu0 0.0
  %1591 = vmatpush1.msra.mxu0 0.0
  %1592 = vmatprep.subr.mxu0 0.0
  %1593 = vmatpush1.msra.mxu0 0.0
  %1594 = vmatprep.subr.mxu0 0.0
  %1595 = vmatpush1.msra.mxu0 0.0
  %1596 = vmatprep.subr.mxu0 0.0
  %1597 = vmatpush1.msra.mxu0 0.0
  %1598 = vmatprep.mubr.f32.mxu0 0.0
  %1599 = vmatmul.mubr.f32.gmra.mrb[0].mxu0 %v1532
  %v1600 = vpop.f32.mrb[0].mxu0
  %v1601 = vadd.f32 0.0, %v1600
  %v1602 = vpop.f32.mrb[0].mxu0
  %1603 = vdwg.mxu0
  %v1604 = vadd.f32 %v1528, %v1601
  %v1605 = vmul.f32 %v1604, 0.5
  %v1606 = vtanh.pop %v1605
  %v1607 = vadd.f32 %v1606, 1.0
  %v1608 = vmul.f32 %v1607, 0.5
  %v1609 = vtanh.pop %v1604
  %1611 = vrot.lane.b32.xlu0 %v1530, 32
  %v1612 = vpop.permute.xlu0 %1611
  %v1614 = vmul.f32 %v1608, %v1612
  %1616 = vrot.lane.b32.xlu0 %v1609, 64
  %v1617 = vpop.permute.xlu0 %1616
  %v1619 = vmul.f32 %v1608, %v1617
  %1621 = vrot.lane.b32.xlu0 %v1619, 32
  %v1622 = vpop.permute.xlu0 %1621
  %v1624 = vadd.f32 %v1614, %v1622
  %v1625 = vtanh.pop %v1624
  %1627 = vrot.lane.b32.xlu0 %v1625, 64
  %v1628 = vpop.permute.xlu0 %1627
  %v1630 = vmul.f32 %v1608, %v1628
  %1631 = vrot.lane.b32.xlu0 %v1529, 96
  %v1632 = vpop.permute.xlu0 %1631
  %v1634 = vsel %vm707, %v1630, %v1632
  %1636 = vrot.lane.b32.xlu0 %v1634, 32
  %v1637 = vpop.permute.xlu0 %1636
  %1639 = vst.msk [vmem:[#allocation4] sm:$0xff] %vm52, %v1637
  %v1640 = vld [vmem:[#allocation5] sm:$0xff]
  %1642 = vrot.lane.b32.xlu0 %v1640, 32
  %v1643 = vpop.permute.xlu0 %1642
  %v1645 = vsel %vm707, %v1624, %v1643
  %1647 = vrot.lane.b32.xlu0 %v1645, 96
  %v1648 = vpop.permute.xlu0 %1647
  %1650 = vst.msk [vmem:[#allocation5] sm:$0xff] %vm52, %v1648
  %v1651 = vsel %vm707, %v1630, 0.0
  %1653 = vrot.lane.b32.xlu0 %v1651, 64
  %v1654 = vpop.permute.xlu0 %1653
  %1656 = vst.msk [vmem:[%s733] sm:$0xff] %vm331, %v1654
  %s1657 = scalar_lea.vmem %s1, 48
  %v1658 = vld [vmem:[%s1657] sm:$0xff]
  %v1659 = vld [vmem:[#allocation2] sm:$0xff]
  %v1660 = vld [vmem:[#allocation3] sm:$0xff]
  %v1662 = vsel %vm52, %v1659, 0
  %1664 = vmatprep.subr.mxu0 0.0
  %1665 = vmatpush1.msra.mxu0 %v57
  %1666 = vmatprep.subr.mxu0 0.0
  %1667 = vmatpush1.msra.mxu0 %v58
  %1668 = vmatprep.subr.mxu0 0.0
  %1669 = vmatpush1.msra.mxu0 %v59
  %1670 = vmatprep.subr.mxu0 0.0
  %1671 = vmatpush1.msra.mxu0 %v60
  %1672 = vmatprep.subr.mxu0 0.0
  %1673 = vmatpush1.msra.mxu0 0.0
  %1674 = vmatprep.subr.mxu0 0.0
  %1675 = vmatpush1.msra.mxu0 0.0
  %1676 = vmatprep.subr.mxu0 0.0
  %1677 = vmatpush1.msra.mxu0 0.0
  %1678 = vmatprep.subr.mxu0 0.0
  %1679 = vmatpush1.msra.mxu0 0.0
  %1680 = vmatprep.subr.mxu0 0.0
  %1681 = vmatpush1.msra.mxu0 0.0
  %1682 = vmatprep.subr.mxu0 0.0
  %1683 = vmatpush1.msra.mxu0 0.0
  %1684 = vmatprep.subr.mxu0 0.0
  %1685 = vmatpush1.msra.mxu0 0.0
  %1686 = vmatprep.subr.mxu0 0.0
  %1687 = vmatpush1.msra.mxu0 0.0
  %1688 = vmatprep.subr.mxu0 0.0
  %1689 = vmatpush1.msra.mxu0 0.0
  %1690 = vmatprep.subr.mxu0 0.0
  %1691 = vmatpush1.msra.mxu0 0.0
  %1692 = vmatprep.subr.mxu0 0.0
  %1693 = vmatpush1.msra.mxu0 0.0
  %1694 = vmatprep.subr.mxu0 0.0
  %1695 = vmatpush1.msra.mxu0 0.0
  %1696 = vmatprep.subr.mxu0 0.0
  %1697 = vmatpush1.msra.mxu0 0.0
  %1698 = vmatprep.subr.mxu0 0.0
  %1699 = vmatpush1.msra.mxu0 0.0
  %1700 = vmatprep.subr.mxu0 0.0
  %1701 = vmatpush1.msra.mxu0 0.0
  %1702 = vmatprep.subr.mxu0 0.0
  %1703 = vmatpush1.msra.mxu0 0.0
  %1704 = vmatprep.subr.mxu0 0.0
  %1705 = vmatpush1.msra.mxu0 0.0
  %1706 = vmatprep.subr.mxu0 0.0
  %1707 = vmatpush1.msra.mxu0 0.0
  %1708 = vmatprep.subr.mxu0 0.0
  %1709 = vmatpush1.msra.mxu0 0.0
  %1710 = vmatprep.subr.mxu0 0.0
  %1711 = vmatpush1.msra.mxu0 0.0
  %1712 = vmatprep.subr.mxu0 0.0
  %1713 = vmatpush1.msra.mxu0 0.0
  %1714 = vmatprep.subr.mxu0 0.0
  %1715 = vmatpush1.msra.mxu0 0.0
  %1716 = vmatprep.subr.mxu0 0.0
  %1717 = vmatpush1.msra.mxu0 0.0
  %1718 = vmatprep.subr.mxu0 0.0
  %1719 = vmatpush1.msra.mxu0 0.0
  %1720 = vmatprep.subr.mxu0 0.0
  %1721 = vmatpush1.msra.mxu0 0.0
  %1722 = vmatprep.subr.mxu0 0.0
  %1723 = vmatpush1.msra.mxu0 0.0
  %1724 = vmatprep.subr.mxu0 0.0
  %1725 = vmatpush1.msra.mxu0 0.0
  %1726 = vmatprep.subr.mxu0 0.0
  %1727 = vmatpush1.msra.mxu0 0.0
  %1728 = vmatprep.mubr.f32.mxu0 0.0
  %1729 = vmatmul.mubr.f32.gmra.mrb[0].mxu0 %v1662
  %v1730 = vpop.f32.mrb[0].mxu0
  %v1731 = vadd.f32 0.0, %v1730
  %v1732 = vpop.f32.mrb[0].mxu0
  %1733 = vdwg.mxu0
  %v1734 = vadd.f32 %v1658, %v1731
  %v1735 = vmul.f32 %v1734, 0.5
  %v1736 = vtanh.pop %v1735
  %v1737 = vadd.f32 %v1736, 1.0
  %v1738 = vmul.f32 %v1737, 0.5
  %v1739 = vtanh.pop %v1734
  %1741 = vrot.lane.b32.xlu0 %v1660, 32
  %v1742 = vpop.permute.xlu0 %1741
  %v1744 = vmul.f32 %v1738, %v1742
  %1746 = vrot.lane.b32.xlu0 %v1739, 64
  %v1747 = vpop.permute.xlu0 %1746
  %v1749 = vmul.f32 %v1738, %v1747
  %1751 = vrot.lane.b32.xlu0 %v1749, 32
  %v1752 = vpop.permute.xlu0 %1751
  %v1754 = vadd.f32 %v1744, %v1752
  %v1755 = vtanh.pop %v1754
  %1757 = vrot.lane.b32.xlu0 %v1755, 64
  %v1758 = vpop.permute.xlu0 %1757
  %v1760 = vmul.f32 %v1738, %v1758
  %1761 = vrot.lane.b32.xlu0 %v1659, 96
  %v1762 = vpop.permute.xlu0 %1761
  %v1764 = vsel %vm573, %v1760, %v1762
  %1766 = vrot.lane.b32.xlu0 %v1764, 32
  %v1767 = vpop.permute.xlu0 %1766
  %1769 = vst.msk [vmem:[#allocation2] sm:$0xff] %vm52, %v1767
  %v1770 = vld [vmem:[#allocation3] sm:$0xff]
  %1772 = vrot.lane.b32.xlu0 %v1770, 32
  %v1773 = vpop.permute.xlu0 %1772
  %v1775 = vsel %vm573, %v1754, %v1773
  %1777 = vrot.lane.b32.xlu0 %v1775, 96
  %v1778 = vpop.permute.xlu0 %1777
  %1780 = vst.msk [vmem:[#allocation3] sm:$0xff] %vm52, %v1778
  %v1781 = vsel %vm573, %v1760, 0.0
  %1783 = vrot.lane.b32.xlu0 %v1781, 32
  %v1784 = vpop.permute.xlu0 %1783
  %1786 = vst.msk [vmem:[%s599] sm:$0xff] %vm52, %v1784
  %s1787 = scalar_lea.vmem %s1, 72
  %v1788 = vld [vmem:[%s1787] sm:$0xff]
  %v1789 = vld [vmem:[#allocation4] sm:$0xff]
  %v1790 = vld [vmem:[#allocation5] sm:$0xff]
  %v1792 = vsel %vm52, %v1789, 0
  %1794 = vmatprep.subr.mxu0 0.0
  %1795 = vmatpush1.msra.mxu0 %v62
  %1796 = vmatprep.subr.mxu0 0.0
  %1797 = vmatpush1.msra.mxu0 %v63
  %1798 = vmatprep.subr.mxu0 0.0
  %1799 = vmatpush1.msra.mxu0 %v64
  %1800 = vmatprep.subr.mxu0 0.0
  %1801 = vmatpush1.msra.mxu0 %v65
  %1802 = vmatprep.subr.mxu0 0.0
  %1803 = vmatpush1.msra.mxu0 0.0
  %1804 = vmatprep.subr.mxu0 0.0
  %1805 = vmatpush1.msra.mxu0 0.0
  %1806 = vmatprep.subr.mxu0 0.0
  %1807 = vmatpush1.msra.mxu0 0.0
  %1808 = vmatprep.subr.mxu0 0.0
  %1809 = vmatpush1.msra.mxu0 0.0
  %1810 = vmatprep.subr.mxu0 0.0
  %1811 = vmatpush1.msra.mxu0 0.0
  %1812 = vmatprep.subr.mxu0 0.0
  %1813 = vmatpush1.msra.mxu0 0.0
  %1814 = vmatprep.subr.mxu0 0.0
  %1815 = vmatpush1.msra.mxu0 0.0
  %1816 = vmatprep.subr.mxu0 0.0
  %1817 = vmatpush1.msra.mxu0 0.0
  %1818 = vmatprep.subr.mxu0 0.0
  %1819 = vmatpush1.msra.mxu0 0.0
  %1820 = vmatprep.subr.mxu0 0.0
  %1821 = vmatpush1.msra.mxu0 0.0
  %1822 = vmatprep.subr.mxu0 0.0
  %1823 = vmatpush1.msra.mxu0 0.0
  %1824 = vmatprep.subr.mxu0 0.0
  %1825 = vmatpush1.msra.mxu0 0.0
  %1826 = vmatprep.subr.mxu0 0.0
  %1827 = vmatpush1.msra.mxu0 0.0
  %1828 = vmatprep.subr.mxu0 0.0
  %1829 = vmatpush1.msra.mxu0 0.0
  %1830 = vmatprep.subr.mxu0 0.0
  %1831 = vmatpush1.msra.mxu0 0.0
  %1832 = vmatprep.subr.mxu0 0.0
  %1833 = vmatpush1.msra.mxu0 0.0
  %1834 = vmatprep.subr.mxu0 0.0
  %1835 = vmatpush1.msra.mxu0 0.0
  %1836 = vmatprep.subr.mxu0 0.0
  %1837 = vmatpush1.msra.mxu0 0.0
  %1838 = vmatprep.subr.mxu0 0.0
  %1839 = vmatpush1.msra.mxu0 0.0
  %1840 = vmatprep.subr.mxu0 0.0
  %1841 = vmatpush1.msra.mxu0 0.0
  %1842 = vmatprep.subr.mxu0 0.0
  %1843 = vmatpush1.msra.mxu0 0.0
  %1844 = vmatprep.subr.mxu0 0.0
  %1845 = vmatpush1.msra.mxu0 0.0
  %1846 = vmatprep.subr.mxu0 0.0
  %1847 = vmatpush1.msra.mxu0 0.0
  %1848 = vmatprep.subr.mxu0 0.0
  %1849 = vmatpush1.msra.mxu0 0.0
  %1850 = vmatprep.subr.mxu0 0.0
  %1851 = vmatpush1.msra.mxu0 0.0
  %1852 = vmatprep.subr.mxu0 0.0
  %1853 = vmatpush1.msra.mxu0 0.0
  %1854 = vmatprep.subr.mxu0 0.0
  %1855 = vmatpush1.msra.mxu0 0.0
  %1856 = vmatprep.subr.mxu0 0.0
  %1857 = vmatpush1.msra.mxu0 0.0
  %1858 = vmatprep.mubr.f32.mxu0 0.0
  %1859 = vmatmul.mubr.f32.gmra.mrb[0].mxu0 %v1792
  %v1860 = vpop.f32.mrb[0].mxu0
  %v1861 = vadd.f32 0.0, %v1860
  %v1862 = vpop.f32.mrb[0].mxu0
  %1863 = vdwg.mxu0
  %v1864 = vadd.f32 %v1788, %v1861
  %v1865 = vmul.f32 %v1864, 0.5
  %v1866 = vtanh.pop %v1865
  %v1867 = vadd.f32 %v1866, 1.0
  %v1868 = vmul.f32 %v1867, 0.5
  %v1869 = vtanh.pop %v1864
  %1871 = vrot.lane.b32.xlu0 %v1790, 32
  %v1872 = vpop.permute.xlu0 %1871
  %v1874 = vmul.f32 %v1868, %v1872
  %1876 = vrot.lane.b32.xlu0 %v1869, 64
  %v1877 = vpop.permute.xlu0 %1876
  %v1879 = vmul.f32 %v1868, %v1877
  %1881 = vrot.lane.b32.xlu0 %v1879, 32
  %v1882 = vpop.permute.xlu0 %1881
  %v1884 = vadd.f32 %v1874, %v1882
  %v1885 = vtanh.pop %v1884
  %1887 = vrot.lane.b32.xlu0 %v1885, 64
  %v1888 = vpop.permute.xlu0 %1887
  %v1890 = vmul.f32 %v1868, %v1888
  %1891 = vrot.lane.b32.xlu0 %v1789, 96
  %v1892 = vpop.permute.xlu0 %1891
  %v1894 = vsel %vm439, %v1890, %v1892
  %1896 = vrot.lane.b32.xlu0 %v1894, 32
  %v1897 = vpop.permute.xlu0 %1896
  %1899 = vst.msk [vmem:[#allocation4] sm:$0xff] %vm52, %v1897
  %v1900 = vld [vmem:[#allocation5] sm:$0xff]
  %1902 = vrot.lane.b32.xlu0 %v1900, 32
  %v1903 = vpop.permute.xlu0 %1902
  %v1905 = vsel %vm439, %v1884, %v1903
  %1907 = vrot.lane.b32.xlu0 %v1905, 96
  %v1908 = vpop.permute.xlu0 %1907
  %1910 = vst.msk [vmem:[#allocation5] sm:$0xff] %vm52, %v1908
  %v1911 = vsel %vm439, %v1890, 0.0
  %1913 = vrot.lane.b32.xlu0 %v1911, 64
  %v1914 = vpop.permute.xlu0 %1913
  %1916 = vst.msk [vmem:[%s465] sm:$0xff] %vm331, %v1914
  %s1917 = scalar_lea.vmem %s1, 56
  %v1918 = vld [vmem:[%s1917] sm:$0xff]
  %v1919 = vld [vmem:[#allocation2] sm:$0xff]
  %v1920 = vld [vmem:[#allocation3] sm:$0xff]
  %v1922 = vsel %vm52, %v1919, 0
  %1924 = vmatprep.subr.mxu0 0.0
  %1925 = vmatpush1.msra.mxu0 %v57
  %1926 = vmatprep.subr.mxu0 0.0
  %1927 = vmatpush1.msra.mxu0 %v58
  %1928 = vmatprep.subr.mxu0 0.0
  %1929 = vmatpush1.msra.mxu0 %v59
  %1930 = vmatprep.subr.mxu0 0.0
  %1931 = vmatpush1.msra.mxu0 %v60
  %1932 = vmatprep.subr.mxu0 0.0
  %1933 = vmatpush1.msra.mxu0 0.0
  %1934 = vmatprep.subr.mxu0 0.0
  %1935 = vmatpush1.msra.mxu0 0.0
  %1936 = vmatprep.subr.mxu0 0.0
  %1937 = vmatpush1.msra.mxu0 0.0
  %1938 = vmatprep.subr.mxu0 0.0
  %1939 = vmatpush1.msra.mxu0 0.0
  %1940 = vmatprep.subr.mxu0 0.0
  %1941 = vmatpush1.msra.mxu0 0.0
  %1942 = vmatprep.subr.mxu0 0.0
  %1943 = vmatpush1.msra.mxu0 0.0
  %1944 = vmatprep.subr.mxu0 0.0
  %1945 = vmatpush1.msra.mxu0 0.0
  %1946 = vmatprep.subr.mxu0 0.0
  %1947 = vmatpush1.msra.mxu0 0.0
  %1948 = vmatprep.subr.mxu0 0.0
  %1949 = vmatpush1.msra.mxu0 0.0
  %1950 = vmatprep.subr.mxu0 0.0
  %1951 = vmatpush1.msra.mxu0 0.0
  %1952 = vmatprep.subr.mxu0 0.0
  %1953 = vmatpush1.msra.mxu0 0.0
  %1954 = vmatprep.subr.mxu0 0.0
  %1955 = vmatpush1.msra.mxu0 0.0
  %1956 = vmatprep.subr.mxu0 0.0
  %1957 = vmatpush1.msra.mxu0 0.0
  %1958 = vmatprep.subr.mxu0 0.0
  %1959 = vmatpush1.msra.mxu0 0.0
  %1960 = vmatprep.subr.mxu0 0.0
  %1961 = vmatpush1.msra.mxu0 0.0
  %1962 = vmatprep.subr.mxu0 0.0
  %1963 = vmatpush1.msra.mxu0 0.0
  %1964 = vmatprep.subr.mxu0 0.0
  %1965 = vmatpush1.msra.mxu0 0.0
  %1966 = vmatprep.subr.mxu0 0.0
  %1967 = vmatpush1.msra.mxu0 0.0
  %1968 = vmatprep.subr.mxu0 0.0
  %1969 = vmatpush1.msra.mxu0 0.0
  %1970 = vmatprep.subr.mxu0 0.0
  %1971 = vmatpush1.msra.mxu0 0.0
  %1972 = vmatprep.subr.mxu0 0.0
  %1973 = vmatpush1.msra.mxu0 0.0
  %1974 = vmatprep.subr.mxu0 0.0
  %1975 = vmatpush1.msra.mxu0 0.0
  %1976 = vmatprep.subr.mxu0 0.0
  %1977 = vmatpush1.msra.mxu0 0.0
  %1978 = vmatprep.subr.mxu0 0.0
  %1979 = vmatpush1.msra.mxu0 0.0
  %1980 = vmatprep.subr.mxu0 0.0
  %1981 = vmatpush1.msra.mxu0 0.0
  %1982 = vmatprep.subr.mxu0 0.0
  %1983 = vmatpush1.msra.mxu0 0.0
  %1984 = vmatprep.subr.mxu0 0.0
  %1985 = vmatpush1.msra.mxu0 0.0
  %1986 = vmatprep.subr.mxu0 0.0
  %1987 = vmatpush1.msra.mxu0 0.0
  %1988 = vmatprep.mubr.f32.mxu0 0.0
  %1989 = vmatmul.mubr.f32.gmra.mrb[0].mxu0 %v1922
  %v1990 = vpop.f32.mrb[0].mxu0
  %v1991 = vadd.f32 0.0, %v1990
  %v1992 = vpop.f32.mrb[0].mxu0
  %1993 = vdwg.mxu0
  %v1994 = vadd.f32 %v1918, %v1991
  %v1995 = vmul.f32 %v1994, 0.5
  %v1996 = vtanh.pop %v1995
  %v1997 = vadd.f32 %v1996, 1.0
  %v1998 = vmul.f32 %v1997, 0.5
  %v1999 = vtanh.pop %v1994
  %2001 = vrot.lane.b32.xlu0 %v1920, 32
  %v2002 = vpop.permute.xlu0 %2001
  %v2004 = vmul.f32 %v1998, %v2002
  %2006 = vrot.lane.b32.xlu0 %v1999, 64
  %v2007 = vpop.permute.xlu0 %2006
  %v2009 = vmul.f32 %v1998, %v2007
  %2011 = vrot.lane.b32.xlu0 %v2009, 32
  %v2012 = vpop.permute.xlu0 %2011
  %v2014 = vadd.f32 %v2004, %v2012
  %v2015 = vtanh.pop %v2014
  %2017 = vrot.lane.b32.xlu0 %v2015, 64
  %v2018 = vpop.permute.xlu0 %2017
  %v2020 = vmul.f32 %v1998, %v2018
  %2021 = vrot.lane.b32.xlu0 %v1919, 96
  %v2022 = vpop.permute.xlu0 %2021
  %v2024 = vsel %vm304, %v2020, %v2022
  %2026 = vrot.lane.b32.xlu0 %v2024, 32
  %v2027 = vpop.permute.xlu0 %2026
  %2029 = vst.msk [vmem:[#allocation2] sm:$0xff] %vm52, %v2027
  %v2030 = vld [vmem:[#allocation3] sm:$0xff]
  %2032 = vrot.lane.b32.xlu0 %v2030, 32
  %v2033 = vpop.permute.xlu0 %2032
  %v2035 = vsel %vm304, %v2014, %v2033
  %2037 = vrot.lane.b32.xlu0 %v2035, 96
  %v2038 = vpop.permute.xlu0 %2037
  %2040 = vst.msk [vmem:[#allocation3] sm:$0xff] %vm52, %v2038
  %v2041 = vsel %vm304, %v2020, 0.0
  %2043 = vrot.lane.b32.xlu0 %v2041, 32
  %v2044 = vpop.permute.xlu0 %2043
  %2046 = vst.msk [vmem:[%s330] sm:$0xff] %vm52, %v2044
  %s2047 = scalar_lea.vmem %s1, 64
  %v2048 = vld [vmem:[%s2047] sm:$0xff]
  %v2049 = vld [vmem:[#allocation4] sm:$0xff]
  %v2050 = vld [vmem:[#allocation5] sm:$0xff]
  %v2052 = vsel %vm52, %v2049, 0
  %2054 = vmatprep.subr.mxu0 0.0
  %2055 = vmatpush1.msra.mxu0 %v62
  %2056 = vmatprep.subr.mxu0 0.0
  %2057 = vmatpush1.msra.mxu0 %v63
  %2058 = vmatprep.subr.mxu0 0.0
  %2059 = vmatpush1.msra.mxu0 %v64
  %2060 = vmatprep.subr.mxu0 0.0
  %2061 = vmatpush1.msra.mxu0 %v65
  %2062 = vmatprep.subr.mxu0 0.0
  %2063 = vmatpush1.msra.mxu0 0.0
  %2064 = vmatprep.subr.mxu0 0.0
  %2065 = vmatpush1.msra.mxu0 0.0
  %2066 = vmatprep.subr.mxu0 0.0
  %2067 = vmatpush1.msra.mxu0 0.0
  %2068 = vmatprep.subr.mxu0 0.0
  %2069 = vmatpush1.msra.mxu0 0.0
  %2070 = vmatprep.subr.mxu0 0.0
  %2071 = vmatpush1.msra.mxu0 0.0
  %2072 = vmatprep.subr.mxu0 0.0
  %2073 = vmatpush1.msra.mxu0 0.0
  %2074 = vmatprep.subr.mxu0 0.0
  %2075 = vmatpush1.msra.mxu0 0.0
  %2076 = vmatprep.subr.mxu0 0.0
  %2077 = vmatpush1.msra.mxu0 0.0
  %2078 = vmatprep.subr.mxu0 0.0
  %2079 = vmatpush1.msra.mxu0 0.0
  %2080 = vmatprep.subr.mxu0 0.0
  %2081 = vmatpush1.msra.mxu0 0.0
  %2082 = vmatprep.subr.mxu0 0.0
  %2083 = vmatpush1.msra.mxu0 0.0
  %2084 = vmatprep.subr.mxu0 0.0
  %2085 = vmatpush1.msra.mxu0 0.0
  %2086 = vmatprep.subr.mxu0 0.0
  %2087 = vmatpush1.msra.mxu0 0.0
  %2088 = vmatprep.subr.mxu0 0.0
  %2089 = vmatpush1.msra.mxu0 0.0
  %2090 = vmatprep.subr.mxu0 0.0
  %2091 = vmatpush1.msra.mxu0 0.0
  %2092 = vmatprep.subr.mxu0 0.0
  %2093 = vmatpush1.msra.mxu0 0.0
  %2094 = vmatprep.subr.mxu0 0.0
  %2095 = vmatpush1.msra.mxu0 0.0
  %2096 = vmatprep.subr.mxu0 0.0
  %2097 = vmatpush1.msra.mxu0 0.0
  %2098 = vmatprep.subr.mxu0 0.0
  %2099 = vmatpush1.msra.mxu0 0.0
  %2100 = vmatprep.subr.mxu0 0.0
  %2101 = vmatpush1.msra.mxu0 0.0
  %2102 = vmatprep.subr.mxu0 0.0
  %2103 = vmatpush1.msra.mxu0 0.0
  %2104 = vmatprep.subr.mxu0 0.0
  %2105 = vmatpush1.msra.mxu0 0.0
  %2106 = vmatprep.subr.mxu0 0.0
  %2107 = vmatpush1.msra.mxu0 0.0
  %2108 = vmatprep.subr.mxu0 0.0
  %2109 = vmatpush1.msra.mxu0 0.0
  %2110 = vmatprep.subr.mxu0 0.0
  %2111 = vmatpush1.msra.mxu0 0.0
  %2112 = vmatprep.subr.mxu0 0.0
  %2113 = vmatpush1.msra.mxu0 0.0
  %2114 = vmatprep.subr.mxu0 0.0
  %2115 = vmatpush1.msra.mxu0 0.0
  %2116 = vmatprep.subr.mxu0 0.0
  %2117 = vmatpush1.msra.mxu0 0.0
  %2118 = vmatprep.mubr.f32.mxu0 0.0
  %2119 = vmatmul.mubr.f32.gmra.mrb[0].mxu0 %v2052
  %v2120 = vpop.f32.mrb[0].mxu0
  %v2121 = vadd.f32 0.0, %v2120
  %v2122 = vpop.f32.mrb[0].mxu0
  %2123 = vdwg.mxu0
  %v2124 = vadd.f32 %v2048, %v2121
  %v2125 = vmul.f32 %v2124, 0.5
  %v2126 = vtanh.pop %v2125
  %v2127 = vadd.f32 %v2126, 1.0
  %v2128 = vmul.f32 %v2127, 0.5
  %v2129 = vtanh.pop %v2124
  %2131 = vrot.lane.b32.xlu0 %v2050, 32
  %v2132 = vpop.permute.xlu0 %2131
  %v2134 = vmul.f32 %v2128, %v2132
  %2136 = vrot.lane.b32.xlu0 %v2129, 64
  %v2137 = vpop.permute.xlu0 %2136
  %v2139 = vmul.f32 %v2128, %v2137
  %2141 = vrot.lane.b32.xlu0 %v2139, 32
  %v2142 = vpop.permute.xlu0 %2141
  %v2144 = vadd.f32 %v2134, %v2142
  %v2145 = vtanh.pop %v2144
  %2147 = vrot.lane.b32.xlu0 %v2145, 64
  %v2148 = vpop.permute.xlu0 %2147
  %v2150 = vmul.f32 %v2128, %v2148
  %2151 = vrot.lane.b32.xlu0 %v2049, 96
  %v2152 = vpop.permute.xlu0 %2151
  %v2154 = vsel %vm171, %v2150, %v2152
  %2156 = vrot.lane.b32.xlu0 %v2154, 32
  %v2157 = vpop.permute.xlu0 %2156
  %2159 = vst.msk [vmem:[#allocation4] sm:$0xff] %vm52, %v2157
  %v2160 = vld [vmem:[#allocation5] sm:$0xff]
  %2162 = vrot.lane.b32.xlu0 %v2160, 32
  %v2163 = vpop.permute.xlu0 %2162
  %v2165 = vsel %vm171, %v2144, %v2163
  %2167 = vrot.lane.b32.xlu0 %v2165, 96
  %v2168 = vpop.permute.xlu0 %2167
  %2170 = vst.msk [vmem:[#allocation5] sm:$0xff] %vm52, %v2168
  %v2171 = vsel %vm171, %v2150, 0.0
  %2173 = vrot.lane.b32.xlu0 %v2171, 64
  %v2174 = vpop.permute.xlu0 %2173
  %2176 = vst.msk [vmem:[%s3] sm:$0xff] %vm331, %v2174
  // Predicated region
  $region10: #{sentence_encoder_forward.2} parent=0 // pred_check
    _
  $region11: #{sentence_encoder_forward.2} parent=0 // pred_check_branch
    %2178 = sbr.rel (0) target = $region13
  $region12: #{sentence_encoder_forward.2} parent=0 // pred_region
    _
  $region13: #{sentence_encoder_forward.2} parent=0 // pred_fallthru
    _
  // Predicated region
  $region14: #{sentence_encoder_forward.2} parent=0 // pred_check
    _
  $region15: #{sentence_encoder_forward.2} parent=0 // pred_check_branch
    %2180 = sbr.rel (0) target = $region17
  $region16: #{sentence_encoder_forward.2} parent=0 // pred_region
    _
  $region17: #{sentence_encoder_forward.2} parent=0 // pred_fallthru
    _

</llo_original>
